<compile_context>
chip_gen: v5e
topology: v5e:2x2
jax: 0.10.0
libtpu: 0.0.40
codegen_flags: <defaults>
</compile_context>

<pallas_src>
import functools

import numpy as np
import jax
import jax.numpy as jnp
from jax import lax
from jax.experimental import pallas as pl
from jax.experimental.pallas import tpu as pltpu

KERNEL_SIZE = 3          # fixed by the module (kernel_size = 3, padding = 1)
_EPS_BN = 1e-4
_UNROLL_MAX_HIDDEN = 8   # unroll hidden layers up to this count, else fori_loop


@functools.lru_cache(maxsize=None)
def _make_fused_call(G, C, L, TB, n_hidden, mxu_dtype_name):
    """One pallas_call running the full DnCNN stack; grid over packed batch tiles."""
    TBL = TB * L

    def kernel(x_ref, wf_ref, wh0_ref, wh1_ref, wh2_ref, shift_ref, wl_ref,
               geom_ref, o_ref):
        # x_ref:     (1, 1, TBL)        TB batch elements packed along lanes
        # wf_ref:    (C, 3)             first-layer taps (f32)
        # wh{k}_ref: (n_hidden, C, C)   hidden tap k, BN scale folded (bf16 or f32)
        # shift_ref: (n_hidden, C, 1)   folded BN shift (f32)
        # wl_ref:    (C, 3)             last-layer taps (f32)
        # geom_ref:  (3, TBL)           [mask_ratio; not_first_col; not_last_col]
        ratio = geom_ref[0:1, :]                                  # (1, TBL)
        not_first = geom_ref[1:2, :]                              # zero col l%L==0
        not_last = geom_ref[2:3, :]                               # zero col l%L==L-1
        mdt = wh0_ref.dtype                                       # MXU operand dtype

        def shifted(a):
            # zero-padded +-1 shifts per L-segment: circular lane roll (XLU slot)
            # with non-negative shifts + per-segment edge masking.
            a_r = pltpu.roll(a, shift=1, axis=1) * not_first       # a_r[:, l] = a[:, l-1]
            a_l = pltpu.roll(a, shift=TBL - 1, axis=1) * not_last  # a_l[:, l] = a[:, l+1]
            return a_r, a_l

        # ---- first layer (C_in = 1): VPU broadcast FMA + ReLU, f32 ----
        x = x_ref[0]                                              # (1, TBL)
        x_r, x_l = shifted(x)
        wf = wf_ref[...]                                          # (C, 3)
        h = (wf[:, 0:1] * x_r + wf[:, 1:2] * x + wf[:, 2:3] * x_l) * ratio
        h = jnp.maximum(h, 0.0)                                   # (C, TBL) f32

        # ---- hidden layers: 3 accumulating MXU dots (no RHS concatenate) ----
        def hidden_layer(i, h):
            h_r, h_l = shifted(h)
            acc = jnp.dot(wh0_ref[i], h_r.astype(mdt),
                          preferred_element_type=jnp.float32)
            acc = acc + jnp.dot(wh1_ref[i], h.astype(mdt),
                                preferred_element_type=jnp.float32)
            acc = acc + jnp.dot(wh2_ref[i], h_l.astype(mdt),
                                preferred_element_type=jnp.float32)
            return jnp.maximum(acc * ratio + shift_ref[i], 0.0)   # BN shift + ReLU (f32)

        if n_hidden <= _UNROLL_MAX_HIDDEN:
            for i in range(n_hidden):                             # static unroll
                h = hidden_layer(i, h)
        else:
            h = lax.fori_loop(0, n_hidden, hidden_layer, h)       # bounded live ranges

        # ---- last layer (C_out = 1): VPU multiply + sublane reduce, no ReLU ----
        h_r, h_l = shifted(h)
        wl = wl_ref[...]                                          # (C, 3)
        y = jnp.sum(wl[:, 0:1] * h_r + wl[:, 1:2] * h + wl[:, 2:3] * h_l,
                    axis=0, keepdims=True) * ratio                # (1, TBL)
        o_ref[0] = y.astype(o_ref.dtype)

    grid_spec = pltpu.PrefetchScalarGridSpec(
        num_scalar_prefetch=0,
        grid=(G,),
        in_specs=[
            pl.BlockSpec((1, 1, TBL), lambda g: (g, 0, 0)),        # packed x
            pl.BlockSpec((C, KERNEL_SIZE), lambda g: (0, 0)),      # first W
            pl.BlockSpec((n_hidden, C, C), lambda g: (0, 0, 0)),   # hidden tap 0
            pl.BlockSpec((n_hidden, C, C), lambda g: (0, 0, 0)),   # hidden tap 1
            pl.BlockSpec((n_hidden, C, C), lambda g: (0, 0, 0)),   # hidden tap 2
            pl.BlockSpec((n_hidden, C, 1), lambda g: (0, 0, 0)),   # BN shifts
            pl.BlockSpec((C, KERNEL_SIZE), lambda g: (0, 0)),      # last W
            pl.BlockSpec((3, TBL), lambda g: (0, 0)),              # ratio + edge masks
        ],
        out_specs=pl.BlockSpec((1, 1, TBL), lambda g: (g, 0, 0)),
    )
    # NOTE: constant-index blocks above are DMA'd once; pipeline_mode=pl.Buffered(1)
    # single-buffering is a further (v7x, deep-config) VMEM saving left as follow-up.

    w_item = jnp.dtype(mxu_dtype_name).itemsize
    flops = int(G * (4 * KERNEL_SIZE * C * TBL                       # first + last
                     + n_hidden * 2 * KERNEL_SIZE * C * C * TBL))    # hidden layers
    bytes_accessed = int(4 * (2 * G * TBL + n_hidden * C + 2 * C * KERNEL_SIZE + 3 * TBL)
                         + w_item * KERNEL_SIZE * n_hidden * C * C)

    return pl.pallas_call(
        kernel,
        out_shape=jax.ShapeDtypeStruct((G, 1, TBL), jnp.float32),
        grid_spec=grid_spec,
        compiler_params=pltpu.CompilerParams(
            dimension_semantics=("parallel",),
            # Working set is ~2 MiB at these shapes; 32 MiB is safe on every
            # generation. Re-derive (and L-tile) for long signals on v7x (64 MiB).
            vmem_limit_bytes=32 * 1024 * 1024,
        ),
        cost_estimate=pl.CostEstimate(flops=flops, transcendentals=0,
                                      bytes_accessed=bytes_accessed),
    )


def _mask_ratio(L):
    # update_mask = conv1d(ones, ones(3), pad=1): 2 at the two edges, 3 inside.
    um = jnp.full((L,), 3.0, jnp.float32).at[0].set(2.0).at[L - 1].set(2.0)
    return (3.0 / (um + 1e-8)) * jnp.clip(um, 0.0, 1.0)        # (L,)


def _choose_batch_tile(N, L):
    """Pack batch elements along lanes (amortize per-step overhead, fill the MXU)
    while keeping >= 2 'parallel' grid steps for v7x megacore when possible."""
    target = max(1, -(-512 // L))                              # aim for >= ~512 lanes
    divisors = [d for d in range(1, N + 1) if N % d == 0]
    cands = [d for d in divisors if d <= target] or [1]
    tb = max(cands)
    if N // tb < 2:
        two_step = [d for d in cands if N // d >= 2]
        if two_step:
            tb = max(two_step)
    return tb


def init_params(key, depth=6, n_channels=64, image_channels=1, use_bnorm=True):
    """Deterministic parameter init matching the module's shapes.

    Conv weights: orthogonal init (as in _initialize_weights), no bias.
    BatchNorm:    weight=1, bias=0, running_mean=0, running_var=1, eps=1e-4.
    """
    ks = KERNEL_SIZE
    keys = jax.random.split(key, depth)
    ortho = jax.nn.initializers.orthogonal()
    params = {
        'first_w': ortho(keys[0], (n_channels, image_channels * ks)
                         ).reshape(n_channels, image_channels, ks),
        'hidden': [],
        'last_w': ortho(keys[-1], (image_channels, n_channels * ks)
                        ).reshape(image_channels, n_channels, ks),
        'use_bnorm': use_bnorm,
    }
    for i in range(depth - 2):
        w = ortho(keys[1 + i], (n_channels, n_channels * ks)
                  ).reshape(n_channels, n_channels, ks)
        gamma = jnp.ones((n_channels,), jnp.float32)
        beta = jnp.zeros((n_channels,), jnp.float32)
        rmean = jnp.zeros((n_channels,), jnp.float32)
        rvar = jnp.ones((n_channels,), jnp.float32)
        params['hidden'].append((w, gamma, beta, rmean, rvar))
    return params


def dncnn_forward(params, x, *, mxu_dtype=jnp.bfloat16, batch_tile=None):
    """Full DnCNN forward through the single fused Pallas kernel.

    mxu_dtype: dtype of the hidden-layer MXU operands (bf16 fast path by default;
               jnp.float32 for bit-tight parity). Accumulation is always f32.
    """
    N, c_img, L = x.shape
    assert c_img == 1, "dncnn1d PartialConv path implemented for image_channels == 1"
    assert L >= 3, "mask-ratio construction assumes L >= 3"
    C = params['first_w'].shape[0]
    n_hidden = len(params['hidden'])
    assert n_hidden >= 1, "fused kernel expects depth >= 3"
    mxu_dtype = jnp.dtype(mxu_dtype)

    TB = _choose_batch_tile(N, L) if batch_tile is None else batch_tile
    assert N % TB == 0, "batch_tile must divide the batch"
    G = N // TB
    TBL = TB * L

    # Per-segment geometry: mask ratio + edge masks (so the circular roll never
    # leaks across packed batch elements).
    ratio = _mask_ratio(L)                                     # (L,)
    col = jnp.arange(TBL, dtype=jnp.int32)
    geom = jnp.stack([
        jnp.tile(ratio, TB),
        (col % L != 0).astype(jnp.float32),
        (col % L != L - 1).astype(jnp.float32),
    ], axis=0)                                                 # (3, TBL)

    wf = params['first_w'][:, 0, :].astype(jnp.float32)        # (C, 3)
    wl = params['last_w'][0].astype(jnp.float32)               # (C, 3)

    wh0s, wh1s, wh2s, shift_list = [], [], [], []
    for (w, gamma, beta, rmean, rvar) in params['hidden']:
        if params['use_bnorm']:
            scale = gamma / jnp.sqrt(rvar + _EPS_BN)
            shift = beta - rmean * scale
        else:
            scale = jnp.ones((C,), jnp.float32)
            shift = jnp.zeros((C,), jnp.float32)
        ws = w.astype(jnp.float32) * scale[:, None, None]      # fold BN scale into taps
        wh0s.append(ws[:, :, 0])                               # tap k multiplies h[l-1+k]
        wh1s.append(ws[:, :, 1])
        wh2s.append(ws[:, :, 2])
        shift_list.append(shift.reshape(C, 1))
    wh0 = jnp.stack(wh0s).astype(mxu_dtype)                    # (n_hidden, C, C)
    wh1 = jnp.stack(wh1s).astype(mxu_dtype)
    wh2 = jnp.stack(wh2s).astype(mxu_dtype)
    shifts = jnp.stack(shift_list).astype(jnp.float32)         # (n_hidden, C, 1)

    # (N,1,L) -> (G,1,TB*L) is a free contiguous reshape (lane-packing the batch).
    x_packed = x.astype(jnp.float32).reshape(G, 1, TBL)

    call = _make_fused_call(G, C, L, TB, n_hidden, mxu_dtype.name)
    out = call(x_packed, wf, wh0, wh1, wh2, shifts, wl, geom)  # (G, 1, TBL)
    return out.reshape(N, 1, L)


def dncnn_reference(params, x):
    """Pure-JAX reference (lax.conv, f32) mirroring the PyTorch forward."""
    L = x.shape[2]
    ratio = _mask_ratio(L).reshape(1, 1, L)

    def conv(a, w):
        return lax.conv_general_dilated(
            a, w, (1,), ((1, 1),), dimension_numbers=('NCH', 'OIH', 'NCH'),
            precision=lax.Precision.HIGHEST)

    out = jax.nn.relu(conv(x, params['first_w']) * ratio)
    for (w, gamma, beta, rmean, rvar) in params['hidden']:
        out = conv(out, w) * ratio
        if params['use_bnorm']:
            scale = (gamma / jnp.sqrt(rvar + _EPS_BN)).reshape(1, -1, 1)
            shift = (beta - rmean * gamma / jnp.sqrt(rvar + _EPS_BN)).reshape(1, -1, 1)
            out = out * scale + shift
        out = jax.nn.relu(out)
    return conv(out, params['last_w']) * ratio


if __name__ == "__main__":
    key = jax.random.PRNGKey(0)
    pkey, xkey, pkey2, xkey2 = jax.random.split(key, 4)

    # ---- Config A: depth=6, 64 hidden channels, batch packed 2-per-grid-step ----
    depth, n_channels, image_channels = 6, 64, 1
    N, L = 4, 128
    params = init_params(pkey, depth=depth, n_channels=n_channels,
                         image_channels=image_channels, use_bnorm=True)
    x = jax.random.normal(xkey, (N, image_channels, L), jnp.float32)
    ref = dncnn_reference(params, x)

    # f32 MXU path: strict structural / numerical parity with the reference.
    out_f32 = jax.block_until_ready(dncnn_forward(params, x, mxu_dtype=jnp.float32))
    assert out_f32.shape == (N, image_channels, L)
    np.testing.assert_allclose(np.asarray(out_f32), np.asarray(ref),
                               rtol=2e-3, atol=2e-3)

    # bf16 MXU fast path (default): within bf16-rounding budget of the f32 reference.
    out_bf16 = jax.block_until_ready(dncnn_forward(params, x))
    np.testing.assert_allclose(np.asarray(out_bf16), np.asarray(ref),
                               rtol=1e-2, atol=1e-2)

    # ---- Config B: deep network -> exercises the lax.fori_loop hidden-layer path ----
    depth_b, N_b = 12, 2
    params_b = init_params(pkey2, depth=depth_b, n_channels=n_channels,
                           image_channels=image_channels, use_bnorm=True)
    x_b = jax.random.normal(xkey2, (N_b, image_channels, L), jnp.float32)
    out_b = jax.block_until_ready(dncnn_forward(params_b, x_b, mxu_dtype=jnp.float32))
    np.testing.assert_allclose(np.asarray(out_b),
                               np.asarray(dncnn_reference(params_b, x_b)),
                               rtol=2e-3, atol=2e-3)

    print("KERNEL_OK")
</pallas_src>

<mosaic_0001>
module attributes {stable_mosaic.version = 11 : i64} {
  func.func @kernel(%arg0: i32, %arg1: memref<1x1x256xf32, #tpu.memory_space<vmem>>, %arg2: memref<64x3xf32, #tpu.memory_space<vmem>>, %arg3: memref<4x64x64xf32, #tpu.memory_space<vmem>>, %arg4: memref<4x64x64xf32, #tpu.memory_space<vmem>>, %arg5: memref<4x64x64xf32, #tpu.memory_space<vmem>>, %arg6: memref<4x64x1xf32, #tpu.memory_space<vmem>>, %arg7: memref<64x3xf32, #tpu.memory_space<vmem>>, %arg8: memref<3x256xf32, #tpu.memory_space<vmem>>, %arg9: memref<1x1x256xf32, #tpu.memory_space<vmem>>) attributes {dimension_semantics = [#tpu.dimension_semantics<parallel>], iteration_bounds = array<i64: 2>, scalar_prefetch = 0 : i64, scratch_operands = 0 : i64, tpu.core_type = #tpu.core_type<tc>, window_params = [{transform_indices = @transform_0, window_bounds = array<i64: 1, 1, 256>}, {pipeline_mode = #tpu.pipeline_mode<synchronous>, transform_indices = @transform_1, window_bounds = array<i64: 64, 3>}, {pipeline_mode = #tpu.pipeline_mode<synchronous>, transform_indices = @transform_2, window_bounds = array<i64: 4, 64, 64>}, {pipeline_mode = #tpu.pipeline_mode<synchronous>, transform_indices = @transform_3, window_bounds = array<i64: 4, 64, 64>}, {pipeline_mode = #tpu.pipeline_mode<synchronous>, transform_indices = @transform_4, window_bounds = array<i64: 4, 64, 64>}, {pipeline_mode = #tpu.pipeline_mode<synchronous>, transform_indices = @transform_5, window_bounds = array<i64: 4, 64, 1>}, {pipeline_mode = #tpu.pipeline_mode<synchronous>, transform_indices = @transform_6, window_bounds = array<i64: 64, 3>}, {pipeline_mode = #tpu.pipeline_mode<synchronous>, transform_indices = @transform_7, window_bounds = array<i64: 3, 256>}, {transform_indices = @transform_8, window_bounds = array<i64: 1, 1, 256>}]} {
    %c0 = arith.constant 0 : index
    %c0_0 = arith.constant 0 : index
    %0 = vector.load %arg8[%c0, %c0_0] : memref<3x256xf32, #tpu.memory_space<vmem>>, vector<1x256xf32>
    %c1 = arith.constant 1 : index
    %c0_1 = arith.constant 0 : index
    %1 = vector.load %arg8[%c1, %c0_1] : memref<3x256xf32, #tpu.memory_space<vmem>>, vector<1x256xf32>
    %c2 = arith.constant 2 : index
    %c0_2 = arith.constant 0 : index
    %2 = vector.load %arg8[%c2, %c0_2] : memref<3x256xf32, #tpu.memory_space<vmem>>, vector<1x256xf32>
    %c0_3 = arith.constant 0 : index
    %c0_4 = arith.constant 0 : index
    %c0_5 = arith.constant 0 : index
    %3 = vector.load %arg1[%c0_3, %c0_4, %c0_5] : memref<1x1x256xf32, #tpu.memory_space<vmem>>, vector<1x1x256xf32>
    %4 = vector.shape_cast %3 : vector<1x1x256xf32> to vector<1x256xf32>
    %c1_i32 = arith.constant 1 : i32
    %5 = tpu.dynamic_rotate %4 by %c1_i32 dim 1 : vector<1x256xf32>, i32 -> vector<1x256xf32>
    %6 = arith.mulf %5, %1 : vector<1x256xf32>
    %c255_i32 = arith.constant 255 : i32
    %7 = tpu.dynamic_rotate %4 by %c255_i32 dim 1 : vector<1x256xf32>, i32 -> vector<1x256xf32>
    %8 = arith.mulf %7, %2 : vector<1x256xf32>
    %c0_6 = arith.constant 0 : index
    %c0_7 = arith.constant 0 : index
    %9 = vector.load %arg2[%c0_6, %c0_7] : memref<64x3xf32, #tpu.memory_space<vmem>>, vector<64x3xf32>
    %10 = vector.extract_strided_slice %9 {offsets = [0, 0], sizes = [64, 1], strides = [1, 1]} : vector<64x3xf32> to vector<64x1xf32>
    %11 = vector.broadcast %10 : vector<64x1xf32> to vector<64x256xf32>
    %12 = vector.broadcast %6 : vector<1x256xf32> to vector<64x256xf32>
    %13 = arith.mulf %11, %12 : vector<64x256xf32>
    %14 = vector.extract_strided_slice %9 {offsets = [0, 1], sizes = [64, 1], strides = [1, 1]} : vector<64x3xf32> to vector<64x1xf32>
    %15 = vector.broadcast %14 : vector<64x1xf32> to vector<64x256xf32>
    %16 = vector.broadcast %4 : vector<1x256xf32> to vector<64x256xf32>
    %17 = arith.mulf %15, %16 : vector<64x256xf32>
    %18 = arith.addf %13, %17 : vector<64x256xf32>
    %19 = vector.extract_strided_slice %9 {offsets = [0, 2], sizes = [64, 1], strides = [1, 1]} : vector<64x3xf32> to vector<64x1xf32>
    %20 = vector.broadcast %19 : vector<64x1xf32> to vector<64x256xf32>
    %21 = vector.broadcast %8 : vector<1x256xf32> to vector<64x256xf32>
    %22 = arith.mulf %20, %21 : vector<64x256xf32>
    %23 = arith.addf %18, %22 : vector<64x256xf32>
    %24 = vector.broadcast %0 : vector<1x256xf32> to vector<64x256xf32>
    %25 = arith.mulf %23, %24 : vector<64x256xf32>
    %cst = arith.constant 0.000000e+00 : f32
    %26 = vector.broadcast %cst : f32 to vector<64x256xf32>
    %27 = arith.maximumf %25, %26 : vector<64x256xf32>
    %c1_i32_8 = arith.constant 1 : i32
    %28 = tpu.dynamic_rotate %27 by %c1_i32_8 dim 1 : vector<64x256xf32>, i32 -> vector<64x256xf32>
    %29 = vector.broadcast %1 : vector<1x256xf32> to vector<64x256xf32>
    %30 = arith.mulf %28, %29 : vector<64x256xf32>
    %c255_i32_9 = arith.constant 255 : i32
    %31 = tpu.dynamic_rotate %27 by %c255_i32_9 dim 1 : vector<64x256xf32>, i32 -> vector<64x256xf32>
    %32 = vector.broadcast %2 : vector<1x256xf32> to vector<64x256xf32>
    %33 = arith.mulf %31, %32 : vector<64x256xf32>
    %c0_10 = arith.constant 0 : index
    %c0_11 = arith.constant 0 : index
    %c0_12 = arith.constant 0 : index
    %34 = vector.load %arg3[%c0_10, %c0_11, %c0_12] : memref<4x64x64xf32, #tpu.memory_space<vmem>>, vector<1x64x64xf32>
    %35 = vector.shape_cast %34 : vector<1x64x64xf32> to vector<64x64xf32>
    %cst_13 = arith.constant dense<0.000000e+00> : vector<64x256xf32>
    %36 = tpu.matmul %35, %30, %cst_13 {dimension_numbers = #tpu.dot_dimension_numbers<[1], [0], [0], [1], [0, 0, 1, 1], [], []>} : vector<64x64xf32>, vector<64x256xf32>, vector<64x256xf32> -> vector<64x256xf32>
    %c0_14 = arith.constant 0 : index
    %c0_15 = arith.constant 0 : index
    %c0_16 = arith.constant 0 : index
    %37 = vector.load %arg4[%c0_14, %c0_15, %c0_16] : memref<4x64x64xf32, #tpu.memory_space<vmem>>, vector<1x64x64xf32>
    %38 = vector.shape_cast %37 : vector<1x64x64xf32> to vector<64x64xf32>
    %cst_17 = arith.constant dense<0.000000e+00> : vector<64x256xf32>
    %39 = tpu.matmul %38, %27, %cst_17 {dimension_numbers = #tpu.dot_dimension_numbers<[1], [0], [0], [1], [0, 0, 1, 1], [], []>} : vector<64x64xf32>, vector<64x256xf32>, vector<64x256xf32> -> vector<64x256xf32>
    %40 = arith.addf %36, %39 : vector<64x256xf32>
    %c0_18 = arith.constant 0 : index
    %c0_19 = arith.constant 0 : index
    %c0_20 = arith.constant 0 : index
    %41 = vector.load %arg5[%c0_18, %c0_19, %c0_20] : memref<4x64x64xf32, #tpu.memory_space<vmem>>, vector<1x64x64xf32>
    %42 = vector.shape_cast %41 : vector<1x64x64xf32> to vector<64x64xf32>
    %cst_21 = arith.constant dense<0.000000e+00> : vector<64x256xf32>
    %43 = tpu.matmul %42, %33, %cst_21 {dimension_numbers = #tpu.dot_dimension_numbers<[1], [0], [0], [1], [0, 0, 1, 1], [], []>} : vector<64x64xf32>, vector<64x256xf32>, vector<64x256xf32> -> vector<64x256xf32>
    %44 = arith.addf %40, %43 : vector<64x256xf32>
    %45 = vector.broadcast %0 : vector<1x256xf32> to vector<64x256xf32>
    %46 = arith.mulf %44, %45 : vector<64x256xf32>
    %c0_22 = arith.constant 0 : index
    %c0_23 = arith.constant 0 : index
    %c0_24 = arith.constant 0 : index
    %47 = vector.load %arg6[%c0_22, %c0_23, %c0_24] : memref<4x64x1xf32, #tpu.memory_space<vmem>>, vector<1x64x1xf32>
    %48 = vector.shape_cast %47 : vector<1x64x1xf32> to vector<64x1xf32>
    %49 = vector.broadcast %48 : vector<64x1xf32> to vector<64x256xf32>
    %50 = arith.addf %46, %49 : vector<64x256xf32>
    %cst_25 = arith.constant 0.000000e+00 : f32
    %51 = vector.broadcast %cst_25 : f32 to vector<64x256xf32>
    %52 = arith.maximumf %50, %51 : vector<64x256xf32>
    %c1_i32_26 = arith.constant 1 : i32
    %53 = tpu.dynamic_rotate %52 by %c1_i32_26 dim 1 : vector<64x256xf32>, i32 -> vector<64x256xf32>
    %54 = vector.broadcast %1 : vector<1x256xf32> to vector<64x256xf32>
    %55 = arith.mulf %53, %54 : vector<64x256xf32>
    %c255_i32_27 = arith.constant 255 : i32
    %56 = tpu.dynamic_rotate %52 by %c255_i32_27 dim 1 : vector<64x256xf32>, i32 -> vector<64x256xf32>
    %57 = vector.broadcast %2 : vector<1x256xf32> to vector<64x256xf32>
    %58 = arith.mulf %56, %57 : vector<64x256xf32>
    %c1_28 = arith.constant 1 : index
    %c0_29 = arith.constant 0 : index
    %c0_30 = arith.constant 0 : index
    %59 = vector.load %arg3[%c1_28, %c0_29, %c0_30] : memref<4x64x64xf32, #tpu.memory_space<vmem>>, vector<1x64x64xf32>
    %60 = vector.shape_cast %59 : vector<1x64x64xf32> to vector<64x64xf32>
    %cst_31 = arith.constant dense<0.000000e+00> : vector<64x256xf32>
    %61 = tpu.matmul %60, %55, %cst_31 {dimension_numbers = #tpu.dot_dimension_numbers<[1], [0], [0], [1], [0, 0, 1, 1], [], []>} : vector<64x64xf32>, vector<64x256xf32>, vector<64x256xf32> -> vector<64x256xf32>
    %c1_32 = arith.constant 1 : index
    %c0_33 = arith.constant 0 : index
    %c0_34 = arith.constant 0 : index
    %62 = vector.load %arg4[%c1_32, %c0_33, %c0_34] : memref<4x64x64xf32, #tpu.memory_space<vmem>>, vector<1x64x64xf32>
    %63 = vector.shape_cast %62 : vector<1x64x64xf32> to vector<64x64xf32>
    %cst_35 = arith.constant dense<0.000000e+00> : vector<64x256xf32>
    %64 = tpu.matmul %63, %52, %cst_35 {dimension_numbers = #tpu.dot_dimension_numbers<[1], [0], [0], [1], [0, 0, 1, 1], [], []>} : vector<64x64xf32>, vector<64x256xf32>, vector<64x256xf32> -> vector<64x256xf32>
    %65 = arith.addf %61, %64 : vector<64x256xf32>
    %c1_36 = arith.constant 1 : index
    %c0_37 = arith.constant 0 : index
    %c0_38 = arith.constant 0 : index
    %66 = vector.load %arg5[%c1_36, %c0_37, %c0_38] : memref<4x64x64xf32, #tpu.memory_space<vmem>>, vector<1x64x64xf32>
    %67 = vector.shape_cast %66 : vector<1x64x64xf32> to vector<64x64xf32>
    %cst_39 = arith.constant dense<0.000000e+00> : vector<64x256xf32>
    %68 = tpu.matmul %67, %58, %cst_39 {dimension_numbers = #tpu.dot_dimension_numbers<[1], [0], [0], [1], [0, 0, 1, 1], [], []>} : vector<64x64xf32>, vector<64x256xf32>, vector<64x256xf32> -> vector<64x256xf32>
    %69 = arith.addf %65, %68 : vector<64x256xf32>
    %70 = vector.broadcast %0 : vector<1x256xf32> to vector<64x256xf32>
    %71 = arith.mulf %69, %70 : vector<64x256xf32>
    %c1_40 = arith.constant 1 : index
    %c0_41 = arith.constant 0 : index
    %c0_42 = arith.constant 0 : index
    %72 = vector.load %arg6[%c1_40, %c0_41, %c0_42] : memref<4x64x1xf32, #tpu.memory_space<vmem>>, vector<1x64x1xf32>
    %73 = vector.shape_cast %72 : vector<1x64x1xf32> to vector<64x1xf32>
    %74 = vector.broadcast %73 : vector<64x1xf32> to vector<64x256xf32>
    %75 = arith.addf %71, %74 : vector<64x256xf32>
    %cst_43 = arith.constant 0.000000e+00 : f32
    %76 = vector.broadcast %cst_43 : f32 to vector<64x256xf32>
    %77 = arith.maximumf %75, %76 : vector<64x256xf32>
    %c1_i32_44 = arith.constant 1 : i32
    %78 = tpu.dynamic_rotate %77 by %c1_i32_44 dim 1 : vector<64x256xf32>, i32 -> vector<64x256xf32>
    %79 = vector.broadcast %1 : vector<1x256xf32> to vector<64x256xf32>
    %80 = arith.mulf %78, %79 : vector<64x256xf32>
    %c255_i32_45 = arith.constant 255 : i32
    %81 = tpu.dynamic_rotate %77 by %c255_i32_45 dim 1 : vector<64x256xf32>, i32 -> vector<64x256xf32>
    %82 = vector.broadcast %2 : vector<1x256xf32> to vector<64x256xf32>
    %83 = arith.mulf %81, %82 : vector<64x256xf32>
    %c2_46 = arith.constant 2 : index
    %c0_47 = arith.constant 0 : index
    %c0_48 = arith.constant 0 : index
    %84 = vector.load %arg3[%c2_46, %c0_47, %c0_48] : memref<4x64x64xf32, #tpu.memory_space<vmem>>, vector<1x64x64xf32>
    %85 = vector.shape_cast %84 : vector<1x64x64xf32> to vector<64x64xf32>
    %cst_49 = arith.constant dense<0.000000e+00> : vector<64x256xf32>
    %86 = tpu.matmul %85, %80, %cst_49 {dimension_numbers = #tpu.dot_dimension_numbers<[1], [0], [0], [1], [0, 0, 1, 1], [], []>} : vector<64x64xf32>, vector<64x256xf32>, vector<64x256xf32> -> vector<64x256xf32>
    %c2_50 = arith.constant 2 : index
    %c0_51 = arith.constant 0 : index
    %c0_52 = arith.constant 0 : index
    %87 = vector.load %arg4[%c2_50, %c0_51, %c0_52] : memref<4x64x64xf32, #tpu.memory_space<vmem>>, vector<1x64x64xf32>
    %88 = vector.shape_cast %87 : vector<1x64x64xf32> to vector<64x64xf32>
    %cst_53 = arith.constant dense<0.000000e+00> : vector<64x256xf32>
    %89 = tpu.matmul %88, %77, %cst_53 {dimension_numbers = #tpu.dot_dimension_numbers<[1], [0], [0], [1], [0, 0, 1, 1], [], []>} : vector<64x64xf32>, vector<64x256xf32>, vector<64x256xf32> -> vector<64x256xf32>
    %90 = arith.addf %86, %89 : vector<64x256xf32>
    %c2_54 = arith.constant 2 : index
    %c0_55 = arith.constant 0 : index
    %c0_56 = arith.constant 0 : index
    %91 = vector.load %arg5[%c2_54, %c0_55, %c0_56] : memref<4x64x64xf32, #tpu.memory_space<vmem>>, vector<1x64x64xf32>
    %92 = vector.shape_cast %91 : vector<1x64x64xf32> to vector<64x64xf32>
    %cst_57 = arith.constant dense<0.000000e+00> : vector<64x256xf32>
    %93 = tpu.matmul %92, %83, %cst_57 {dimension_numbers = #tpu.dot_dimension_numbers<[1], [0], [0], [1], [0, 0, 1, 1], [], []>} : vector<64x64xf32>, vector<64x256xf32>, vector<64x256xf32> -> vector<64x256xf32>
    %94 = arith.addf %90, %93 : vector<64x256xf32>
    %95 = vector.broadcast %0 : vector<1x256xf32> to vector<64x256xf32>
    %96 = arith.mulf %94, %95 : vector<64x256xf32>
    %c2_58 = arith.constant 2 : index
    %c0_59 = arith.constant 0 : index
    %c0_60 = arith.constant 0 : index
    %97 = vector.load %arg6[%c2_58, %c0_59, %c0_60] : memref<4x64x1xf32, #tpu.memory_space<vmem>>, vector<1x64x1xf32>
    %98 = vector.shape_cast %97 : vector<1x64x1xf32> to vector<64x1xf32>
    %99 = vector.broadcast %98 : vector<64x1xf32> to vector<64x256xf32>
    %100 = arith.addf %96, %99 : vector<64x256xf32>
    %cst_61 = arith.constant 0.000000e+00 : f32
    %101 = vector.broadcast %cst_61 : f32 to vector<64x256xf32>
    %102 = arith.maximumf %100, %101 : vector<64x256xf32>
    %c1_i32_62 = arith.constant 1 : i32
    %103 = tpu.dynamic_rotate %102 by %c1_i32_62 dim 1 : vector<64x256xf32>, i32 -> vector<64x256xf32>
    %104 = vector.broadcast %1 : vector<1x256xf32> to vector<64x256xf32>
    %105 = arith.mulf %103, %104 : vector<64x256xf32>
    %c255_i32_63 = arith.constant 255 : i32
    %106 = tpu.dynamic_rotate %102 by %c255_i32_63 dim 1 : vector<64x256xf32>, i32 -> vector<64x256xf32>
    %107 = vector.broadcast %2 : vector<1x256xf32> to vector<64x256xf32>
    %108 = arith.mulf %106, %107 : vector<64x256xf32>
    %c3 = arith.constant 3 : index
    %c0_64 = arith.constant 0 : index
    %c0_65 = arith.constant 0 : index
    %109 = vector.load %arg3[%c3, %c0_64, %c0_65] : memref<4x64x64xf32, #tpu.memory_space<vmem>>, vector<1x64x64xf32>
    %110 = vector.shape_cast %109 : vector<1x64x64xf32> to vector<64x64xf32>
    %cst_66 = arith.constant dense<0.000000e+00> : vector<64x256xf32>
    %111 = tpu.matmul %110, %105, %cst_66 {dimension_numbers = #tpu.dot_dimension_numbers<[1], [0], [0], [1], [0, 0, 1, 1], [], []>} : vector<64x64xf32>, vector<64x256xf32>, vector<64x256xf32> -> vector<64x256xf32>
    %c3_67 = arith.constant 3 : index
    %c0_68 = arith.constant 0 : index
    %c0_69 = arith.constant 0 : index
    %112 = vector.load %arg4[%c3_67, %c0_68, %c0_69] : memref<4x64x64xf32, #tpu.memory_space<vmem>>, vector<1x64x64xf32>
    %113 = vector.shape_cast %112 : vector<1x64x64xf32> to vector<64x64xf32>
    %cst_70 = arith.constant dense<0.000000e+00> : vector<64x256xf32>
    %114 = tpu.matmul %113, %102, %cst_70 {dimension_numbers = #tpu.dot_dimension_numbers<[1], [0], [0], [1], [0, 0, 1, 1], [], []>} : vector<64x64xf32>, vector<64x256xf32>, vector<64x256xf32> -> vector<64x256xf32>
    %115 = arith.addf %111, %114 : vector<64x256xf32>
    %c3_71 = arith.constant 3 : index
    %c0_72 = arith.constant 0 : index
    %c0_73 = arith.constant 0 : index
    %116 = vector.load %arg5[%c3_71, %c0_72, %c0_73] : memref<4x64x64xf32, #tpu.memory_space<vmem>>, vector<1x64x64xf32>
    %117 = vector.shape_cast %116 : vector<1x64x64xf32> to vector<64x64xf32>
    %cst_74 = arith.constant dense<0.000000e+00> : vector<64x256xf32>
    %118 = tpu.matmul %117, %108, %cst_74 {dimension_numbers = #tpu.dot_dimension_numbers<[1], [0], [0], [1], [0, 0, 1, 1], [], []>} : vector<64x64xf32>, vector<64x256xf32>, vector<64x256xf32> -> vector<64x256xf32>
    %119 = arith.addf %115, %118 : vector<64x256xf32>
    %120 = vector.broadcast %0 : vector<1x256xf32> to vector<64x256xf32>
    %121 = arith.mulf %119, %120 : vector<64x256xf32>
    %c3_75 = arith.constant 3 : index
    %c0_76 = arith.constant 0 : index
    %c0_77 = arith.constant 0 : index
    %122 = vector.load %arg6[%c3_75, %c0_76, %c0_77] : memref<4x64x1xf32, #tpu.memory_space<vmem>>, vector<1x64x1xf32>
    %123 = vector.shape_cast %122 : vector<1x64x1xf32> to vector<64x1xf32>
    %124 = vector.broadcast %123 : vector<64x1xf32> to vector<64x256xf32>
    %125 = arith.addf %121, %124 : vector<64x256xf32>
    %cst_78 = arith.constant 0.000000e+00 : f32
    %126 = vector.broadcast %cst_78 : f32 to vector<64x256xf32>
    %127 = arith.maximumf %125, %126 : vector<64x256xf32>
    %c1_i32_79 = arith.constant 1 : i32
    %128 = tpu.dynamic_rotate %127 by %c1_i32_79 dim 1 : vector<64x256xf32>, i32 -> vector<64x256xf32>
    %129 = vector.broadcast %1 : vector<1x256xf32> to vector<64x256xf32>
    %130 = arith.mulf %128, %129 : vector<64x256xf32>
    %c255_i32_80 = arith.constant 255 : i32
    %131 = tpu.dynamic_rotate %127 by %c255_i32_80 dim 1 : vector<64x256xf32>, i32 -> vector<64x256xf32>
    %132 = vector.broadcast %2 : vector<1x256xf32> to vector<64x256xf32>
    %133 = arith.mulf %131, %132 : vector<64x256xf32>
    %c0_81 = arith.constant 0 : index
    %c0_82 = arith.constant 0 : index
    %134 = vector.load %arg7[%c0_81, %c0_82] : memref<64x3xf32, #tpu.memory_space<vmem>>, vector<64x3xf32>
    %135 = vector.extract_strided_slice %134 {offsets = [0, 0], sizes = [64, 1], strides = [1, 1]} : vector<64x3xf32> to vector<64x1xf32>
    %136 = vector.broadcast %135 : vector<64x1xf32> to vector<64x256xf32>
    %137 = arith.mulf %136, %130 : vector<64x256xf32>
    %138 = vector.extract_strided_slice %134 {offsets = [0, 1], sizes = [64, 1], strides = [1, 1]} : vector<64x3xf32> to vector<64x1xf32>
    %139 = vector.broadcast %138 : vector<64x1xf32> to vector<64x256xf32>
    %140 = arith.mulf %139, %127 : vector<64x256xf32>
    %141 = arith.addf %137, %140 : vector<64x256xf32>
    %142 = vector.extract_strided_slice %134 {offsets = [0, 2], sizes = [64, 1], strides = [1, 1]} : vector<64x3xf32> to vector<64x1xf32>
    %143 = vector.broadcast %142 : vector<64x1xf32> to vector<64x256xf32>
    %144 = arith.mulf %143, %133 : vector<64x256xf32>
    %145 = arith.addf %141, %144 : vector<64x256xf32>
    %cst_83 = arith.constant dense<0.000000e+00> : vector<256xf32>
    %146 = vector.multi_reduction <add>, %145, %cst_83 [0] : vector<64x256xf32> to vector<256xf32>
    %147 = vector.shape_cast %146 : vector<256xf32> to vector<1x256xf32>
    %148 = arith.mulf %147, %0 : vector<1x256xf32>
    %c0_84 = arith.constant 0 : index
    %c0_85 = arith.constant 0 : index
    %c0_86 = arith.constant 0 : index
    %149 = vector.load %arg9[%c0_84, %c0_85, %c0_86] : memref<1x1x256xf32, #tpu.memory_space<vmem>>, vector<1x1x256xf32>
    %150 = vector.shape_cast %149 : vector<1x1x256xf32> to vector<1x256xf32>
    %151 = vector.shape_cast %148 : vector<1x256xf32> to vector<1x1x256xf32>
    tpu.vector_store %arg9[%c0_84, %c0_85, %c0_86], %151 {strides = array<i32>} : memref<1x1x256xf32, #tpu.memory_space<vmem>>, vector<1x1x256xf32>,
    return
  }
  func.func @transform_0(%arg0: i32) -> (i32, i32, i32) {
    %c0_i32 = arith.constant 0 : i32
    %c0_i32_0 = arith.constant 0 : i32
    %c0_i32_1 = arith.constant 0 : i32
    return %arg0, %c0_i32, %c0_i32_0 : i32, i32, i32
  }
  func.func @transform_1(%arg0: i32) -> (i32, i32) {
    %c0_i32 = arith.constant 0 : i32
    %c0_i32_0 = arith.constant 0 : i32
    %c0_i32_1 = arith.constant 0 : i32
    return %c0_i32, %c0_i32_0 : i32, i32
  }
  func.func @transform_2(%arg0: i32) -> (i32, i32, i32) {
    %c0_i32 = arith.constant 0 : i32
    %c0_i32_0 = arith.constant 0 : i32
    %c0_i32_1 = arith.constant 0 : i32
    %c0_i32_2 = arith.constant 0 : i32
    return %c0_i32, %c0_i32_0, %c0_i32_1 : i32, i32, i32
  }
  func.func @transform_3(%arg0: i32) -> (i32, i32, i32) {
    %c0_i32 = arith.constant 0 : i32
    %c0_i32_0 = arith.constant 0 : i32
    %c0_i32_1 = arith.constant 0 : i32
    %c0_i32_2 = arith.constant 0 : i32
    return %c0_i32, %c0_i32_0, %c0_i32_1 : i32, i32, i32
  }
  func.func @transform_4(%arg0: i32) -> (i32, i32, i32) {
    %c0_i32 = arith.constant 0 : i32
    %c0_i32_0 = arith.constant 0 : i32
    %c0_i32_1 = arith.constant 0 : i32
    %c0_i32_2 = arith.constant 0 : i32
    return %c0_i32, %c0_i32_0, %c0_i32_1 : i32, i32, i32
  }
  func.func @transform_5(%arg0: i32) -> (i32, i32, i32) {
    %c0_i32 = arith.constant 0 : i32
    %c0_i32_0 = arith.constant 0 : i32
    %c0_i32_1 = arith.constant 0 : i32
    %c0_i32_2 = arith.constant 0 : i32
    return %c0_i32, %c0_i32_0, %c0_i32_1 : i32, i32, i32
  }
  func.func @transform_6(%arg0: i32) -> (i32, i32) {
    %c0_i32 = arith.constant 0 : i32
    %c0_i32_0 = arith.constant 0 : i32
    %c0_i32_1 = arith.constant 0 : i32
    return %c0_i32, %c0_i32_0 : i32, i32
  }
  func.func @transform_7(%arg0: i32) -> (i32, i32) {
    %c0_i32 = arith.constant 0 : i32
    %c0_i32_0 = arith.constant 0 : i32
    %c0_i32_1 = arith.constant 0 : i32
    return %c0_i32, %c0_i32_0 : i32, i32
  }
  func.func @transform_8(%arg0: i32) -> (i32, i32, i32) {
    %c0_i32 = arith.constant 0 : i32
    %c0_i32_0 = arith.constant 0 : i32
    %c0_i32_1 = arith.constant 0 : i32
    return %arg0, %c0_i32, %c0_i32_0 : i32, i32, i32
  }
}

</mosaic_0001>

<llo_original>
// kernel: tpu_custom_call.1
$region0: #{tpu_custom_call.1}
  #allocation0 [shape = 'u32[]', space=smem, size = 0x4, offset = 0x4, fixed_abs, tag = 'smem constant byte address 0x4 - core index']
  #allocation1 [shape = 'u32[72,128]{1,0:T(1,128)}', space=vmem, size = 0x9000, scoped, tag = 'internal scratch']
  %s0 = inlined_call_operand.vmem [shape: f32[2,1,256], index: 0, kind: input, shape index: {}]
  %s1 = inlined_call_operand.vmem [shape: f32[64,3], index: 1, kind: input, shape index: {}]
  %s2 = inlined_call_operand.vmem [shape: f32[4,64,64], index: 2, kind: input, shape index: {}]
  %s3 = inlined_call_operand.hbm [shape: f32[4,64,64], index: 3, kind: input, shape index: {}]
  %s4 = inlined_call_operand.hbm [shape: f32[4,64,64], index: 4, kind: input, shape index: {}]
  %s5 = inlined_call_operand.vmem [shape: f32[4,64,1], index: 5, kind: input, shape index: {}]
  %s6 = inlined_call_operand.vmem [shape: f32[64,3], index: 6, kind: input, shape index: {}]
  %s7 = inlined_call_operand.vmem [shape: f32[3,256], index: 7, kind: input, shape index: {}]
  %s8 = inlined_call_operand.hbm [shape: f32[2,1,256], index: 8, kind: output, shape index: {}]
  %s9 = sld [smem:[#allocation0]]
  $region73: #{tpu_custom_call.1} parent=0
    _
  %s11 = ssub.s32 1, %s9
  %s12 = scalar_select 0, %s11, %s9
  $region1: #{tpu_custom_call.1} parent=0
    #allocation2 [shape = 'u8[131072]{0}', space=vmem, size = 0x20000, scoped, tag = 'input window, operand 3, single buffered']
    #allocation3 [shape = 's32[2]{0}', space=sflag, size = 0x8, scoped, tag = 'scoped memory for tpu_custom_call.1']
    #allocation4 [shape = 's32[2]{0}', space=sflag, size = 0x8, scoped, tag = 'scoped memory for tpu_custom_call.1']
    #allocation5 [shape = 'u8[131072]{0}', space=vmem, size = 0x20000, scoped, tag = 'input window, operand 4, single buffered']
    #allocation6 [shape = 's32[1]{0}', space=sflag, size = 0x4, scoped, tag = 'scoped memory for tpu_custom_call.1']
    #allocation7 [shape = 'u8[2048]{0}', space=vmem, size = 0x800, scoped, tag = 'output window, operand 0']
    %13 = vsyncpa [#allocation3], 0
    %14 = vsyncpa [#allocation6], 0
    %15 = vsyncpa [#allocation4], 0
    %s16 = scalar_lea.sflag [#allocation4], 1
    %17 = vsyncpa %s16, 0
    loop: start=0, step=1, limit=4
    $region2: #{tpu_custom_call.1} parent=1 // loop_pre_header
      _
    $region3: #{tpu_custom_call.1} parent=1 // loop_header
      %s19 = sphi 0, %s23
      %p20 = scmp.ge.s32.totalorder %s19, 4
      %s29 = sphi 0, %s31
      %s32 = sphi 0, %s29
      %s33 = sphi 0, %s32
      %s49 = sphi 0, %s33
      %s53 = sphi 0, %s53
      %s55 = sphi 0, %s53
      %s56 = sphi 0, %s55
      %s70 = sphi 0, %s56
      %s74 = sphi 0, %s74
      %s76 = sphi 0, %s74
      %s77 = sphi 0, %s76
      %s91 = sphi 0, %s77
      %s95 = sphi 0, %s95
      %s97 = sphi 0, %s95
      %s98 = sphi 0, %s97
      %s112 = sphi 0, %s98
      %s116 = sphi 0, %s116
      %s118 = sphi 0, %s116
      %s119 = sphi 0, %s118
      %s133 = sphi 0, %s119
      %s137 = sphi 0, %s137
      %s139 = sphi 0, %s137
      %s140 = sphi 0, %s139
      %s154 = sphi 0, %s140
      %s158 = sphi 0, %s158
      %s160 = sphi 0, %s158
      %s161 = sphi 0, %s160
      %s175 = sphi 0, %s161
      %s179 = sphi 0, %s179
      %s181 = sphi 0, %s179
      %s182 = sphi 0, %s181
      %s196 = sphi 0, %s182
      %s202 = sphi 0, %s204
      %s205 = sphi 0, %s202
      %s206 = sphi 0, %s205
      %s222 = sphi 0, %s206
    $region4: #{tpu_custom_call.1} parent=1 // loop_header_branch
      %22 = sbr.rel (%p20) target = $region8
    $region5: #{tpu_custom_call.1} parent=1 // loop_body
      %s24 = ssub.s32 %s19, 1
      %s25 = ssub.s32 %s19, 2
      %s26 = sadd.s32 %s19, 1
      %s27 = ssub.s32 %s19, %s26
      %p28 = scmp.eq.s32.totalorder %s27, 0
      %s30 = sadd.s32 %s29, 1
      %s31 = scalar_select %p28, %s29, %s30
      %p34 = pneg %p28
      %p35 = scmp.eq.s32.totalorder %s19, 1
      %p36 = por %p34, %p35
      %p37 = scmp.ne.s32.totalorder %s29, %s32
      %p38 = scmp.eq.s32.totalorder %s19, 0
      %p39 = por %p37, %p38
      %p40 = scmp.ne.s32.totalorder %s29, %s32
      %p41 = scmp.eq.s32.totalorder %s24, 1
      %p42 = por %p40, %p41
      %p43 = scmp.ne.s32.totalorder %s32, %s33
      %p44 = scmp.eq.s32.totalorder %s24, 0
      %p45 = por %p43, %p44
      %p46 = scmp.ne.s32.totalorder %s32, %s33
      %p47 = scmp.eq.s32.totalorder %s25, 1
      %p48 = por %p46, %p47
      %p50 = scmp.ne.s32.totalorder %s33, %s49
      %p51 = scmp.eq.s32.totalorder %s25, 0
      %p52 = por %p50, %p51
      %s54 = sadd.s32 %s53, 1
      %p57 = scmp.eq.s32.totalorder %s19, 1
      %p58 = scmp.ne.s32.totalorder %s53, %s55
      %p59 = scmp.eq.s32.totalorder %s19, 0
      %p60 = por %p58, %p59
      %p61 = scmp.ne.s32.totalorder %s53, %s55
      %p62 = scmp.eq.s32.totalorder %s24, 1
      %p63 = por %p61, %p62
      %p64 = scmp.ne.s32.totalorder %s55, %s56
      %p65 = scmp.eq.s32.totalorder %s24, 0
      %p66 = por %p64, %p65
      %p67 = scmp.ne.s32.totalorder %s55, %s56
      %p68 = scmp.eq.s32.totalorder %s25, 1
      %p69 = por %p67, %p68
      %p71 = scmp.ne.s32.totalorder %s56, %s70
      %p72 = scmp.eq.s32.totalorder %s25, 0
      %p73 = por %p71, %p72
      %s75 = sadd.s32 %s74, 1
      %p78 = scmp.eq.s32.totalorder %s19, 1
      %p79 = scmp.ne.s32.totalorder %s74, %s76
      %p80 = scmp.eq.s32.totalorder %s19, 0
      %p81 = por %p79, %p80
      %p82 = scmp.ne.s32.totalorder %s74, %s76
      %p83 = scmp.eq.s32.totalorder %s24, 1
      %p84 = por %p82, %p83
      %p85 = scmp.ne.s32.totalorder %s76, %s77
      %p86 = scmp.eq.s32.totalorder %s24, 0
      %p87 = por %p85, %p86
      %p88 = scmp.ne.s32.totalorder %s76, %s77
      %p89 = scmp.eq.s32.totalorder %s25, 1
      %p90 = por %p88, %p89
      %p92 = scmp.ne.s32.totalorder %s77, %s91
      %p93 = scmp.eq.s32.totalorder %s25, 0
      %p94 = por %p92, %p93
      %s96 = sadd.s32 %s95, 1
      %p99 = scmp.eq.s32.totalorder %s19, 1
      %p100 = scmp.ne.s32.totalorder %s95, %s97
      %p101 = scmp.eq.s32.totalorder %s19, 0
      %p102 = por %p100, %p101
      %p103 = scmp.ne.s32.totalorder %s95, %s97
      %p104 = scmp.eq.s32.totalorder %s24, 1
      %p105 = por %p103, %p104
      %p106 = scmp.ne.s32.totalorder %s97, %s98
      %p107 = scmp.eq.s32.totalorder %s24, 0
      %p108 = por %p106, %p107
      %p109 = scmp.ne.s32.totalorder %s97, %s98
      %p110 = scmp.eq.s32.totalorder %s25, 1
      %p111 = por %p109, %p110
      %p113 = scmp.ne.s32.totalorder %s98, %s112
      %p114 = scmp.eq.s32.totalorder %s25, 0
      %p115 = por %p113, %p114
      %s117 = sadd.s32 %s116, 1
      %p120 = scmp.eq.s32.totalorder %s19, 1
      %p121 = scmp.ne.s32.totalorder %s116, %s118
      %p122 = scmp.eq.s32.totalorder %s19, 0
      %p123 = por %p121, %p122
      %p124 = scmp.ne.s32.totalorder %s116, %s118
      %p125 = scmp.eq.s32.totalorder %s24, 1
      %p126 = por %p124, %p125
      %p127 = scmp.ne.s32.totalorder %s118, %s119
      %p128 = scmp.eq.s32.totalorder %s24, 0
      %p129 = por %p127, %p128
      %p130 = scmp.ne.s32.totalorder %s118, %s119
      %p131 = scmp.eq.s32.totalorder %s25, 1
      %p132 = por %p130, %p131
      %p134 = scmp.ne.s32.totalorder %s119, %s133
      %p135 = scmp.eq.s32.totalorder %s25, 0
      %p136 = por %p134, %p135
      %s138 = sadd.s32 %s137, 1
      %p141 = scmp.eq.s32.totalorder %s19, 1
      %p142 = scmp.ne.s32.totalorder %s137, %s139
      %p143 = scmp.eq.s32.totalorder %s19, 0
      %p144 = por %p142, %p143
      %p145 = scmp.ne.s32.totalorder %s137, %s139
      %p146 = scmp.eq.s32.totalorder %s24, 1
      %p147 = por %p145, %p146
      %p148 = scmp.ne.s32.totalorder %s139, %s140
      %p149 = scmp.eq.s32.totalorder %s24, 0
      %p150 = por %p148, %p149
      %p151 = scmp.ne.s32.totalorder %s139, %s140
      %p152 = scmp.eq.s32.totalorder %s25, 1
      %p153 = por %p151, %p152
      %p155 = scmp.ne.s32.totalorder %s140, %s154
      %p156 = scmp.eq.s32.totalorder %s25, 0
      %p157 = por %p155, %p156
      %s159 = sadd.s32 %s158, 1
      %p162 = scmp.eq.s32.totalorder %s19, 1
      %p163 = scmp.ne.s32.totalorder %s158, %s160
      %p164 = scmp.eq.s32.totalorder %s19, 0
      %p165 = por %p163, %p164
      %p166 = scmp.ne.s32.totalorder %s158, %s160
      %p167 = scmp.eq.s32.totalorder %s24, 1
      %p168 = por %p166, %p167
      %p169 = scmp.ne.s32.totalorder %s160, %s161
      %p170 = scmp.eq.s32.totalorder %s24, 0
      %p171 = por %p169, %p170
      %p172 = scmp.ne.s32.totalorder %s160, %s161
      %p173 = scmp.eq.s32.totalorder %s25, 1
      %p174 = por %p172, %p173
      %p176 = scmp.ne.s32.totalorder %s161, %s175
      %p177 = scmp.eq.s32.totalorder %s25, 0
      %p178 = por %p176, %p177
      %s180 = sadd.s32 %s179, 1
      %p183 = scmp.eq.s32.totalorder %s19, 1
      %p184 = scmp.ne.s32.totalorder %s179, %s181
      %p185 = scmp.eq.s32.totalorder %s19, 0
      %p186 = por %p184, %p185
      %p187 = scmp.ne.s32.totalorder %s179, %s181
      %p188 = scmp.eq.s32.totalorder %s24, 1
      %p189 = por %p187, %p188
      %p190 = scmp.ne.s32.totalorder %s181, %s182
      %p191 = scmp.eq.s32.totalorder %s24, 0
      %p192 = por %p190, %p191
      %p193 = scmp.ne.s32.totalorder %s181, %s182
      %p194 = scmp.eq.s32.totalorder %s25, 1
      %p195 = por %p193, %p194
      %p197 = scmp.ne.s32.totalorder %s182, %s196
      %p198 = scmp.eq.s32.totalorder %s25, 0
      %p199 = por %p197, %p198
      %s200 = ssub.s32 %s19, %s26
      %p201 = scmp.eq.s32.totalorder %s200, 0
      %s203 = sadd.s32 %s202, 1
      %s204 = scalar_select %p201, %s202, %s203
      %p207 = pneg %p201
      %p208 = scmp.eq.s32.totalorder %s19, 1
      %p209 = por %p207, %p208
      %p210 = scmp.ne.s32.totalorder %s202, %s205
      %p211 = scmp.eq.s32.totalorder %s19, 0
      %p212 = por %p210, %p211
      %p213 = scmp.ne.s32.totalorder %s202, %s205
      %p214 = scmp.eq.s32.totalorder %s24, 1
      %p215 = por %p213, %p214
      %p216 = scmp.ne.s32.totalorder %s205, %s206
      %p217 = scmp.eq.s32.totalorder %s24, 0
      %p218 = por %p216, %p217
      %p219 = scmp.ne.s32.totalorder %s205, %s206
      %p220 = scmp.eq.s32.totalorder %s25, 1
      %p221 = por %p219, %p220
      %p223 = scmp.ne.s32.totalorder %s206, %s222
      %p224 = scmp.eq.s32.totalorder %s25, 0
      %p225 = por %p223, %p224
      %p226 = scmp.le.s32.totalorder 1, %s19
      %p227 = scmp.lt.s32.totalorder %s19, 3
      %p228 = pnand %p226, %p227
      %p229 = pneg %p228
      // Predicated region
      $region9: #{tpu_custom_call.1} parent=5 // pred_check
        _
      $region10: #{tpu_custom_call.1} parent=5 // pred_check_branch
        %231 = sbr.rel (%p228) target = $region12
      $region11: #{tpu_custom_call.1} parent=5 // pred_region
        %s232 = ssub.s32 %s19, 1
        // Predicated region
        $region13: #{tpu_custom_call.1} parent=11 // pred_check
          %p233 = pneg %p66
        $region14: #{tpu_custom_call.1} parent=11 // pred_check_branch
          %235 = sbr.rel (%p233) target = $region16
        $region15: #{tpu_custom_call.1} parent=11 // pred_region
          _
        $region16: #{tpu_custom_call.1} parent=11 // pred_fallthru
          _
        // Predicated region
        $region17: #{tpu_custom_call.1} parent=11 // pred_check
          %p236 = pneg %p87
        $region18: #{tpu_custom_call.1} parent=11 // pred_check_branch
          %238 = sbr.rel (%p236) target = $region20
        $region19: #{tpu_custom_call.1} parent=11 // pred_region
          _
        $region20: #{tpu_custom_call.1} parent=11 // pred_fallthru
          _
        // Predicated region
        $region21: #{tpu_custom_call.1} parent=11 // pred_check
          %p239 = pneg %p108
        $region22: #{tpu_custom_call.1} parent=11 // pred_check_branch
          %241 = sbr.rel (%p239) target = $region24
        $region23: #{tpu_custom_call.1} parent=11 // pred_region
          %243 = vsyncadd [#allocation3], 0
          %s244 = sshll.u32 %s3, 4
          %s245 = int_to_ptr.hbm [resolvable:$true] %s244
          %s246 = sshll.u32 [#allocation2], 4
          %s247 = int_to_ptr.vmem [resolvable:$true] %s246
          %252 = dma.hbm_to_vmem [thread:$0]  %s245, 4096, %s247, [#allocation3], 128, 128, 8
        $region24: #{tpu_custom_call.1} parent=11 // pred_fallthru
          _
        // Predicated region
        $region25: #{tpu_custom_call.1} parent=11 // pred_check
          %p253 = pneg %p129
        $region26: #{tpu_custom_call.1} parent=11 // pred_check_branch
          %255 = sbr.rel (%p253) target = $region28
        $region27: #{tpu_custom_call.1} parent=11 // pred_region
          %257 = vsyncadd [#allocation6], 0
          %s258 = sshll.u32 %s4, 4
          %s259 = int_to_ptr.hbm [resolvable:$true] %s258
          %s260 = sshll.u32 [#allocation5], 4
          %s261 = int_to_ptr.vmem [resolvable:$true] %s260
          %266 = dma.hbm_to_vmem [thread:$0]  %s259, 4096, %s261, [#allocation6], 128, 128, 8
        $region28: #{tpu_custom_call.1} parent=11 // pred_fallthru
          _
        // Predicated region
        $region29: #{tpu_custom_call.1} parent=11 // pred_check
          %p267 = pneg %p150
        $region30: #{tpu_custom_call.1} parent=11 // pred_check_branch
          %269 = sbr.rel (%p267) target = $region32
        $region31: #{tpu_custom_call.1} parent=11 // pred_region
          _
        $region32: #{tpu_custom_call.1} parent=11 // pred_fallthru
          _
        // Predicated region
        $region33: #{tpu_custom_call.1} parent=11 // pred_check
          %p270 = pneg %p171
        $region34: #{tpu_custom_call.1} parent=11 // pred_check_branch
          %272 = sbr.rel (%p270) target = $region36
        $region35: #{tpu_custom_call.1} parent=11 // pred_region
          _
        $region36: #{tpu_custom_call.1} parent=11 // pred_fallthru
          _
        // Predicated region
        $region37: #{tpu_custom_call.1} parent=11 // pred_check
          %p273 = pneg %p192
        $region38: #{tpu_custom_call.1} parent=11 // pred_check_branch
          %275 = sbr.rel (%p273) target = $region40
        $region39: #{tpu_custom_call.1} parent=11 // pred_region
          _
        $region40: #{tpu_custom_call.1} parent=11 // pred_fallthru
          _
      $region12: #{tpu_custom_call.1} parent=5 // pred_fallthru
        _
      %p276 = scmp.lt.s32.totalorder %s19, 2
      // Predicated region
      $region41: #{tpu_custom_call.1} parent=5 // pred_check
        %p277 = pneg %p276
      $region42: #{tpu_custom_call.1} parent=5 // pred_check_branch
        %279 = sbr.rel (%p277) target = $region44
      $region43: #{tpu_custom_call.1} parent=5 // pred_region
        // Predicated region
        $region45: #{tpu_custom_call.1} parent=43 // pred_check
          %p280 = pneg %p39
        $region46: #{tpu_custom_call.1} parent=43 // pred_check_branch
          %282 = sbr.rel (%p280) target = $region48
        $region47: #{tpu_custom_call.1} parent=43 // pred_region
          %p283 = scmp.lt.s32.totalorder %s19, 1
          %s284 = scalar_select %p283, %s19, 1
          %s285 = smul.addr %s284, 2
          %s286 = scalar_lea.vmem %s0, %s285
        $region48: #{tpu_custom_call.1} parent=43 // pred_fallthru
          _
      $region44: #{tpu_custom_call.1} parent=5 // pred_fallthru
        _
      %p287 = scmp.le.s32.totalorder 1, %s19
      %p288 = scmp.lt.s32.totalorder %s19, 3
      %p289 = pnand %p287, %p288
      %p290 = pneg %p289
      // Predicated region
      $region49: #{tpu_custom_call.1} parent=5 // pred_check
        _
      $region50: #{tpu_custom_call.1} parent=5 // pred_check_branch
        %292 = sbr.rel (%p289) target = $region52
      $region51: #{tpu_custom_call.1} parent=5 // pred_region
        %s293 = ssub.s32 %s19, 1
        // Predicated region
        $region53: #{tpu_custom_call.1} parent=51 // pred_check
          %p294 = pneg %p108
        $region54: #{tpu_custom_call.1} parent=51 // pred_check_branch
          %296 = sbr.rel (%p294) target = $region56
        $region55: #{tpu_custom_call.1} parent=51 // pred_region
          %298 = dma.done [#allocation3], 4096
        $region56: #{tpu_custom_call.1} parent=51 // pred_fallthru
          _
        // Predicated region
        $region57: #{tpu_custom_call.1} parent=51 // pred_check
          %p299 = pneg %p129
        $region58: #{tpu_custom_call.1} parent=51 // pred_check_branch
          %301 = sbr.rel (%p299) target = $region60
        $region59: #{tpu_custom_call.1} parent=51 // pred_region
          %303 = dma.done [#allocation6], 4096
        $region60: #{tpu_custom_call.1} parent=51 // pred_fallthru
          _
        %p304 = scmp.lt.s32.totalorder %s24, 1
        %s305 = scalar_select %p304, %s24, 1
        %s306 = smul.addr %s305, 2
        %s307 = scalar_lea.vmem %s0, %s306
        %p308 = pneg %p45
        %p309 = pneg %p42
        %p310 = pneg %p66
        %p311 = pneg %p63
        %p312 = pneg %p87
        %p313 = pneg %p84
        %p314 = pneg %p108
        %p315 = pneg %p105
        %p316 = pneg %p129
        %p317 = pneg %p126
        %p318 = pneg %p150
        %p319 = pneg %p147
        %p320 = pneg %p171
        %p321 = pneg %p168
        %p322 = pneg %p192
        %p323 = pneg %p189
        %p324 = pneg %p218
        %p325 = pneg %p215
        %s326 = sand.u32 %s205, 1
        %s327 = scalar_lea.sflag [#allocation4], %s326
        %s328 = sand.u32 %s205, 1
        %s329 = smul.addr %s328, 2
        %s330 = scalar_lea.vmem [#allocation7], %s329
        %p331 = scmp.lt.s32.totalorder %s24, 1
        %s332 = scalar_select %p331, %s24, 1
        %s333 = smul.addr %s332, 2
        %s334 = scalar_lea.vmem %s0, %s333
        %v335 = vld [vmem:[%s7] ss:$4 sm:$0x3]
        %s336 = scalar_lea.vmem %s7, 1
        %v337 = vld [vmem:[%s336] ss:$4 sm:$0x3]
        %s338 = scalar_lea.vmem %s7, 2
        %v339 = vld [vmem:[%s338] ss:$4 sm:$0x3]
        %v340 = vld [vmem:[%s334] sm:$0x3]
        %v342 = vperm.slane %v340, 0
        %v343 = vperm.slane %v340, 1
        %346 = vrot.lane.b32.xlu0 %v342, 1
        %v347 = vpop.permute.xlu0 %346
        %348 = vrot.lane.b32.xlu0 %v343, 1
        %v349 = vpop.permute.xlu0 %348
        %v350 = vlaneseq
        %v351 = vand.u32 %v350, 127
        %vm352 = vcmp.lt.s32.totalorder %v351, 1
        %v353 = vsel %vm352, %v347, %v349
        %v354 = vsel %vm352, %v349, %v347
        %v356 = vperm.slane %v337, 0
        %v357 = vperm.slane %v337, 1
        %v360 = vmul.f32 %v354, %v356
        %v361 = vmul.f32 %v353, %v357
        %362 = vrot.lane.b32.xlu0 %v342, 127
        %v363 = vpop.permute.xlu0 %362
        %364 = vrot.lane.b32.xlu0 %v343, 127
        %v365 = vpop.permute.xlu0 %364
        %vm366 = vcmp.lt.s32.totalorder %v351, 127
        %v367 = vsel %vm366, %v363, %v365
        %v368 = vsel %vm366, %v365, %v363
        %v370 = vperm.slane %v339, 0
        %v371 = vperm.slane %v339, 1
        %v374 = vmul.f32 %v367, %v370
        %v375 = vmul.f32 %v368, %v371
        %v376 = vld [vmem:[%s1] sm:$0xff]
        %v377 = vld [vmem:[%s1 + $0x8] sm:$0xff]
        %v378 = vld [vmem:[%s1 + $0x10] sm:$0xff]
        %v379 = vld [vmem:[%s1 + $0x18] sm:$0xff]
        %v380 = vld [vmem:[%s1 + $0x20] sm:$0xff]
        %v381 = vld [vmem:[%s1 + $0x28] sm:$0xff]
        %v382 = vld [vmem:[%s1 + $0x30] sm:$0xff]
        %v383 = vld [vmem:[%s1 + $0x38] sm:$0xff]
        %385 = vset.pattern.permute.xlu0 0
        %386 = vperm.xlu0 %385, %v376
        %v387 = vpop.permute.xlu0 %386
        %390 = vset.pattern.permute.xlu0 0
        %391 = vperm.xlu0 %390, %v377
        %v392 = vpop.permute.xlu0 %391
        %395 = vset.pattern.permute.xlu0 0
        %396 = vperm.xlu0 %395, %v378
        %v397 = vpop.permute.xlu0 %396
        %400 = vset.pattern.permute.xlu0 0
        %401 = vperm.xlu0 %400, %v379
        %v402 = vpop.permute.xlu0 %401
        %405 = vset.pattern.permute.xlu0 0
        %406 = vperm.xlu0 %405, %v380
        %v407 = vpop.permute.xlu0 %406
        %410 = vset.pattern.permute.xlu0 0
        %411 = vperm.xlu0 %410, %v381
        %v412 = vpop.permute.xlu0 %411
        %415 = vset.pattern.permute.xlu0 0
        %416 = vperm.xlu0 %415, %v382
        %v417 = vpop.permute.xlu0 %416
        %420 = vset.pattern.permute.xlu0 0
        %421 = vperm.xlu0 %420, %v383
        %v422 = vpop.permute.xlu0 %421
        %v424 = vperm.slane %v360, 0
        %v425 = vperm.slane %v361, 0
        %v426 = vmul.f32 %v387, %v424
        %v427 = vmul.f32 %v387, %v425
        %v428 = vmul.f32 %v392, %v424
        %v429 = vmul.f32 %v392, %v425
        %v430 = vmul.f32 %v397, %v424
        %v431 = vmul.f32 %v397, %v425
        %v432 = vmul.f32 %v402, %v424
        %v433 = vmul.f32 %v402, %v425
        %v434 = vmul.f32 %v407, %v424
        %v435 = vmul.f32 %v407, %v425
        %v436 = vmul.f32 %v412, %v424
        %v437 = vmul.f32 %v412, %v425
        %v438 = vmul.f32 %v417, %v424
        %v439 = vmul.f32 %v417, %v425
        %v440 = vmul.f32 %v422, %v424
        %v441 = vmul.f32 %v422, %v425
        %442 = vset.pattern.permute.xlu0 1
        %443 = vperm.xlu0 %442, %v376
        %v444 = vpop.permute.xlu0 %443
        %446 = vset.pattern.permute.xlu0 1
        %447 = vperm.xlu0 %446, %v377
        %v448 = vpop.permute.xlu0 %447
        %450 = vset.pattern.permute.xlu0 1
        %451 = vperm.xlu0 %450, %v378
        %v452 = vpop.permute.xlu0 %451
        %454 = vset.pattern.permute.xlu0 1
        %455 = vperm.xlu0 %454, %v379
        %v456 = vpop.permute.xlu0 %455
        %458 = vset.pattern.permute.xlu0 1
        %459 = vperm.xlu0 %458, %v380
        %v460 = vpop.permute.xlu0 %459
        %462 = vset.pattern.permute.xlu0 1
        %463 = vperm.xlu0 %462, %v381
        %v464 = vpop.permute.xlu0 %463
        %466 = vset.pattern.permute.xlu0 1
        %467 = vperm.xlu0 %466, %v382
        %v468 = vpop.permute.xlu0 %467
        %470 = vset.pattern.permute.xlu0 1
        %471 = vperm.xlu0 %470, %v383
        %v472 = vpop.permute.xlu0 %471
        %v474 = vmul.f32 %v444, %v342
        %v475 = vmul.f32 %v444, %v343
        %v476 = vmul.f32 %v448, %v342
        %v477 = vmul.f32 %v448, %v343
        %v478 = vmul.f32 %v452, %v342
        %v479 = vmul.f32 %v452, %v343
        %v480 = vmul.f32 %v456, %v342
        %v481 = vmul.f32 %v456, %v343
        %v482 = vmul.f32 %v460, %v342
        %v483 = vmul.f32 %v460, %v343
        %v484 = vmul.f32 %v464, %v342
        %v485 = vmul.f32 %v464, %v343
        %v486 = vmul.f32 %v468, %v342
        %v487 = vmul.f32 %v468, %v343
        %v488 = vmul.f32 %v472, %v342
        %v489 = vmul.f32 %v472, %v343
        %v490 = vadd.f32 %v426, %v474
        %v491 = vadd.f32 %v427, %v475
        %v492 = vadd.f32 %v428, %v476
        %v493 = vadd.f32 %v429, %v477
        %v494 = vadd.f32 %v430, %v478
        %v495 = vadd.f32 %v431, %v479
        %v496 = vadd.f32 %v432, %v480
        %v497 = vadd.f32 %v433, %v481
        %v498 = vadd.f32 %v434, %v482
        %v499 = vadd.f32 %v435, %v483
        %v500 = vadd.f32 %v436, %v484
        %v501 = vadd.f32 %v437, %v485
        %v502 = vadd.f32 %v438, %v486
        %v503 = vadd.f32 %v439, %v487
        %v504 = vadd.f32 %v440, %v488
        %v505 = vadd.f32 %v441, %v489
        %506 = vset.pattern.permute.xlu0 2
        %507 = vperm.xlu0 %506, %v376
        %v508 = vpop.permute.xlu0 %507
        %510 = vset.pattern.permute.xlu0 2
        %511 = vperm.xlu0 %510, %v377
        %v512 = vpop.permute.xlu0 %511
        %514 = vset.pattern.permute.xlu0 2
        %515 = vperm.xlu0 %514, %v378
        %v516 = vpop.permute.xlu0 %515
        %518 = vset.pattern.permute.xlu0 2
        %519 = vperm.xlu0 %518, %v379
        %v520 = vpop.permute.xlu0 %519
        %522 = vset.pattern.permute.xlu0 2
        %523 = vperm.xlu0 %522, %v380
        %v524 = vpop.permute.xlu0 %523
        %526 = vset.pattern.permute.xlu0 2
        %527 = vperm.xlu0 %526, %v381
        %v528 = vpop.permute.xlu0 %527
        %530 = vset.pattern.permute.xlu0 2
        %531 = vperm.xlu0 %530, %v382
        %v532 = vpop.permute.xlu0 %531
        %534 = vset.pattern.permute.xlu0 2
        %535 = vperm.xlu0 %534, %v383
        %v536 = vpop.permute.xlu0 %535
        %v538 = vperm.slane %v374, 0
        %v539 = vperm.slane %v375, 0
        %v540 = vmul.f32 %v508, %v538
        %v541 = vmul.f32 %v508, %v539
        %v542 = vmul.f32 %v512, %v538
        %v543 = vmul.f32 %v512, %v539
        %v544 = vmul.f32 %v516, %v538
        %v545 = vmul.f32 %v516, %v539
        %v546 = vmul.f32 %v520, %v538
        %v547 = vmul.f32 %v520, %v539
        %v548 = vmul.f32 %v524, %v538
        %v549 = vmul.f32 %v524, %v539
        %v550 = vmul.f32 %v528, %v538
        %v551 = vmul.f32 %v528, %v539
        %v552 = vmul.f32 %v532, %v538
        %v553 = vmul.f32 %v532, %v539
        %v554 = vmul.f32 %v536, %v538
        %v555 = vmul.f32 %v536, %v539
        %v556 = vadd.f32 %v490, %v540
        %v557 = vadd.f32 %v491, %v541
        %v558 = vadd.f32 %v492, %v542
        %v559 = vadd.f32 %v493, %v543
        %v560 = vadd.f32 %v494, %v544
        %v561 = vadd.f32 %v495, %v545
        %v562 = vadd.f32 %v496, %v546
        %v563 = vadd.f32 %v497, %v547
        %v564 = vadd.f32 %v498, %v548
        %v565 = vadd.f32 %v499, %v549
        %v566 = vadd.f32 %v500, %v550
        %v567 = vadd.f32 %v501, %v551
        %v568 = vadd.f32 %v502, %v552
        %v569 = vadd.f32 %v503, %v553
        %v570 = vadd.f32 %v504, %v554
        %v571 = vadd.f32 %v505, %v555
        %v573 = vperm.slane %v335, 0
        %v574 = vperm.slane %v335, 1
        %v577 = vmul.f32 %v556, %v573
        %v578 = vmul.f32 %v557, %v574
        %v579 = vmul.f32 %v558, %v573
        %v580 = vmul.f32 %v559, %v574
        %v581 = vmul.f32 %v560, %v573
        %v582 = vmul.f32 %v561, %v574
        %v583 = vmul.f32 %v562, %v573
        %v584 = vmul.f32 %v563, %v574
        %v585 = vmul.f32 %v564, %v573
        %v586 = vmul.f32 %v565, %v574
        %v587 = vmul.f32 %v566, %v573
        %v588 = vmul.f32 %v567, %v574
        %v589 = vmul.f32 %v568, %v573
        %v590 = vmul.f32 %v569, %v574
        %v591 = vmul.f32 %v570, %v573
        %v592 = vmul.f32 %v571, %v574
        %v593 = vmax.f32 %v577, 0.0
        %v594 = vmax.f32 %v578, 0.0
        %v595 = vmax.f32 %v579, 0.0
        %v596 = vmax.f32 %v580, 0.0
        %v597 = vmax.f32 %v581, 0.0
        %v598 = vmax.f32 %v582, 0.0
        %v599 = vmax.f32 %v583, 0.0
        %v600 = vmax.f32 %v584, 0.0
        %v601 = vmax.f32 %v585, 0.0
        %v602 = vmax.f32 %v586, 0.0
        %v603 = vmax.f32 %v587, 0.0
        %v604 = vmax.f32 %v588, 0.0
        %v605 = vmax.f32 %v589, 0.0
        %v606 = vmax.f32 %v590, 0.0
        %v607 = vmax.f32 %v591, 0.0
        %v608 = vmax.f32 %v592, 0.0
        %609 = vrot.lane.b32.xlu0 %v593, 1
        %v610 = vpop.permute.xlu0 %609
        %611 = vrot.lane.b32.xlu0 %v595, 1
        %v612 = vpop.permute.xlu0 %611
        %613 = vrot.lane.b32.xlu0 %v597, 1
        %v614 = vpop.permute.xlu0 %613
        %615 = vrot.lane.b32.xlu0 %v599, 1
        %v616 = vpop.permute.xlu0 %615
        %617 = vrot.lane.b32.xlu0 %v601, 1
        %v618 = vpop.permute.xlu0 %617
        %619 = vrot.lane.b32.xlu0 %v603, 1
        %v620 = vpop.permute.xlu0 %619
        %621 = vrot.lane.b32.xlu0 %v605, 1
        %v622 = vpop.permute.xlu0 %621
        %623 = vrot.lane.b32.xlu0 %v607, 1
        %v624 = vpop.permute.xlu0 %623
        %625 = vrot.lane.b32.xlu0 %v594, 1
        %v626 = vpop.permute.xlu0 %625
        %627 = vrot.lane.b32.xlu0 %v596, 1
        %v628 = vpop.permute.xlu0 %627
        %629 = vrot.lane.b32.xlu0 %v598, 1
        %v630 = vpop.permute.xlu0 %629
        %631 = vrot.lane.b32.xlu0 %v600, 1
        %v632 = vpop.permute.xlu0 %631
        %633 = vrot.lane.b32.xlu0 %v602, 1
        %v634 = vpop.permute.xlu0 %633
        %635 = vrot.lane.b32.xlu0 %v604, 1
        %v636 = vpop.permute.xlu0 %635
        %637 = vrot.lane.b32.xlu0 %v606, 1
        %v638 = vpop.permute.xlu0 %637
        %639 = vrot.lane.b32.xlu0 %v608, 1
        %v640 = vpop.permute.xlu0 %639
        %v641 = vsel %vm352, %v610, %v626
        %v642 = vsel %vm352, %v612, %v628
        %v643 = vsel %vm352, %v614, %v630
        %v644 = vsel %vm352, %v616, %v632
        %v645 = vsel %vm352, %v618, %v634
        %v646 = vsel %vm352, %v620, %v636
        %v647 = vsel %vm352, %v622, %v638
        %v648 = vsel %vm352, %v624, %v640
        %v649 = vsel %vm352, %v626, %v610
        %v650 = vsel %vm352, %v628, %v612
        %v651 = vsel %vm352, %v630, %v614
        %v652 = vsel %vm352, %v632, %v616
        %v653 = vsel %vm352, %v634, %v618
        %v654 = vsel %vm352, %v636, %v620
        %v655 = vsel %vm352, %v638, %v622
        %v656 = vsel %vm352, %v640, %v624
        %v657 = vmul.f32 %v649, %v356
        %v658 = vmul.f32 %v641, %v357
        %v659 = vmul.f32 %v650, %v356
        %v660 = vmul.f32 %v642, %v357
        %v661 = vmul.f32 %v651, %v356
        %v662 = vmul.f32 %v643, %v357
        %v663 = vmul.f32 %v652, %v356
        %v664 = vmul.f32 %v644, %v357
        %v665 = vmul.f32 %v653, %v356
        %v666 = vmul.f32 %v645, %v357
        %v667 = vmul.f32 %v654, %v356
        %v668 = vmul.f32 %v646, %v357
        %v669 = vmul.f32 %v655, %v356
        %v670 = vmul.f32 %v647, %v357
        %v671 = vmul.f32 %v656, %v356
        %v672 = vmul.f32 %v648, %v357
        %673 = vrot.lane.b32.xlu0 %v593, 127
        %v674 = vpop.permute.xlu0 %673
        %675 = vrot.lane.b32.xlu0 %v595, 127
        %v676 = vpop.permute.xlu0 %675
        %677 = vrot.lane.b32.xlu0 %v597, 127
        %v678 = vpop.permute.xlu0 %677
        %679 = vrot.lane.b32.xlu0 %v599, 127
        %v680 = vpop.permute.xlu0 %679
        %681 = vrot.lane.b32.xlu0 %v601, 127
        %v682 = vpop.permute.xlu0 %681
        %683 = vrot.lane.b32.xlu0 %v603, 127
        %v684 = vpop.permute.xlu0 %683
        %685 = vrot.lane.b32.xlu0 %v605, 127
        %v686 = vpop.permute.xlu0 %685
        %687 = vrot.lane.b32.xlu0 %v607, 127
        %v688 = vpop.permute.xlu0 %687
        %689 = vrot.lane.b32.xlu0 %v594, 127
        %v690 = vpop.permute.xlu0 %689
        %691 = vrot.lane.b32.xlu0 %v596, 127
        %v692 = vpop.permute.xlu0 %691
        %693 = vrot.lane.b32.xlu0 %v598, 127
        %v694 = vpop.permute.xlu0 %693
        %695 = vrot.lane.b32.xlu0 %v600, 127
        %v696 = vpop.permute.xlu0 %695
        %697 = vrot.lane.b32.xlu0 %v602, 127
        %v698 = vpop.permute.xlu0 %697
        %699 = vrot.lane.b32.xlu0 %v604, 127
        %v700 = vpop.permute.xlu0 %699
        %701 = vrot.lane.b32.xlu0 %v606, 127
        %v702 = vpop.permute.xlu0 %701
        %703 = vrot.lane.b32.xlu0 %v608, 127
        %v704 = vpop.permute.xlu0 %703
        %v705 = vsel %vm366, %v674, %v690
        %v706 = vsel %vm366, %v676, %v692
        %v707 = vsel %vm366, %v678, %v694
        %v708 = vsel %vm366, %v680, %v696
        %v709 = vsel %vm366, %v682, %v698
        %v710 = vsel %vm366, %v684, %v700
        %v711 = vsel %vm366, %v686, %v702
        %v712 = vsel %vm366, %v688, %v704
        %v713 = vsel %vm366, %v690, %v674
        %v714 = vsel %vm366, %v692, %v676
        %v715 = vsel %vm366, %v694, %v678
        %v716 = vsel %vm366, %v696, %v680
        %v717 = vsel %vm366, %v698, %v682
        %v718 = vsel %vm366, %v700, %v684
        %v719 = vsel %vm366, %v702, %v686
        %v720 = vsel %vm366, %v704, %v688
        %v721 = vmul.f32 %v705, %v370
        %v722 = vmul.f32 %v713, %v371
        %v723 = vmul.f32 %v706, %v370
        %v724 = vmul.f32 %v714, %v371
        %v725 = vmul.f32 %v707, %v370
        %v726 = vmul.f32 %v715, %v371
        %v727 = vmul.f32 %v708, %v370
        %v728 = vmul.f32 %v716, %v371
        %v729 = vmul.f32 %v709, %v370
        %v730 = vmul.f32 %v717, %v371
        %v731 = vmul.f32 %v710, %v370
        %v732 = vmul.f32 %v718, %v371
        %v733 = vmul.f32 %v711, %v370
        %v734 = vmul.f32 %v719, %v371
        %v735 = vmul.f32 %v712, %v370
        %v736 = vmul.f32 %v720, %v371
        %v737 = vld [vmem:[%s2] sm:$0xff]
        %v738 = vld [vmem:[%s2 + $0x8] sm:$0xff]
        %v739 = vld [vmem:[%s2 + $0x10] sm:$0xff]
        %v740 = vld [vmem:[%s2 + $0x18] sm:$0xff]
        %v741 = vld [vmem:[%s2 + $0x20] sm:$0xff]
        %v742 = vld [vmem:[%s2 + $0x28] sm:$0xff]
        %v743 = vld [vmem:[%s2 + $0x30] sm:$0xff]
        %v744 = vld [vmem:[%s2 + $0x38] sm:$0xff]
        %v745 = vld [vmem:[#allocation2] sm:$0xff]
        %v746 = vld [vmem:[#allocation2 + $0x8] sm:$0xff]
        %v747 = vld [vmem:[#allocation2 + $0x10] sm:$0xff]
        %v748 = vld [vmem:[#allocation2 + $0x18] sm:$0xff]
        %v749 = vld [vmem:[#allocation2 + $0x20] sm:$0xff]
        %v750 = vld [vmem:[#allocation2 + $0x28] sm:$0xff]
        %v751 = vld [vmem:[#allocation2 + $0x30] sm:$0xff]
        %v752 = vld [vmem:[#allocation2 + $0x38] sm:$0xff]
        %vm753 = vcmask 523264
        %v755 = vsel %vm753, %v745, 0
        %v758 = vsel %vm753, %v746, 0
        %v761 = vsel %vm753, %v747, 0
        %v764 = vsel %vm753, %v748, 0
        %v767 = vsel %vm753, %v749, 0
        %v770 = vsel %vm753, %v750, 0
        %v773 = vsel %vm753, %v751, 0
        %v776 = vsel %vm753, %v752, 0
        %778 = vmatpush.msra.mxu0 0.0
        %779 = vmatpush.msra.mxu0 0.0
        %780 = vmatpush.msra.mxu0 0.0
        %781 = vmatpush.msra.mxu0 0.0
        %782 = vmatpush.msra.mxu0 0.0
        %783 = vmatpush.msra.mxu0 0.0
        %784 = vmatpush.msra.mxu0 0.0
        %785 = vmatpush.msra.mxu0 0.0
        %786 = vmatpush.msra.mxu0 %v607
        %787 = vmatpush.msra.mxu0 %v605
        %788 = vmatpush.msra.mxu0 %v603
        %789 = vmatpush.msra.mxu0 %v601
        %790 = vmatpush.msra.mxu0 %v599
        %791 = vmatpush.msra.mxu0 %v597
        %792 = vmatpush.msra.mxu0 %v595
        %793 = vmatpush.msra.mxu0 %v593
        %794 = vmatmul.f32.gmra.mxu0 %v755
        %v795 = vpop.f32.mrf.mxu0
        %v796 = vadd.f32 0.0, %v795
        %797 = vmatmul.f32.gmra.mxu0 %v758
        %v798 = vpop.f32.mrf.mxu0
        %v799 = vadd.f32 0.0, %v798
        %800 = vmatmul.f32.gmra.mxu0 %v761
        %v801 = vpop.f32.mrf.mxu0
        %v802 = vadd.f32 0.0, %v801
        %803 = vmatmul.f32.gmra.mxu0 %v764
        %v804 = vpop.f32.mrf.mxu0
        %v805 = vadd.f32 0.0, %v804
        %806 = vmatmul.f32.gmra.mxu0 %v767
        %v807 = vpop.f32.mrf.mxu0
        %v808 = vadd.f32 0.0, %v807
        %809 = vmatmul.f32.gmra.mxu0 %v770
        %v810 = vpop.f32.mrf.mxu0
        %v811 = vadd.f32 0.0, %v810
        %812 = vmatmul.f32.gmra.mxu0 %v773
        %v813 = vpop.f32.mrf.mxu0
        %v814 = vadd.f32 0.0, %v813
        %815 = vmatmul.f32.gmra.mxu0 %v776
        %v816 = vpop.f32.mrf.mxu0
        %v817 = vadd.f32 0.0, %v816
        %818 = vdwg.mxu0
        %819 = vmatpush.msra.mxu0 0.0
        %820 = vmatpush.msra.mxu0 0.0
        %821 = vmatpush.msra.mxu0 0.0
        %822 = vmatpush.msra.mxu0 0.0
        %823 = vmatpush.msra.mxu0 0.0
        %824 = vmatpush.msra.mxu0 0.0
        %825 = vmatpush.msra.mxu0 0.0
        %826 = vmatpush.msra.mxu0 0.0
        %827 = vmatpush.msra.mxu0 %v608
        %828 = vmatpush.msra.mxu0 %v606
        %829 = vmatpush.msra.mxu0 %v604
        %830 = vmatpush.msra.mxu0 %v602
        %831 = vmatpush.msra.mxu0 %v600
        %832 = vmatpush.msra.mxu0 %v598
        %833 = vmatpush.msra.mxu0 %v596
        %834 = vmatpush.msra.mxu0 %v594
        %835 = vmatmul.f32.gmra.mxu0 %v755
        %v836 = vpop.f32.mrf.mxu0
        %v837 = vadd.f32 0.0, %v836
        %838 = vmatmul.f32.gmra.mxu0 %v758
        %v839 = vpop.f32.mrf.mxu0
        %v840 = vadd.f32 0.0, %v839
        %841 = vmatmul.f32.gmra.mxu0 %v761
        %v842 = vpop.f32.mrf.mxu0
        %v843 = vadd.f32 0.0, %v842
        %844 = vmatmul.f32.gmra.mxu0 %v764
        %v845 = vpop.f32.mrf.mxu0
        %v846 = vadd.f32 0.0, %v845
        %847 = vmatmul.f32.gmra.mxu0 %v767
        %v848 = vpop.f32.mrf.mxu0
        %v849 = vadd.f32 0.0, %v848
        %850 = vmatmul.f32.gmra.mxu0 %v770
        %v851 = vpop.f32.mrf.mxu0
        %v852 = vadd.f32 0.0, %v851
        %853 = vmatmul.f32.gmra.mxu0 %v773
        %v854 = vpop.f32.mrf.mxu0
        %v855 = vadd.f32 0.0, %v854
        %856 = vmatmul.f32.gmra.mxu0 %v776
        %v857 = vpop.f32.mrf.mxu0
        %v858 = vadd.f32 0.0, %v857
        %859 = vdwg.mxu0
        %v861 = vsel %vm753, %v737, 0
        %v864 = vsel %vm753, %v738, 0
        %v867 = vsel %vm753, %v739, 0
        %v870 = vsel %vm753, %v740, 0
        %v873 = vsel %vm753, %v741, 0
        %v876 = vsel %vm753, %v742, 0
        %v879 = vsel %vm753, %v743, 0
        %v882 = vsel %vm753, %v744, 0
        %884 = vmatpush.msra.mxu0 0.0
        %885 = vmatpush.msra.mxu0 0.0
        %886 = vmatpush.msra.mxu0 0.0
        %887 = vmatpush.msra.mxu0 0.0
        %888 = vmatpush.msra.mxu0 0.0
        %889 = vmatpush.msra.mxu0 0.0
        %890 = vmatpush.msra.mxu0 0.0
        %891 = vmatpush.msra.mxu0 0.0
        %892 = vmatpush.msra.mxu0 %v671
        %893 = vmatpush.msra.mxu0 %v669
        %894 = vmatpush.msra.mxu0 %v667
        %895 = vmatpush.msra.mxu0 %v665
        %896 = vmatpush.msra.mxu0 %v663
        %897 = vmatpush.msra.mxu0 %v661
        %898 = vmatpush.msra.mxu0 %v659
        %899 = vmatpush.msra.mxu0 %v657
        %900 = vmatmul.f32.gmra.mxu0 %v861
        %v901 = vpop.f32.mrf.mxu0
        %v902 = vadd.f32 %v796, %v901
        %903 = vmatmul.f32.gmra.mxu0 %v864
        %v904 = vpop.f32.mrf.mxu0
        %v905 = vadd.f32 %v799, %v904
        %906 = vmatmul.f32.gmra.mxu0 %v867
        %v907 = vpop.f32.mrf.mxu0
        %v908 = vadd.f32 %v802, %v907
        %909 = vmatmul.f32.gmra.mxu0 %v870
        %v910 = vpop.f32.mrf.mxu0
        %v911 = vadd.f32 %v805, %v910
        %912 = vmatmul.f32.gmra.mxu0 %v873
        %v913 = vpop.f32.mrf.mxu0
        %v914 = vadd.f32 %v808, %v913
        %915 = vmatmul.f32.gmra.mxu0 %v876
        %v916 = vpop.f32.mrf.mxu0
        %v917 = vadd.f32 %v811, %v916
        %918 = vmatmul.f32.gmra.mxu0 %v879
        %v919 = vpop.f32.mrf.mxu0
        %v920 = vadd.f32 %v814, %v919
        %921 = vmatmul.f32.gmra.mxu0 %v882
        %v922 = vpop.f32.mrf.mxu0
        %v923 = vadd.f32 %v817, %v922
        %924 = vdwg.mxu0
        %925 = vmatpush.msra.mxu0 0.0
        %926 = vmatpush.msra.mxu0 0.0
        %927 = vmatpush.msra.mxu0 0.0
        %928 = vmatpush.msra.mxu0 0.0
        %929 = vmatpush.msra.mxu0 0.0
        %930 = vmatpush.msra.mxu0 0.0
        %931 = vmatpush.msra.mxu0 0.0
        %932 = vmatpush.msra.mxu0 0.0
        %933 = vmatpush.msra.mxu0 %v672
        %934 = vmatpush.msra.mxu0 %v670
        %935 = vmatpush.msra.mxu0 %v668
        %936 = vmatpush.msra.mxu0 %v666
        %937 = vmatpush.msra.mxu0 %v664
        %938 = vmatpush.msra.mxu0 %v662
        %939 = vmatpush.msra.mxu0 %v660
        %940 = vmatpush.msra.mxu0 %v658
        %941 = vmatmul.f32.gmra.mxu0 %v861
        %v942 = vpop.f32.mrf.mxu0
        %v943 = vadd.f32 %v837, %v942
        %944 = vmatmul.f32.gmra.mxu0 %v864
        %v945 = vpop.f32.mrf.mxu0
        %v946 = vadd.f32 %v840, %v945
        %947 = vmatmul.f32.gmra.mxu0 %v867
        %v948 = vpop.f32.mrf.mxu0
        %v949 = vadd.f32 %v843, %v948
        %950 = vmatmul.f32.gmra.mxu0 %v870
        %v951 = vpop.f32.mrf.mxu0
        %v952 = vadd.f32 %v846, %v951
        %953 = vmatmul.f32.gmra.mxu0 %v873
        %v954 = vpop.f32.mrf.mxu0
        %v955 = vadd.f32 %v849, %v954
        %956 = vmatmul.f32.gmra.mxu0 %v876
        %v957 = vpop.f32.mrf.mxu0
        %v958 = vadd.f32 %v852, %v957
        %959 = vmatmul.f32.gmra.mxu0 %v879
        %v960 = vpop.f32.mrf.mxu0
        %v961 = vadd.f32 %v855, %v960
        %962 = vmatmul.f32.gmra.mxu0 %v882
        %v963 = vpop.f32.mrf.mxu0
        %v964 = vadd.f32 %v858, %v963
        %965 = vdwg.mxu0
        %v966 = vld [vmem:[#allocation5] sm:$0xff]
        %v967 = vld [vmem:[#allocation5 + $0x8] sm:$0xff]
        %v968 = vld [vmem:[#allocation5 + $0x10] sm:$0xff]
        %v969 = vld [vmem:[#allocation5 + $0x18] sm:$0xff]
        %v970 = vld [vmem:[#allocation5 + $0x20] sm:$0xff]
        %v971 = vld [vmem:[#allocation5 + $0x28] sm:$0xff]
        %v972 = vld [vmem:[#allocation5 + $0x30] sm:$0xff]
        %v973 = vld [vmem:[#allocation5 + $0x38] sm:$0xff]
        %v975 = vsel %vm753, %v966, 0
        %v978 = vsel %vm753, %v967, 0
        %v981 = vsel %vm753, %v968, 0
        %v984 = vsel %vm753, %v969, 0
        %v987 = vsel %vm753, %v970, 0
        %v990 = vsel %vm753, %v971, 0
        %v993 = vsel %vm753, %v972, 0
        %v996 = vsel %vm753, %v973, 0
        %998 = vmatpush.msra.mxu0 0.0
        %999 = vmatpush.msra.mxu0 0.0
        %1000 = vmatpush.msra.mxu0 0.0
        %1001 = vmatpush.msra.mxu0 0.0
        %1002 = vmatpush.msra.mxu0 0.0
        %1003 = vmatpush.msra.mxu0 0.0
        %1004 = vmatpush.msra.mxu0 0.0
        %1005 = vmatpush.msra.mxu0 0.0
        %1006 = vmatpush.msra.mxu0 %v735
        %1007 = vmatpush.msra.mxu0 %v733
        %1008 = vmatpush.msra.mxu0 %v731
        %1009 = vmatpush.msra.mxu0 %v729
        %1010 = vmatpush.msra.mxu0 %v727
        %1011 = vmatpush.msra.mxu0 %v725
        %1012 = vmatpush.msra.mxu0 %v723
        %1013 = vmatpush.msra.mxu0 %v721
        %1014 = vmatmul.f32.gmra.mxu0 %v975
        %v1015 = vpop.f32.mrf.mxu0
        %v1016 = vadd.f32 0.0, %v1015
        %1017 = vmatmul.f32.gmra.mxu0 %v978
        %v1018 = vpop.f32.mrf.mxu0
        %v1019 = vadd.f32 0.0, %v1018
        %1020 = vmatmul.f32.gmra.mxu0 %v981
        %v1021 = vpop.f32.mrf.mxu0
        %v1022 = vadd.f32 0.0, %v1021
        %1023 = vmatmul.f32.gmra.mxu0 %v984
        %v1024 = vpop.f32.mrf.mxu0
        %v1025 = vadd.f32 0.0, %v1024
        %1026 = vmatmul.f32.gmra.mxu0 %v987
        %v1027 = vpop.f32.mrf.mxu0
        %v1028 = vadd.f32 0.0, %v1027
        %1029 = vmatmul.f32.gmra.mxu0 %v990
        %v1030 = vpop.f32.mrf.mxu0
        %v1031 = vadd.f32 0.0, %v1030
        %1032 = vmatmul.f32.gmra.mxu0 %v993
        %v1033 = vpop.f32.mrf.mxu0
        %v1034 = vadd.f32 0.0, %v1033
        %1035 = vmatmul.f32.gmra.mxu0 %v996
        %v1036 = vpop.f32.mrf.mxu0
        %v1037 = vadd.f32 0.0, %v1036
        %1038 = vdwg.mxu0
        %1039 = vmatpush.msra.mxu0 0.0
        %1040 = vmatpush.msra.mxu0 0.0
        %1041 = vmatpush.msra.mxu0 0.0
        %1042 = vmatpush.msra.mxu0 0.0
        %1043 = vmatpush.msra.mxu0 0.0
        %1044 = vmatpush.msra.mxu0 0.0
        %1045 = vmatpush.msra.mxu0 0.0
        %1046 = vmatpush.msra.mxu0 0.0
        %1047 = vmatpush.msra.mxu0 %v736
        %1048 = vmatpush.msra.mxu0 %v734
        %1049 = vmatpush.msra.mxu0 %v732
        %1050 = vmatpush.msra.mxu0 %v730
        %1051 = vmatpush.msra.mxu0 %v728
        %1052 = vmatpush.msra.mxu0 %v726
        %1053 = vmatpush.msra.mxu0 %v724
        %1054 = vmatpush.msra.mxu0 %v722
        %1055 = vmatmul.f32.gmra.mxu0 %v975
        %v1056 = vpop.f32.mrf.mxu0
        %v1057 = vadd.f32 0.0, %v1056
        %1058 = vmatmul.f32.gmra.mxu0 %v978
        %v1059 = vpop.f32.mrf.mxu0
        %v1060 = vadd.f32 0.0, %v1059
        %1061 = vmatmul.f32.gmra.mxu0 %v981
        %v1062 = vpop.f32.mrf.mxu0
        %v1063 = vadd.f32 0.0, %v1062
        %1064 = vmatmul.f32.gmra.mxu0 %v984
        %v1065 = vpop.f32.mrf.mxu0
        %v1066 = vadd.f32 0.0, %v1065
        %1067 = vmatmul.f32.gmra.mxu0 %v987
        %v1068 = vpop.f32.mrf.mxu0
        %v1069 = vadd.f32 0.0, %v1068
        %1070 = vmatmul.f32.gmra.mxu0 %v990
        %v1071 = vpop.f32.mrf.mxu0
        %v1072 = vadd.f32 0.0, %v1071
        %1073 = vmatmul.f32.gmra.mxu0 %v993
        %v1074 = vpop.f32.mrf.mxu0
        %v1075 = vadd.f32 0.0, %v1074
        %1076 = vmatmul.f32.gmra.mxu0 %v996
        %v1077 = vpop.f32.mrf.mxu0
        %v1078 = vadd.f32 0.0, %v1077
        %1079 = vdwg.mxu0
        %v1080 = vadd.f32 %v902, %v1016
        %v1081 = vadd.f32 %v943, %v1057
        %v1082 = vadd.f32 %v905, %v1019
        %v1083 = vadd.f32 %v946, %v1060
        %v1084 = vadd.f32 %v908, %v1022
        %v1085 = vadd.f32 %v949, %v1063
        %v1086 = vadd.f32 %v911, %v1025
        %v1087 = vadd.f32 %v952, %v1066
        %v1088 = vadd.f32 %v914, %v1028
        %v1089 = vadd.f32 %v955, %v1069
        %v1090 = vadd.f32 %v917, %v1031
        %v1091 = vadd.f32 %v958, %v1072
        %v1092 = vadd.f32 %v920, %v1034
        %v1093 = vadd.f32 %v961, %v1075
        %v1094 = vadd.f32 %v923, %v1037
        %v1095 = vadd.f32 %v964, %v1078
        %v1096 = vmul.f32 %v1080, %v573
        %v1097 = vmul.f32 %v1081, %v574
        %v1098 = vmul.f32 %v1082, %v573
        %v1099 = vmul.f32 %v1083, %v574
        %v1100 = vmul.f32 %v1084, %v573
        %v1101 = vmul.f32 %v1085, %v574
        %v1102 = vmul.f32 %v1086, %v573
        %v1103 = vmul.f32 %v1087, %v574
        %v1104 = vmul.f32 %v1088, %v573
        %v1105 = vmul.f32 %v1089, %v574
        %v1106 = vmul.f32 %v1090, %v573
        %v1107 = vmul.f32 %v1091, %v574
        %v1108 = vmul.f32 %v1092, %v573
        %v1109 = vmul.f32 %v1093, %v574
        %v1110 = vmul.f32 %v1094, %v573
        %v1111 = vmul.f32 %v1095, %v574
        %v1112 = vld [vmem:[%s5] sm:$0xff]
        %v1113 = vld [vmem:[%s5 + $0x8] sm:$0xff]
        %v1114 = vld [vmem:[%s5 + $0x10] sm:$0xff]
        %v1115 = vld [vmem:[%s5 + $0x18] sm:$0xff]
        %v1116 = vld [vmem:[%s5 + $0x20] sm:$0xff]
        %v1117 = vld [vmem:[%s5 + $0x28] sm:$0xff]
        %v1118 = vld [vmem:[%s5 + $0x30] sm:$0xff]
        %v1119 = vld [vmem:[%s5 + $0x38] sm:$0xff]
        %1121 = vset.pattern.permute.xlu0 0
        %1122 = vperm.xlu0 %1121, %v1112
        %v1123 = vpop.permute.xlu0 %1122
        %1126 = vset.pattern.permute.xlu0 0
        %1127 = vperm.xlu0 %1126, %v1113
        %v1128 = vpop.permute.xlu0 %1127
        %1131 = vset.pattern.permute.xlu0 0
        %1132 = vperm.xlu0 %1131, %v1114
        %v1133 = vpop.permute.xlu0 %1132
        %1136 = vset.pattern.permute.xlu0 0
        %1137 = vperm.xlu0 %1136, %v1115
        %v1138 = vpop.permute.xlu0 %1137
        %1141 = vset.pattern.permute.xlu0 0
        %1142 = vperm.xlu0 %1141, %v1116
        %v1143 = vpop.permute.xlu0 %1142
        %1146 = vset.pattern.permute.xlu0 0
        %1147 = vperm.xlu0 %1146, %v1117
        %v1148 = vpop.permute.xlu0 %1147
        %1151 = vset.pattern.permute.xlu0 0
        %1152 = vperm.xlu0 %1151, %v1118
        %v1153 = vpop.permute.xlu0 %1152
        %1156 = vset.pattern.permute.xlu0 0
        %1157 = vperm.xlu0 %1156, %v1119
        %v1158 = vpop.permute.xlu0 %1157
        %v1160 = vadd.f32 %v1096, %v1123
        %v1161 = vadd.f32 %v1097, %v1123
        %v1162 = vadd.f32 %v1098, %v1128
        %v1163 = vadd.f32 %v1099, %v1128
        %v1164 = vadd.f32 %v1100, %v1133
        %v1165 = vadd.f32 %v1101, %v1133
        %v1166 = vadd.f32 %v1102, %v1138
        %v1167 = vadd.f32 %v1103, %v1138
        %v1168 = vadd.f32 %v1104, %v1143
        %v1169 = vadd.f32 %v1105, %v1143
        %v1170 = vadd.f32 %v1106, %v1148
        %v1171 = vadd.f32 %v1107, %v1148
        %v1172 = vadd.f32 %v1108, %v1153
        %v1173 = vadd.f32 %v1109, %v1153
        %v1174 = vadd.f32 %v1110, %v1158
        %v1175 = vadd.f32 %v1111, %v1158
        %v1176 = vmax.f32 %v1160, 0.0
        %v1177 = vmax.f32 %v1161, 0.0
        %v1178 = vmax.f32 %v1162, 0.0
        %v1179 = vmax.f32 %v1163, 0.0
        %v1180 = vmax.f32 %v1164, 0.0
        %v1181 = vmax.f32 %v1165, 0.0
        %v1182 = vmax.f32 %v1166, 0.0
        %v1183 = vmax.f32 %v1167, 0.0
        %v1184 = vmax.f32 %v1168, 0.0
        %v1185 = vmax.f32 %v1169, 0.0
        %v1186 = vmax.f32 %v1170, 0.0
        %v1187 = vmax.f32 %v1171, 0.0
        %v1188 = vmax.f32 %v1172, 0.0
        %v1189 = vmax.f32 %v1173, 0.0
        %v1190 = vmax.f32 %v1174, 0.0
        %v1191 = vmax.f32 %v1175, 0.0
        %1192 = vrot.lane.b32.xlu0 %v1176, 1
        %v1193 = vpop.permute.xlu0 %1192
        %1194 = vrot.lane.b32.xlu0 %v1178, 1
        %v1195 = vpop.permute.xlu0 %1194
        %1196 = vrot.lane.b32.xlu0 %v1180, 1
        %v1197 = vpop.permute.xlu0 %1196
        %1198 = vrot.lane.b32.xlu0 %v1182, 1
        %v1199 = vpop.permute.xlu0 %1198
        %1200 = vrot.lane.b32.xlu0 %v1184, 1
        %v1201 = vpop.permute.xlu0 %1200
        %1202 = vrot.lane.b32.xlu0 %v1186, 1
        %v1203 = vpop.permute.xlu0 %1202
        %1204 = vrot.lane.b32.xlu0 %v1188, 1
        %v1205 = vpop.permute.xlu0 %1204
        %1206 = vrot.lane.b32.xlu0 %v1190, 1
        %v1207 = vpop.permute.xlu0 %1206
        %1208 = vrot.lane.b32.xlu0 %v1177, 1
        %v1209 = vpop.permute.xlu0 %1208
        %1210 = vrot.lane.b32.xlu0 %v1179, 1
        %v1211 = vpop.permute.xlu0 %1210
        %1212 = vrot.lane.b32.xlu0 %v1181, 1
        %v1213 = vpop.permute.xlu0 %1212
        %1214 = vrot.lane.b32.xlu0 %v1183, 1
        %v1215 = vpop.permute.xlu0 %1214
        %1216 = vrot.lane.b32.xlu0 %v1185, 1
        %v1217 = vpop.permute.xlu0 %1216
        %1218 = vrot.lane.b32.xlu0 %v1187, 1
        %v1219 = vpop.permute.xlu0 %1218
        %1220 = vrot.lane.b32.xlu0 %v1189, 1
        %v1221 = vpop.permute.xlu0 %1220
        %1222 = vrot.lane.b32.xlu0 %v1191, 1
        %v1223 = vpop.permute.xlu0 %1222
        %v1224 = vsel %vm352, %v1193, %v1209
        %v1225 = vsel %vm352, %v1195, %v1211
        %v1226 = vsel %vm352, %v1197, %v1213
        %v1227 = vsel %vm352, %v1199, %v1215
        %v1228 = vsel %vm352, %v1201, %v1217
        %v1229 = vsel %vm352, %v1203, %v1219
        %v1230 = vsel %vm352, %v1205, %v1221
        %v1231 = vsel %vm352, %v1207, %v1223
        %v1232 = vsel %vm352, %v1209, %v1193
        %v1233 = vsel %vm352, %v1211, %v1195
        %v1234 = vsel %vm352, %v1213, %v1197
        %v1235 = vsel %vm352, %v1215, %v1199
        %v1236 = vsel %vm352, %v1217, %v1201
        %v1237 = vsel %vm352, %v1219, %v1203
        %v1238 = vsel %vm352, %v1221, %v1205
        %v1239 = vsel %vm352, %v1223, %v1207
        %v1240 = vmul.f32 %v1232, %v356
        %v1241 = vmul.f32 %v1224, %v357
        %v1242 = vmul.f32 %v1233, %v356
        %v1243 = vmul.f32 %v1225, %v357
        %v1244 = vmul.f32 %v1234, %v356
        %v1245 = vmul.f32 %v1226, %v357
        %v1246 = vmul.f32 %v1235, %v356
        %v1247 = vmul.f32 %v1227, %v357
        %v1248 = vmul.f32 %v1236, %v356
        %v1249 = vmul.f32 %v1228, %v357
        %v1250 = vmul.f32 %v1237, %v356
        %v1251 = vmul.f32 %v1229, %v357
        %v1252 = vmul.f32 %v1238, %v356
        %v1253 = vmul.f32 %v1230, %v357
        %v1254 = vmul.f32 %v1239, %v356
        %v1255 = vmul.f32 %v1231, %v357
        %1256 = vrot.lane.b32.xlu0 %v1176, 127
        %v1257 = vpop.permute.xlu0 %1256
        %1258 = vrot.lane.b32.xlu0 %v1178, 127
        %v1259 = vpop.permute.xlu0 %1258
        %1260 = vrot.lane.b32.xlu0 %v1180, 127
        %v1261 = vpop.permute.xlu0 %1260
        %1262 = vrot.lane.b32.xlu0 %v1182, 127
        %v1263 = vpop.permute.xlu0 %1262
        %1264 = vrot.lane.b32.xlu0 %v1184, 127
        %v1265 = vpop.permute.xlu0 %1264
        %1266 = vrot.lane.b32.xlu0 %v1186, 127
        %v1267 = vpop.permute.xlu0 %1266
        %1268 = vrot.lane.b32.xlu0 %v1188, 127
        %v1269 = vpop.permute.xlu0 %1268
        %1270 = vrot.lane.b32.xlu0 %v1190, 127
        %v1271 = vpop.permute.xlu0 %1270
        %1272 = vrot.lane.b32.xlu0 %v1177, 127
        %v1273 = vpop.permute.xlu0 %1272
        %1274 = vrot.lane.b32.xlu0 %v1179, 127
        %v1275 = vpop.permute.xlu0 %1274
        %1276 = vrot.lane.b32.xlu0 %v1181, 127
        %v1277 = vpop.permute.xlu0 %1276
        %1278 = vrot.lane.b32.xlu0 %v1183, 127
        %v1279 = vpop.permute.xlu0 %1278
        %1280 = vrot.lane.b32.xlu0 %v1185, 127
        %v1281 = vpop.permute.xlu0 %1280
        %1282 = vrot.lane.b32.xlu0 %v1187, 127
        %v1283 = vpop.permute.xlu0 %1282
        %1284 = vrot.lane.b32.xlu0 %v1189, 127
        %v1285 = vpop.permute.xlu0 %1284
        %1286 = vrot.lane.b32.xlu0 %v1191, 127
        %v1287 = vpop.permute.xlu0 %1286
        %v1288 = vsel %vm366, %v1257, %v1273
        %v1289 = vsel %vm366, %v1259, %v1275
        %v1290 = vsel %vm366, %v1261, %v1277
        %v1291 = vsel %vm366, %v1263, %v1279
        %v1292 = vsel %vm366, %v1265, %v1281
        %v1293 = vsel %vm366, %v1267, %v1283
        %v1294 = vsel %vm366, %v1269, %v1285
        %v1295 = vsel %vm366, %v1271, %v1287
        %v1296 = vsel %vm366, %v1273, %v1257
        %v1297 = vsel %vm366, %v1275, %v1259
        %v1298 = vsel %vm366, %v1277, %v1261
        %v1299 = vsel %vm366, %v1279, %v1263
        %v1300 = vsel %vm366, %v1281, %v1265
        %v1301 = vsel %vm366, %v1283, %v1267
        %v1302 = vsel %vm366, %v1285, %v1269
        %v1303 = vsel %vm366, %v1287, %v1271
        %v1304 = vmul.f32 %v1288, %v370
        %v1305 = vmul.f32 %v1296, %v371
        %v1306 = vmul.f32 %v1289, %v370
        %v1307 = vmul.f32 %v1297, %v371
        %v1308 = vmul.f32 %v1290, %v370
        %v1309 = vmul.f32 %v1298, %v371
        %v1310 = vmul.f32 %v1291, %v370
        %v1311 = vmul.f32 %v1299, %v371
        %v1312 = vmul.f32 %v1292, %v370
        %v1313 = vmul.f32 %v1300, %v371
        %v1314 = vmul.f32 %v1293, %v370
        %v1315 = vmul.f32 %v1301, %v371
        %v1316 = vmul.f32 %v1294, %v370
        %v1317 = vmul.f32 %v1302, %v371
        %v1318 = vmul.f32 %v1295, %v370
        %v1319 = vmul.f32 %v1303, %v371
        %s1320 = scalar_lea.vmem %s2, 64
        %v1321 = vld [vmem:[%s1320] sm:$0xff]
        %v1322 = vld [vmem:[%s1320 + $0x8] sm:$0xff]
        %v1323 = vld [vmem:[%s1320 + $0x10] sm:$0xff]
        %v1324 = vld [vmem:[%s1320 + $0x18] sm:$0xff]
        %v1325 = vld [vmem:[%s1320 + $0x20] sm:$0xff]
        %v1326 = vld [vmem:[%s1320 + $0x28] sm:$0xff]
        %v1327 = vld [vmem:[%s1320 + $0x30] sm:$0xff]
        %v1328 = vld [vmem:[%s1320 + $0x38] sm:$0xff]
        %s1329 = scalar_lea.vmem [#allocation2], 64
        %v1330 = vld [vmem:[%s1329] sm:$0xff]
        %v1331 = vld [vmem:[%s1329 + $0x8] sm:$0xff]
        %v1332 = vld [vmem:[%s1329 + $0x10] sm:$0xff]
        %v1333 = vld [vmem:[%s1329 + $0x18] sm:$0xff]
        %v1334 = vld [vmem:[%s1329 + $0x20] sm:$0xff]
        %v1335 = vld [vmem:[%s1329 + $0x28] sm:$0xff]
        %v1336 = vld [vmem:[%s1329 + $0x30] sm:$0xff]
        %v1337 = vld [vmem:[%s1329 + $0x38] sm:$0xff]
        %v1339 = vsel %vm753, %v1330, 0
        %v1342 = vsel %vm753, %v1331, 0
        %v1345 = vsel %vm753, %v1332, 0
        %v1348 = vsel %vm753, %v1333, 0
        %v1351 = vsel %vm753, %v1334, 0
        %v1354 = vsel %vm753, %v1335, 0
        %v1357 = vsel %vm753, %v1336, 0
        %v1360 = vsel %vm753, %v1337, 0
        %1362 = vmatpush.msra.mxu0 0.0
        %1363 = vmatpush.msra.mxu0 0.0
        %1364 = vmatpush.msra.mxu0 0.0
        %1365 = vmatpush.msra.mxu0 0.0
        %1366 = vmatpush.msra.mxu0 0.0
        %1367 = vmatpush.msra.mxu0 0.0
        %1368 = vmatpush.msra.mxu0 0.0
        %1369 = vmatpush.msra.mxu0 0.0
        %1370 = vmatpush.msra.mxu0 %v1190
        %1371 = vmatpush.msra.mxu0 %v1188
        %1372 = vmatpush.msra.mxu0 %v1186
        %1373 = vmatpush.msra.mxu0 %v1184
        %1374 = vmatpush.msra.mxu0 %v1182
        %1375 = vmatpush.msra.mxu0 %v1180
        %1376 = vmatpush.msra.mxu0 %v1178
        %1377 = vmatpush.msra.mxu0 %v1176
        %1378 = vmatmul.f32.gmra.mxu0 %v1339
        %v1379 = vpop.f32.mrf.mxu0
        %v1380 = vadd.f32 0.0, %v1379
        %1381 = vmatmul.f32.gmra.mxu0 %v1342
        %v1382 = vpop.f32.mrf.mxu0
        %v1383 = vadd.f32 0.0, %v1382
        %1384 = vmatmul.f32.gmra.mxu0 %v1345
        %v1385 = vpop.f32.mrf.mxu0
        %v1386 = vadd.f32 0.0, %v1385
        %1387 = vmatmul.f32.gmra.mxu0 %v1348
        %v1388 = vpop.f32.mrf.mxu0
        %v1389 = vadd.f32 0.0, %v1388
        %1390 = vmatmul.f32.gmra.mxu0 %v1351
        %v1391 = vpop.f32.mrf.mxu0
        %v1392 = vadd.f32 0.0, %v1391
        %1393 = vmatmul.f32.gmra.mxu0 %v1354
        %v1394 = vpop.f32.mrf.mxu0
        %v1395 = vadd.f32 0.0, %v1394
        %1396 = vmatmul.f32.gmra.mxu0 %v1357
        %v1397 = vpop.f32.mrf.mxu0
        %v1398 = vadd.f32 0.0, %v1397
        %1399 = vmatmul.f32.gmra.mxu0 %v1360
        %v1400 = vpop.f32.mrf.mxu0
        %v1401 = vadd.f32 0.0, %v1400
        %1402 = vdwg.mxu0
        %1403 = vmatpush.msra.mxu0 0.0
        %1404 = vmatpush.msra.mxu0 0.0
        %1405 = vmatpush.msra.mxu0 0.0
        %1406 = vmatpush.msra.mxu0 0.0
        %1407 = vmatpush.msra.mxu0 0.0
        %1408 = vmatpush.msra.mxu0 0.0
        %1409 = vmatpush.msra.mxu0 0.0
        %1410 = vmatpush.msra.mxu0 0.0
        %1411 = vmatpush.msra.mxu0 %v1191
        %1412 = vmatpush.msra.mxu0 %v1189
        %1413 = vmatpush.msra.mxu0 %v1187
        %1414 = vmatpush.msra.mxu0 %v1185
        %1415 = vmatpush.msra.mxu0 %v1183
        %1416 = vmatpush.msra.mxu0 %v1181
        %1417 = vmatpush.msra.mxu0 %v1179
        %1418 = vmatpush.msra.mxu0 %v1177
        %1419 = vmatmul.f32.gmra.mxu0 %v1339
        %v1420 = vpop.f32.mrf.mxu0
        %v1421 = vadd.f32 0.0, %v1420
        %1422 = vmatmul.f32.gmra.mxu0 %v1342
        %v1423 = vpop.f32.mrf.mxu0
        %v1424 = vadd.f32 0.0, %v1423
        %1425 = vmatmul.f32.gmra.mxu0 %v1345
        %v1426 = vpop.f32.mrf.mxu0
        %v1427 = vadd.f32 0.0, %v1426
        %1428 = vmatmul.f32.gmra.mxu0 %v1348
        %v1429 = vpop.f32.mrf.mxu0
        %v1430 = vadd.f32 0.0, %v1429
        %1431 = vmatmul.f32.gmra.mxu0 %v1351
        %v1432 = vpop.f32.mrf.mxu0
        %v1433 = vadd.f32 0.0, %v1432
        %1434 = vmatmul.f32.gmra.mxu0 %v1354
        %v1435 = vpop.f32.mrf.mxu0
        %v1436 = vadd.f32 0.0, %v1435
        %1437 = vmatmul.f32.gmra.mxu0 %v1357
        %v1438 = vpop.f32.mrf.mxu0
        %v1439 = vadd.f32 0.0, %v1438
        %1440 = vmatmul.f32.gmra.mxu0 %v1360
        %v1441 = vpop.f32.mrf.mxu0
        %v1442 = vadd.f32 0.0, %v1441
        %1443 = vdwg.mxu0
        %v1445 = vsel %vm753, %v1321, 0
        %v1448 = vsel %vm753, %v1322, 0
        %v1451 = vsel %vm753, %v1323, 0
        %v1454 = vsel %vm753, %v1324, 0
        %v1457 = vsel %vm753, %v1325, 0
        %v1460 = vsel %vm753, %v1326, 0
        %v1463 = vsel %vm753, %v1327, 0
        %v1466 = vsel %vm753, %v1328, 0
        %1468 = vmatpush.msra.mxu0 0.0
        %1469 = vmatpush.msra.mxu0 0.0
        %1470 = vmatpush.msra.mxu0 0.0
        %1471 = vmatpush.msra.mxu0 0.0
        %1472 = vmatpush.msra.mxu0 0.0
        %1473 = vmatpush.msra.mxu0 0.0
        %1474 = vmatpush.msra.mxu0 0.0
        %1475 = vmatpush.msra.mxu0 0.0
        %1476 = vmatpush.msra.mxu0 %v1254
        %1477 = vmatpush.msra.mxu0 %v1252
        %1478 = vmatpush.msra.mxu0 %v1250
        %1479 = vmatpush.msra.mxu0 %v1248
        %1480 = vmatpush.msra.mxu0 %v1246
        %1481 = vmatpush.msra.mxu0 %v1244
        %1482 = vmatpush.msra.mxu0 %v1242
        %1483 = vmatpush.msra.mxu0 %v1240
        %1484 = vmatmul.f32.gmra.mxu0 %v1445
        %v1485 = vpop.f32.mrf.mxu0
        %v1486 = vadd.f32 %v1380, %v1485
        %1487 = vmatmul.f32.gmra.mxu0 %v1448
        %v1488 = vpop.f32.mrf.mxu0
        %v1489 = vadd.f32 %v1383, %v1488
        %1490 = vmatmul.f32.gmra.mxu0 %v1451
        %v1491 = vpop.f32.mrf.mxu0
        %v1492 = vadd.f32 %v1386, %v1491
        %1493 = vmatmul.f32.gmra.mxu0 %v1454
        %v1494 = vpop.f32.mrf.mxu0
        %v1495 = vadd.f32 %v1389, %v1494
        %1496 = vmatmul.f32.gmra.mxu0 %v1457
        %v1497 = vpop.f32.mrf.mxu0
        %v1498 = vadd.f32 %v1392, %v1497
        %1499 = vmatmul.f32.gmra.mxu0 %v1460
        %v1500 = vpop.f32.mrf.mxu0
        %v1501 = vadd.f32 %v1395, %v1500
        %1502 = vmatmul.f32.gmra.mxu0 %v1463
        %v1503 = vpop.f32.mrf.mxu0
        %v1504 = vadd.f32 %v1398, %v1503
        %1505 = vmatmul.f32.gmra.mxu0 %v1466
        %v1506 = vpop.f32.mrf.mxu0
        %v1507 = vadd.f32 %v1401, %v1506
        %1508 = vdwg.mxu0
        %1509 = vmatpush.msra.mxu0 0.0
        %1510 = vmatpush.msra.mxu0 0.0
        %1511 = vmatpush.msra.mxu0 0.0
        %1512 = vmatpush.msra.mxu0 0.0
        %1513 = vmatpush.msra.mxu0 0.0
        %1514 = vmatpush.msra.mxu0 0.0
        %1515 = vmatpush.msra.mxu0 0.0
        %1516 = vmatpush.msra.mxu0 0.0
        %1517 = vmatpush.msra.mxu0 %v1255
        %1518 = vmatpush.msra.mxu0 %v1253
        %1519 = vmatpush.msra.mxu0 %v1251
        %1520 = vmatpush.msra.mxu0 %v1249
        %1521 = vmatpush.msra.mxu0 %v1247
        %1522 = vmatpush.msra.mxu0 %v1245
        %1523 = vmatpush.msra.mxu0 %v1243
        %1524 = vmatpush.msra.mxu0 %v1241
        %1525 = vmatmul.f32.gmra.mxu0 %v1445
        %v1526 = vpop.f32.mrf.mxu0
        %v1527 = vadd.f32 %v1421, %v1526
        %1528 = vmatmul.f32.gmra.mxu0 %v1448
        %v1529 = vpop.f32.mrf.mxu0
        %v1530 = vadd.f32 %v1424, %v1529
        %1531 = vmatmul.f32.gmra.mxu0 %v1451
        %v1532 = vpop.f32.mrf.mxu0
        %v1533 = vadd.f32 %v1427, %v1532
        %1534 = vmatmul.f32.gmra.mxu0 %v1454
        %v1535 = vpop.f32.mrf.mxu0
        %v1536 = vadd.f32 %v1430, %v1535
        %1537 = vmatmul.f32.gmra.mxu0 %v1457
        %v1538 = vpop.f32.mrf.mxu0
        %v1539 = vadd.f32 %v1433, %v1538
        %1540 = vmatmul.f32.gmra.mxu0 %v1460
        %v1541 = vpop.f32.mrf.mxu0
        %v1542 = vadd.f32 %v1436, %v1541
        %1543 = vmatmul.f32.gmra.mxu0 %v1463
        %v1544 = vpop.f32.mrf.mxu0
        %v1545 = vadd.f32 %v1439, %v1544
        %1546 = vmatmul.f32.gmra.mxu0 %v1466
        %v1547 = vpop.f32.mrf.mxu0
        %v1548 = vadd.f32 %v1442, %v1547
        %1549 = vdwg.mxu0
        %s1550 = scalar_lea.vmem [#allocation5], 64
        %v1551 = vld [vmem:[%s1550] sm:$0xff]
        %v1552 = vld [vmem:[%s1550 + $0x8] sm:$0xff]
        %v1553 = vld [vmem:[%s1550 + $0x10] sm:$0xff]
        %v1554 = vld [vmem:[%s1550 + $0x18] sm:$0xff]
        %v1555 = vld [vmem:[%s1550 + $0x20] sm:$0xff]
        %v1556 = vld [vmem:[%s1550 + $0x28] sm:$0xff]
        %v1557 = vld [vmem:[%s1550 + $0x30] sm:$0xff]
        %v1558 = vld [vmem:[%s1550 + $0x38] sm:$0xff]
        %v1560 = vsel %vm753, %v1551, 0
        %v1563 = vsel %vm753, %v1552, 0
        %v1566 = vsel %vm753, %v1553, 0
        %v1569 = vsel %vm753, %v1554, 0
        %v1572 = vsel %vm753, %v1555, 0
        %v1575 = vsel %vm753, %v1556, 0
        %v1578 = vsel %vm753, %v1557, 0
        %v1581 = vsel %vm753, %v1558, 0
        %1583 = vmatpush.msra.mxu0 0.0
        %1584 = vmatpush.msra.mxu0 0.0
        %1585 = vmatpush.msra.mxu0 0.0
        %1586 = vmatpush.msra.mxu0 0.0
        %1587 = vmatpush.msra.mxu0 0.0
        %1588 = vmatpush.msra.mxu0 0.0
        %1589 = vmatpush.msra.mxu0 0.0
        %1590 = vmatpush.msra.mxu0 0.0
        %1591 = vmatpush.msra.mxu0 %v1318
        %1592 = vmatpush.msra.mxu0 %v1316
        %1593 = vmatpush.msra.mxu0 %v1314
        %1594 = vmatpush.msra.mxu0 %v1312
        %1595 = vmatpush.msra.mxu0 %v1310
        %1596 = vmatpush.msra.mxu0 %v1308
        %1597 = vmatpush.msra.mxu0 %v1306
        %1598 = vmatpush.msra.mxu0 %v1304
        %1599 = vmatmul.f32.gmra.mxu0 %v1560
        %v1600 = vpop.f32.mrf.mxu0
        %v1601 = vadd.f32 0.0, %v1600
        %1602 = vmatmul.f32.gmra.mxu0 %v1563
        %v1603 = vpop.f32.mrf.mxu0
        %v1604 = vadd.f32 0.0, %v1603
        %1605 = vmatmul.f32.gmra.mxu0 %v1566
        %v1606 = vpop.f32.mrf.mxu0
        %v1607 = vadd.f32 0.0, %v1606
        %1608 = vmatmul.f32.gmra.mxu0 %v1569
        %v1609 = vpop.f32.mrf.mxu0
        %v1610 = vadd.f32 0.0, %v1609
        %1611 = vmatmul.f32.gmra.mxu0 %v1572
        %v1612 = vpop.f32.mrf.mxu0
        %v1613 = vadd.f32 0.0, %v1612
        %1614 = vmatmul.f32.gmra.mxu0 %v1575
        %v1615 = vpop.f32.mrf.mxu0
        %v1616 = vadd.f32 0.0, %v1615
        %1617 = vmatmul.f32.gmra.mxu0 %v1578
        %v1618 = vpop.f32.mrf.mxu0
        %v1619 = vadd.f32 0.0, %v1618
        %1620 = vmatmul.f32.gmra.mxu0 %v1581
        %v1621 = vpop.f32.mrf.mxu0
        %v1622 = vadd.f32 0.0, %v1621
        %1623 = vdwg.mxu0
        %1624 = vmatpush.msra.mxu0 0.0
        %1625 = vmatpush.msra.mxu0 0.0
        %1626 = vmatpush.msra.mxu0 0.0
        %1627 = vmatpush.msra.mxu0 0.0
        %1628 = vmatpush.msra.mxu0 0.0
        %1629 = vmatpush.msra.mxu0 0.0
        %1630 = vmatpush.msra.mxu0 0.0
        %1631 = vmatpush.msra.mxu0 0.0
        %1632 = vmatpush.msra.mxu0 %v1319
        %1633 = vmatpush.msra.mxu0 %v1317
        %1634 = vmatpush.msra.mxu0 %v1315
        %1635 = vmatpush.msra.mxu0 %v1313
        %1636 = vmatpush.msra.mxu0 %v1311
        %1637 = vmatpush.msra.mxu0 %v1309
        %1638 = vmatpush.msra.mxu0 %v1307
        %1639 = vmatpush.msra.mxu0 %v1305
        %1640 = vmatmul.f32.gmra.mxu0 %v1560
        %v1641 = vpop.f32.mrf.mxu0
        %v1642 = vadd.f32 0.0, %v1641
        %1643 = vmatmul.f32.gmra.mxu0 %v1563
        %v1644 = vpop.f32.mrf.mxu0
        %v1645 = vadd.f32 0.0, %v1644
        %1646 = vmatmul.f32.gmra.mxu0 %v1566
        %v1647 = vpop.f32.mrf.mxu0
        %v1648 = vadd.f32 0.0, %v1647
        %1649 = vmatmul.f32.gmra.mxu0 %v1569
        %v1650 = vpop.f32.mrf.mxu0
        %v1651 = vadd.f32 0.0, %v1650
        %1652 = vmatmul.f32.gmra.mxu0 %v1572
        %v1653 = vpop.f32.mrf.mxu0
        %v1654 = vadd.f32 0.0, %v1653
        %1655 = vmatmul.f32.gmra.mxu0 %v1575
        %v1656 = vpop.f32.mrf.mxu0
        %v1657 = vadd.f32 0.0, %v1656
        %1658 = vmatmul.f32.gmra.mxu0 %v1578
        %v1659 = vpop.f32.mrf.mxu0
        %v1660 = vadd.f32 0.0, %v1659
        %1661 = vmatmul.f32.gmra.mxu0 %v1581
        %v1662 = vpop.f32.mrf.mxu0
        %v1663 = vadd.f32 0.0, %v1662
        %1664 = vdwg.mxu0
        %v1665 = vadd.f32 %v1486, %v1601
        %v1666 = vadd.f32 %v1527, %v1642
        %v1667 = vadd.f32 %v1489, %v1604
        %v1668 = vadd.f32 %v1530, %v1645
        %v1669 = vadd.f32 %v1492, %v1607
        %v1670 = vadd.f32 %v1533, %v1648
        %v1671 = vadd.f32 %v1495, %v1610
        %v1672 = vadd.f32 %v1536, %v1651
        %v1673 = vadd.f32 %v1498, %v1613
        %v1674 = vadd.f32 %v1539, %v1654
        %v1675 = vadd.f32 %v1501, %v1616
        %v1676 = vadd.f32 %v1542, %v1657
        %v1677 = vadd.f32 %v1504, %v1619
        %v1678 = vadd.f32 %v1545, %v1660
        %v1679 = vadd.f32 %v1507, %v1622
        %v1680 = vadd.f32 %v1548, %v1663
        %v1681 = vmul.f32 %v1665, %v573
        %v1682 = vmul.f32 %v1666, %v574
        %v1683 = vmul.f32 %v1667, %v573
        %v1684 = vmul.f32 %v1668, %v574
        %v1685 = vmul.f32 %v1669, %v573
        %v1686 = vmul.f32 %v1670, %v574
        %v1687 = vmul.f32 %v1671, %v573
        %v1688 = vmul.f32 %v1672, %v574
        %v1689 = vmul.f32 %v1673, %v573
        %v1690 = vmul.f32 %v1674, %v574
        %v1691 = vmul.f32 %v1675, %v573
        %v1692 = vmul.f32 %v1676, %v574
        %v1693 = vmul.f32 %v1677, %v573
        %v1694 = vmul.f32 %v1678, %v574
        %v1695 = vmul.f32 %v1679, %v573
        %v1696 = vmul.f32 %v1680, %v574
        %s1697 = scalar_lea.vmem %s5, 64
        %v1698 = vld [vmem:[%s1697] sm:$0xff]
        %v1699 = vld [vmem:[%s1697 + $0x8] sm:$0xff]
        %v1700 = vld [vmem:[%s1697 + $0x10] sm:$0xff]
        %v1701 = vld [vmem:[%s1697 + $0x18] sm:$0xff]
        %v1702 = vld [vmem:[%s1697 + $0x20] sm:$0xff]
        %v1703 = vld [vmem:[%s1697 + $0x28] sm:$0xff]
        %v1704 = vld [vmem:[%s1697 + $0x30] sm:$0xff]
        %v1705 = vld [vmem:[%s1697 + $0x38] sm:$0xff]
        %1707 = vset.pattern.permute.xlu0 0
        %1708 = vperm.xlu0 %1707, %v1698
        %v1709 = vpop.permute.xlu0 %1708
        %1712 = vset.pattern.permute.xlu0 0
        %1713 = vperm.xlu0 %1712, %v1699
        %v1714 = vpop.permute.xlu0 %1713
        %1717 = vset.pattern.permute.xlu0 0
        %1718 = vperm.xlu0 %1717, %v1700
        %v1719 = vpop.permute.xlu0 %1718
        %1722 = vset.pattern.permute.xlu0 0
        %1723 = vperm.xlu0 %1722, %v1701
        %v1724 = vpop.permute.xlu0 %1723
        %1727 = vset.pattern.permute.xlu0 0
        %1728 = vperm.xlu0 %1727, %v1702
        %v1729 = vpop.permute.xlu0 %1728
        %1732 = vset.pattern.permute.xlu0 0
        %1733 = vperm.xlu0 %1732, %v1703
        %v1734 = vpop.permute.xlu0 %1733
        %1737 = vset.pattern.permute.xlu0 0
        %1738 = vperm.xlu0 %1737, %v1704
        %v1739 = vpop.permute.xlu0 %1738
        %1742 = vset.pattern.permute.xlu0 0
        %1743 = vperm.xlu0 %1742, %v1705
        %v1744 = vpop.permute.xlu0 %1743
        %v1746 = vadd.f32 %v1681, %v1709
        %v1747 = vadd.f32 %v1682, %v1709
        %v1748 = vadd.f32 %v1683, %v1714
        %v1749 = vadd.f32 %v1684, %v1714
        %v1750 = vadd.f32 %v1685, %v1719
        %v1751 = vadd.f32 %v1686, %v1719
        %v1752 = vadd.f32 %v1687, %v1724
        %v1753 = vadd.f32 %v1688, %v1724
        %v1754 = vadd.f32 %v1689, %v1729
        %v1755 = vadd.f32 %v1690, %v1729
        %v1756 = vadd.f32 %v1691, %v1734
        %v1757 = vadd.f32 %v1692, %v1734
        %v1758 = vadd.f32 %v1693, %v1739
        %v1759 = vadd.f32 %v1694, %v1739
        %v1760 = vadd.f32 %v1695, %v1744
        %v1761 = vadd.f32 %v1696, %v1744
        %v1762 = vmax.f32 %v1746, 0.0
        %v1763 = vmax.f32 %v1747, 0.0
        %v1764 = vmax.f32 %v1748, 0.0
        %v1765 = vmax.f32 %v1749, 0.0
        %v1766 = vmax.f32 %v1750, 0.0
        %v1767 = vmax.f32 %v1751, 0.0
        %v1768 = vmax.f32 %v1752, 0.0
        %v1769 = vmax.f32 %v1753, 0.0
        %v1770 = vmax.f32 %v1754, 0.0
        %v1771 = vmax.f32 %v1755, 0.0
        %v1772 = vmax.f32 %v1756, 0.0
        %v1773 = vmax.f32 %v1757, 0.0
        %v1774 = vmax.f32 %v1758, 0.0
        %v1775 = vmax.f32 %v1759, 0.0
        %v1776 = vmax.f32 %v1760, 0.0
        %v1777 = vmax.f32 %v1761, 0.0
        %1778 = vrot.lane.b32.xlu0 %v1762, 1
        %v1779 = vpop.permute.xlu0 %1778
        %1780 = vrot.lane.b32.xlu0 %v1764, 1
        %v1781 = vpop.permute.xlu0 %1780
        %1782 = vrot.lane.b32.xlu0 %v1766, 1
        %v1783 = vpop.permute.xlu0 %1782
        %1784 = vrot.lane.b32.xlu0 %v1768, 1
        %v1785 = vpop.permute.xlu0 %1784
        %1786 = vrot.lane.b32.xlu0 %v1770, 1
        %v1787 = vpop.permute.xlu0 %1786
        %1788 = vrot.lane.b32.xlu0 %v1772, 1
        %v1789 = vpop.permute.xlu0 %1788
        %1790 = vrot.lane.b32.xlu0 %v1774, 1
        %v1791 = vpop.permute.xlu0 %1790
        %1792 = vrot.lane.b32.xlu0 %v1776, 1
        %v1793 = vpop.permute.xlu0 %1792
        %1794 = vrot.lane.b32.xlu0 %v1763, 1
        %v1795 = vpop.permute.xlu0 %1794
        %1796 = vrot.lane.b32.xlu0 %v1765, 1
        %v1797 = vpop.permute.xlu0 %1796
        %1798 = vrot.lane.b32.xlu0 %v1767, 1
        %v1799 = vpop.permute.xlu0 %1798
        %1800 = vrot.lane.b32.xlu0 %v1769, 1
        %v1801 = vpop.permute.xlu0 %1800
        %1802 = vrot.lane.b32.xlu0 %v1771, 1
        %v1803 = vpop.permute.xlu0 %1802
        %1804 = vrot.lane.b32.xlu0 %v1773, 1
        %v1805 = vpop.permute.xlu0 %1804
        %1806 = vrot.lane.b32.xlu0 %v1775, 1
        %v1807 = vpop.permute.xlu0 %1806
        %1808 = vrot.lane.b32.xlu0 %v1777, 1
        %v1809 = vpop.permute.xlu0 %1808
        %v1810 = vsel %vm352, %v1779, %v1795
        %v1811 = vsel %vm352, %v1781, %v1797
        %v1812 = vsel %vm352, %v1783, %v1799
        %v1813 = vsel %vm352, %v1785, %v1801
        %v1814 = vsel %vm352, %v1787, %v1803
        %v1815 = vsel %vm352, %v1789, %v1805
        %v1816 = vsel %vm352, %v1791, %v1807
        %v1817 = vsel %vm352, %v1793, %v1809
        %v1818 = vsel %vm352, %v1795, %v1779
        %v1819 = vsel %vm352, %v1797, %v1781
        %v1820 = vsel %vm352, %v1799, %v1783
        %v1821 = vsel %vm352, %v1801, %v1785
        %v1822 = vsel %vm352, %v1803, %v1787
        %v1823 = vsel %vm352, %v1805, %v1789
        %v1824 = vsel %vm352, %v1807, %v1791
        %v1825 = vsel %vm352, %v1809, %v1793
        %v1826 = vmul.f32 %v1818, %v356
        %v1827 = vmul.f32 %v1810, %v357
        %v1828 = vmul.f32 %v1819, %v356
        %v1829 = vmul.f32 %v1811, %v357
        %v1830 = vmul.f32 %v1820, %v356
        %v1831 = vmul.f32 %v1812, %v357
        %v1832 = vmul.f32 %v1821, %v356
        %v1833 = vmul.f32 %v1813, %v357
        %v1834 = vmul.f32 %v1822, %v356
        %v1835 = vmul.f32 %v1814, %v357
        %v1836 = vmul.f32 %v1823, %v356
        %v1837 = vmul.f32 %v1815, %v357
        %v1838 = vmul.f32 %v1824, %v356
        %v1839 = vmul.f32 %v1816, %v357
        %v1840 = vmul.f32 %v1825, %v356
        %v1841 = vmul.f32 %v1817, %v357
        %1842 = vrot.lane.b32.xlu0 %v1762, 127
        %v1843 = vpop.permute.xlu0 %1842
        %1844 = vrot.lane.b32.xlu0 %v1764, 127
        %v1845 = vpop.permute.xlu0 %1844
        %1846 = vrot.lane.b32.xlu0 %v1766, 127
        %v1847 = vpop.permute.xlu0 %1846
        %1848 = vrot.lane.b32.xlu0 %v1768, 127
        %v1849 = vpop.permute.xlu0 %1848
        %1850 = vrot.lane.b32.xlu0 %v1770, 127
        %v1851 = vpop.permute.xlu0 %1850
        %1852 = vrot.lane.b32.xlu0 %v1772, 127
        %v1853 = vpop.permute.xlu0 %1852
        %1854 = vrot.lane.b32.xlu0 %v1774, 127
        %v1855 = vpop.permute.xlu0 %1854
        %1856 = vrot.lane.b32.xlu0 %v1776, 127
        %v1857 = vpop.permute.xlu0 %1856
        %1858 = vrot.lane.b32.xlu0 %v1763, 127
        %v1859 = vpop.permute.xlu0 %1858
        %1860 = vrot.lane.b32.xlu0 %v1765, 127
        %v1861 = vpop.permute.xlu0 %1860
        %1862 = vrot.lane.b32.xlu0 %v1767, 127
        %v1863 = vpop.permute.xlu0 %1862
        %1864 = vrot.lane.b32.xlu0 %v1769, 127
        %v1865 = vpop.permute.xlu0 %1864
        %1866 = vrot.lane.b32.xlu0 %v1771, 127
        %v1867 = vpop.permute.xlu0 %1866
        %1868 = vrot.lane.b32.xlu0 %v1773, 127
        %v1869 = vpop.permute.xlu0 %1868
        %1870 = vrot.lane.b32.xlu0 %v1775, 127
        %v1871 = vpop.permute.xlu0 %1870
        %1872 = vrot.lane.b32.xlu0 %v1777, 127
        %v1873 = vpop.permute.xlu0 %1872
        %v1874 = vsel %vm366, %v1843, %v1859
        %v1875 = vsel %vm366, %v1845, %v1861
        %v1876 = vsel %vm366, %v1847, %v1863
        %v1877 = vsel %vm366, %v1849, %v1865
        %v1878 = vsel %vm366, %v1851, %v1867
        %v1879 = vsel %vm366, %v1853, %v1869
        %v1880 = vsel %vm366, %v1855, %v1871
        %v1881 = vsel %vm366, %v1857, %v1873
        %v1882 = vsel %vm366, %v1859, %v1843
        %v1883 = vsel %vm366, %v1861, %v1845
        %v1884 = vsel %vm366, %v1863, %v1847
        %v1885 = vsel %vm366, %v1865, %v1849
        %v1886 = vsel %vm366, %v1867, %v1851
        %v1887 = vsel %vm366, %v1869, %v1853
        %v1888 = vsel %vm366, %v1871, %v1855
        %v1889 = vsel %vm366, %v1873, %v1857
        %v1890 = vmul.f32 %v1874, %v370
        %v1891 = vmul.f32 %v1882, %v371
        %v1892 = vmul.f32 %v1875, %v370
        %v1893 = vmul.f32 %v1883, %v371
        %v1894 = vmul.f32 %v1876, %v370
        %v1895 = vmul.f32 %v1884, %v371
        %v1896 = vmul.f32 %v1877, %v370
        %v1897 = vmul.f32 %v1885, %v371
        %v1898 = vmul.f32 %v1878, %v370
        %v1899 = vmul.f32 %v1886, %v371
        %v1900 = vmul.f32 %v1879, %v370
        %v1901 = vmul.f32 %v1887, %v371
        %v1902 = vmul.f32 %v1880, %v370
        %v1903 = vmul.f32 %v1888, %v371
        %v1904 = vmul.f32 %v1881, %v370
        %v1905 = vmul.f32 %v1889, %v371
        %s1906 = scalar_lea.vmem %s2, 128
        %v1907 = vld [vmem:[%s1906] sm:$0xff]
        %v1908 = vld [vmem:[%s1906 + $0x8] sm:$0xff]
        %v1909 = vld [vmem:[%s1906 + $0x10] sm:$0xff]
        %v1910 = vld [vmem:[%s1906 + $0x18] sm:$0xff]
        %v1911 = vld [vmem:[%s1906 + $0x20] sm:$0xff]
        %v1912 = vld [vmem:[%s1906 + $0x28] sm:$0xff]
        %v1913 = vld [vmem:[%s1906 + $0x30] sm:$0xff]
        %v1914 = vld [vmem:[%s1906 + $0x38] sm:$0xff]
        %s1915 = scalar_lea.vmem [#allocation2], 128
        %v1916 = vld [vmem:[%s1915] sm:$0xff]
        %v1917 = vld [vmem:[%s1915 + $0x8] sm:$0xff]
        %v1918 = vld [vmem:[%s1915 + $0x10] sm:$0xff]
        %v1919 = vld [vmem:[%s1915 + $0x18] sm:$0xff]
        %v1920 = vld [vmem:[%s1915 + $0x20] sm:$0xff]
        %v1921 = vld [vmem:[%s1915 + $0x28] sm:$0xff]
        %v1922 = vld [vmem:[%s1915 + $0x30] sm:$0xff]
        %v1923 = vld [vmem:[%s1915 + $0x38] sm:$0xff]
        %v1925 = vsel %vm753, %v1916, 0
        %v1928 = vsel %vm753, %v1917, 0
        %v1931 = vsel %vm753, %v1918, 0
        %v1934 = vsel %vm753, %v1919, 0
        %v1937 = vsel %vm753, %v1920, 0
        %v1940 = vsel %vm753, %v1921, 0
        %v1943 = vsel %vm753, %v1922, 0
        %v1946 = vsel %vm753, %v1923, 0
        %1948 = vmatpush.msra.mxu0 0.0
        %1949 = vmatpush.msra.mxu0 0.0
        %1950 = vmatpush.msra.mxu0 0.0
        %1951 = vmatpush.msra.mxu0 0.0
        %1952 = vmatpush.msra.mxu0 0.0
        %1953 = vmatpush.msra.mxu0 0.0
        %1954 = vmatpush.msra.mxu0 0.0
        %1955 = vmatpush.msra.mxu0 0.0
        %1956 = vmatpush.msra.mxu0 %v1776
        %1957 = vmatpush.msra.mxu0 %v1774
        %1958 = vmatpush.msra.mxu0 %v1772
        %1959 = vmatpush.msra.mxu0 %v1770
        %1960 = vmatpush.msra.mxu0 %v1768
        %1961 = vmatpush.msra.mxu0 %v1766
        %1962 = vmatpush.msra.mxu0 %v1764
        %1963 = vmatpush.msra.mxu0 %v1762
        %1964 = vmatmul.f32.gmra.mxu0 %v1925
        %v1965 = vpop.f32.mrf.mxu0
        %v1966 = vadd.f32 0.0, %v1965
        %1967 = vmatmul.f32.gmra.mxu0 %v1928
        %v1968 = vpop.f32.mrf.mxu0
        %v1969 = vadd.f32 0.0, %v1968
        %1970 = vmatmul.f32.gmra.mxu0 %v1931
        %v1971 = vpop.f32.mrf.mxu0
        %v1972 = vadd.f32 0.0, %v1971
        %1973 = vmatmul.f32.gmra.mxu0 %v1934
        %v1974 = vpop.f32.mrf.mxu0
        %v1975 = vadd.f32 0.0, %v1974
        %1976 = vmatmul.f32.gmra.mxu0 %v1937
        %v1977 = vpop.f32.mrf.mxu0
        %v1978 = vadd.f32 0.0, %v1977
        %1979 = vmatmul.f32.gmra.mxu0 %v1940
        %v1980 = vpop.f32.mrf.mxu0
        %v1981 = vadd.f32 0.0, %v1980
        %1982 = vmatmul.f32.gmra.mxu0 %v1943
        %v1983 = vpop.f32.mrf.mxu0
        %v1984 = vadd.f32 0.0, %v1983
        %1985 = vmatmul.f32.gmra.mxu0 %v1946
        %v1986 = vpop.f32.mrf.mxu0
        %v1987 = vadd.f32 0.0, %v1986
        %1988 = vdwg.mxu0
        %1989 = vmatpush.msra.mxu0 0.0
        %1990 = vmatpush.msra.mxu0 0.0
        %1991 = vmatpush.msra.mxu0 0.0
        %1992 = vmatpush.msra.mxu0 0.0
        %1993 = vmatpush.msra.mxu0 0.0
        %1994 = vmatpush.msra.mxu0 0.0
        %1995 = vmatpush.msra.mxu0 0.0
        %1996 = vmatpush.msra.mxu0 0.0
        %1997 = vmatpush.msra.mxu0 %v1777
        %1998 = vmatpush.msra.mxu0 %v1775
        %1999 = vmatpush.msra.mxu0 %v1773
        %2000 = vmatpush.msra.mxu0 %v1771
        %2001 = vmatpush.msra.mxu0 %v1769
        %2002 = vmatpush.msra.mxu0 %v1767
        %2003 = vmatpush.msra.mxu0 %v1765
        %2004 = vmatpush.msra.mxu0 %v1763
        %2005 = vmatmul.f32.gmra.mxu0 %v1925
        %v2006 = vpop.f32.mrf.mxu0
        %v2007 = vadd.f32 0.0, %v2006
        %2008 = vmatmul.f32.gmra.mxu0 %v1928
        %v2009 = vpop.f32.mrf.mxu0
        %v2010 = vadd.f32 0.0, %v2009
        %2011 = vmatmul.f32.gmra.mxu0 %v1931
        %v2012 = vpop.f32.mrf.mxu0
        %v2013 = vadd.f32 0.0, %v2012
        %2014 = vmatmul.f32.gmra.mxu0 %v1934
        %v2015 = vpop.f32.mrf.mxu0
        %v2016 = vadd.f32 0.0, %v2015
        %2017 = vmatmul.f32.gmra.mxu0 %v1937
        %v2018 = vpop.f32.mrf.mxu0
        %v2019 = vadd.f32 0.0, %v2018
        %2020 = vmatmul.f32.gmra.mxu0 %v1940
        %v2021 = vpop.f32.mrf.mxu0
        %v2022 = vadd.f32 0.0, %v2021
        %2023 = vmatmul.f32.gmra.mxu0 %v1943
        %v2024 = vpop.f32.mrf.mxu0
        %v2025 = vadd.f32 0.0, %v2024
        %2026 = vmatmul.f32.gmra.mxu0 %v1946
        %v2027 = vpop.f32.mrf.mxu0
        %v2028 = vadd.f32 0.0, %v2027
        %2029 = vdwg.mxu0
        %v2031 = vsel %vm753, %v1907, 0
        %v2034 = vsel %vm753, %v1908, 0
        %v2037 = vsel %vm753, %v1909, 0
        %v2040 = vsel %vm753, %v1910, 0
        %v2043 = vsel %vm753, %v1911, 0
        %v2046 = vsel %vm753, %v1912, 0
        %v2049 = vsel %vm753, %v1913, 0
        %v2052 = vsel %vm753, %v1914, 0
        %2054 = vmatpush.msra.mxu0 0.0
        %2055 = vmatpush.msra.mxu0 0.0
        %2056 = vmatpush.msra.mxu0 0.0
        %2057 = vmatpush.msra.mxu0 0.0
        %2058 = vmatpush.msra.mxu0 0.0
        %2059 = vmatpush.msra.mxu0 0.0
        %2060 = vmatpush.msra.mxu0 0.0
        %2061 = vmatpush.msra.mxu0 0.0
        %2062 = vmatpush.msra.mxu0 %v1840
        %2063 = vmatpush.msra.mxu0 %v1838
        %2064 = vmatpush.msra.mxu0 %v1836
        %2065 = vmatpush.msra.mxu0 %v1834
        %2066 = vmatpush.msra.mxu0 %v1832
        %2067 = vmatpush.msra.mxu0 %v1830
        %2068 = vmatpush.msra.mxu0 %v1828
        %2069 = vmatpush.msra.mxu0 %v1826
        %2070 = vmatmul.f32.gmra.mxu0 %v2031
        %v2071 = vpop.f32.mrf.mxu0
        %v2072 = vadd.f32 %v1966, %v2071
        %2073 = vmatmul.f32.gmra.mxu0 %v2034
        %v2074 = vpop.f32.mrf.mxu0
        %v2075 = vadd.f32 %v1969, %v2074
        %2076 = vmatmul.f32.gmra.mxu0 %v2037
        %v2077 = vpop.f32.mrf.mxu0
        %v2078 = vadd.f32 %v1972, %v2077
        %2079 = vmatmul.f32.gmra.mxu0 %v2040
        %v2080 = vpop.f32.mrf.mxu0
        %v2081 = vadd.f32 %v1975, %v2080
        %2082 = vmatmul.f32.gmra.mxu0 %v2043
        %v2083 = vpop.f32.mrf.mxu0
        %v2084 = vadd.f32 %v1978, %v2083
        %2085 = vmatmul.f32.gmra.mxu0 %v2046
        %v2086 = vpop.f32.mrf.mxu0
        %v2087 = vadd.f32 %v1981, %v2086
        %2088 = vmatmul.f32.gmra.mxu0 %v2049
        %v2089 = vpop.f32.mrf.mxu0
        %v2090 = vadd.f32 %v1984, %v2089
        %2091 = vmatmul.f32.gmra.mxu0 %v2052
        %v2092 = vpop.f32.mrf.mxu0
        %v2093 = vadd.f32 %v1987, %v2092
        %2094 = vdwg.mxu0
        %2095 = vmatpush.msra.mxu0 0.0
        %2096 = vmatpush.msra.mxu0 0.0
        %2097 = vmatpush.msra.mxu0 0.0
        %2098 = vmatpush.msra.mxu0 0.0
        %2099 = vmatpush.msra.mxu0 0.0
        %2100 = vmatpush.msra.mxu0 0.0
        %2101 = vmatpush.msra.mxu0 0.0
        %2102 = vmatpush.msra.mxu0 0.0
        %2103 = vmatpush.msra.mxu0 %v1841
        %2104 = vmatpush.msra.mxu0 %v1839
        %2105 = vmatpush.msra.mxu0 %v1837
        %2106 = vmatpush.msra.mxu0 %v1835
        %2107 = vmatpush.msra.mxu0 %v1833
        %2108 = vmatpush.msra.mxu0 %v1831
        %2109 = vmatpush.msra.mxu0 %v1829
        %2110 = vmatpush.msra.mxu0 %v1827
        %2111 = vmatmul.f32.gmra.mxu0 %v2031
        %v2112 = vpop.f32.mrf.mxu0
        %v2113 = vadd.f32 %v2007, %v2112
        %2114 = vmatmul.f32.gmra.mxu0 %v2034
        %v2115 = vpop.f32.mrf.mxu0
        %v2116 = vadd.f32 %v2010, %v2115
        %2117 = vmatmul.f32.gmra.mxu0 %v2037
        %v2118 = vpop.f32.mrf.mxu0
        %v2119 = vadd.f32 %v2013, %v2118
        %2120 = vmatmul.f32.gmra.mxu0 %v2040
        %v2121 = vpop.f32.mrf.mxu0
        %v2122 = vadd.f32 %v2016, %v2121
        %2123 = vmatmul.f32.gmra.mxu0 %v2043
        %v2124 = vpop.f32.mrf.mxu0
        %v2125 = vadd.f32 %v2019, %v2124
        %2126 = vmatmul.f32.gmra.mxu0 %v2046
        %v2127 = vpop.f32.mrf.mxu0
        %v2128 = vadd.f32 %v2022, %v2127
        %2129 = vmatmul.f32.gmra.mxu0 %v2049
        %v2130 = vpop.f32.mrf.mxu0
        %v2131 = vadd.f32 %v2025, %v2130
        %2132 = vmatmul.f32.gmra.mxu0 %v2052
        %v2133 = vpop.f32.mrf.mxu0
        %v2134 = vadd.f32 %v2028, %v2133
        %2135 = vdwg.mxu0
        %s2136 = scalar_lea.vmem [#allocation5], 128
        %v2137 = vld [vmem:[%s2136] sm:$0xff]
        %v2138 = vld [vmem:[%s2136 + $0x8] sm:$0xff]
        %v2139 = vld [vmem:[%s2136 + $0x10] sm:$0xff]
        %v2140 = vld [vmem:[%s2136 + $0x18] sm:$0xff]
        %v2141 = vld [vmem:[%s2136 + $0x20] sm:$0xff]
        %v2142 = vld [vmem:[%s2136 + $0x28] sm:$0xff]
        %v2143 = vld [vmem:[%s2136 + $0x30] sm:$0xff]
        %v2144 = vld [vmem:[%s2136 + $0x38] sm:$0xff]
        %v2146 = vsel %vm753, %v2137, 0
        %v2149 = vsel %vm753, %v2138, 0
        %v2152 = vsel %vm753, %v2139, 0
        %v2155 = vsel %vm753, %v2140, 0
        %v2158 = vsel %vm753, %v2141, 0
        %v2161 = vsel %vm753, %v2142, 0
        %v2164 = vsel %vm753, %v2143, 0
        %v2167 = vsel %vm753, %v2144, 0
        %2169 = vmatpush.msra.mxu0 0.0
        %2170 = vmatpush.msra.mxu0 0.0
        %2171 = vmatpush.msra.mxu0 0.0
        %2172 = vmatpush.msra.mxu0 0.0
        %2173 = vmatpush.msra.mxu0 0.0
        %2174 = vmatpush.msra.mxu0 0.0
        %2175 = vmatpush.msra.mxu0 0.0
        %2176 = vmatpush.msra.mxu0 0.0
        %2177 = vmatpush.msra.mxu0 %v1904
        %2178 = vmatpush.msra.mxu0 %v1902
        %2179 = vmatpush.msra.mxu0 %v1900
        %2180 = vmatpush.msra.mxu0 %v1898
        %2181 = vmatpush.msra.mxu0 %v1896
        %2182 = vmatpush.msra.mxu0 %v1894
        %2183 = vmatpush.msra.mxu0 %v1892
        %2184 = vmatpush.msra.mxu0 %v1890
        %2185 = vmatmul.f32.gmra.mxu0 %v2146
        %v2186 = vpop.f32.mrf.mxu0
        %v2187 = vadd.f32 0.0, %v2186
        %2188 = vmatmul.f32.gmra.mxu0 %v2149
        %v2189 = vpop.f32.mrf.mxu0
        %v2190 = vadd.f32 0.0, %v2189
        %2191 = vmatmul.f32.gmra.mxu0 %v2152
        %v2192 = vpop.f32.mrf.mxu0
        %v2193 = vadd.f32 0.0, %v2192
        %2194 = vmatmul.f32.gmra.mxu0 %v2155
        %v2195 = vpop.f32.mrf.mxu0
        %v2196 = vadd.f32 0.0, %v2195
        %2197 = vmatmul.f32.gmra.mxu0 %v2158
        %v2198 = vpop.f32.mrf.mxu0
        %v2199 = vadd.f32 0.0, %v2198
        %2200 = vmatmul.f32.gmra.mxu0 %v2161
        %v2201 = vpop.f32.mrf.mxu0
        %v2202 = vadd.f32 0.0, %v2201
        %2203 = vmatmul.f32.gmra.mxu0 %v2164
        %v2204 = vpop.f32.mrf.mxu0
        %v2205 = vadd.f32 0.0, %v2204
        %2206 = vmatmul.f32.gmra.mxu0 %v2167
        %v2207 = vpop.f32.mrf.mxu0
        %v2208 = vadd.f32 0.0, %v2207
        %2209 = vdwg.mxu0
        %2210 = vmatpush.msra.mxu0 0.0
        %2211 = vmatpush.msra.mxu0 0.0
        %2212 = vmatpush.msra.mxu0 0.0
        %2213 = vmatpush.msra.mxu0 0.0
        %2214 = vmatpush.msra.mxu0 0.0
        %2215 = vmatpush.msra.mxu0 0.0
        %2216 = vmatpush.msra.mxu0 0.0
        %2217 = vmatpush.msra.mxu0 0.0
        %2218 = vmatpush.msra.mxu0 %v1905
        %2219 = vmatpush.msra.mxu0 %v1903
        %2220 = vmatpush.msra.mxu0 %v1901
        %2221 = vmatpush.msra.mxu0 %v1899
        %2222 = vmatpush.msra.mxu0 %v1897
        %2223 = vmatpush.msra.mxu0 %v1895
        %2224 = vmatpush.msra.mxu0 %v1893
        %2225 = vmatpush.msra.mxu0 %v1891
        %2226 = vmatmul.f32.gmra.mxu0 %v2146
        %v2227 = vpop.f32.mrf.mxu0
        %v2228 = vadd.f32 0.0, %v2227
        %2229 = vmatmul.f32.gmra.mxu0 %v2149
        %v2230 = vpop.f32.mrf.mxu0
        %v2231 = vadd.f32 0.0, %v2230
        %2232 = vmatmul.f32.gmra.mxu0 %v2152
        %v2233 = vpop.f32.mrf.mxu0
        %v2234 = vadd.f32 0.0, %v2233
        %2235 = vmatmul.f32.gmra.mxu0 %v2155
        %v2236 = vpop.f32.mrf.mxu0
        %v2237 = vadd.f32 0.0, %v2236
        %2238 = vmatmul.f32.gmra.mxu0 %v2158
        %v2239 = vpop.f32.mrf.mxu0
        %v2240 = vadd.f32 0.0, %v2239
        %2241 = vmatmul.f32.gmra.mxu0 %v2161
        %v2242 = vpop.f32.mrf.mxu0
        %v2243 = vadd.f32 0.0, %v2242
        %2244 = vmatmul.f32.gmra.mxu0 %v2164
        %v2245 = vpop.f32.mrf.mxu0
        %v2246 = vadd.f32 0.0, %v2245
        %2247 = vmatmul.f32.gmra.mxu0 %v2167
        %v2248 = vpop.f32.mrf.mxu0
        %v2249 = vadd.f32 0.0, %v2248
        %2250 = vdwg.mxu0
        %v2251 = vadd.f32 %v2072, %v2187
        %v2252 = vadd.f32 %v2113, %v2228
        %v2253 = vadd.f32 %v2075, %v2190
        %v2254 = vadd.f32 %v2116, %v2231
        %v2255 = vadd.f32 %v2078, %v2193
        %v2256 = vadd.f32 %v2119, %v2234
        %v2257 = vadd.f32 %v2081, %v2196
        %v2258 = vadd.f32 %v2122, %v2237
        %v2259 = vadd.f32 %v2084, %v2199
        %v2260 = vadd.f32 %v2125, %v2240
        %v2261 = vadd.f32 %v2087, %v2202
        %v2262 = vadd.f32 %v2128, %v2243
        %v2263 = vadd.f32 %v2090, %v2205
        %v2264 = vadd.f32 %v2131, %v2246
        %v2265 = vadd.f32 %v2093, %v2208
        %v2266 = vadd.f32 %v2134, %v2249
        %v2267 = vmul.f32 %v2251, %v573
        %v2268 = vmul.f32 %v2252, %v574
        %v2269 = vmul.f32 %v2253, %v573
        %v2270 = vmul.f32 %v2254, %v574
        %v2271 = vmul.f32 %v2255, %v573
        %v2272 = vmul.f32 %v2256, %v574
        %v2273 = vmul.f32 %v2257, %v573
        %v2274 = vmul.f32 %v2258, %v574
        %v2275 = vmul.f32 %v2259, %v573
        %v2276 = vmul.f32 %v2260, %v574
        %v2277 = vmul.f32 %v2261, %v573
        %v2278 = vmul.f32 %v2262, %v574
        %v2279 = vmul.f32 %v2263, %v573
        %v2280 = vmul.f32 %v2264, %v574
        %v2281 = vmul.f32 %v2265, %v573
        %v2282 = vmul.f32 %v2266, %v574
        %s2283 = scalar_lea.vmem %s5, 128
        %v2284 = vld [vmem:[%s2283] sm:$0xff]
        %v2285 = vld [vmem:[%s2283 + $0x8] sm:$0xff]
        %v2286 = vld [vmem:[%s2283 + $0x10] sm:$0xff]
        %v2287 = vld [vmem:[%s2283 + $0x18] sm:$0xff]
        %v2288 = vld [vmem:[%s2283 + $0x20] sm:$0xff]
        %v2289 = vld [vmem:[%s2283 + $0x28] sm:$0xff]
        %v2290 = vld [vmem:[%s2283 + $0x30] sm:$0xff]
        %v2291 = vld [vmem:[%s2283 + $0x38] sm:$0xff]
        %2293 = vset.pattern.permute.xlu0 0
        %2294 = vperm.xlu0 %2293, %v2284
        %v2295 = vpop.permute.xlu0 %2294
        %2298 = vset.pattern.permute.xlu0 0
        %2299 = vperm.xlu0 %2298, %v2285
        %v2300 = vpop.permute.xlu0 %2299
        %2303 = vset.pattern.permute.xlu0 0
        %2304 = vperm.xlu0 %2303, %v2286
        %v2305 = vpop.permute.xlu0 %2304
        %2308 = vset.pattern.permute.xlu0 0
        %2309 = vperm.xlu0 %2308, %v2287
        %v2310 = vpop.permute.xlu0 %2309
        %2313 = vset.pattern.permute.xlu0 0
        %2314 = vperm.xlu0 %2313, %v2288
        %v2315 = vpop.permute.xlu0 %2314
        %2318 = vset.pattern.permute.xlu0 0
        %2319 = vperm.xlu0 %2318, %v2289
        %v2320 = vpop.permute.xlu0 %2319
        %2323 = vset.pattern.permute.xlu0 0
        %2324 = vperm.xlu0 %2323, %v2290
        %v2325 = vpop.permute.xlu0 %2324
        %2328 = vset.pattern.permute.xlu0 0
        %2329 = vperm.xlu0 %2328, %v2291
        %v2330 = vpop.permute.xlu0 %2329
        %v2332 = vadd.f32 %v2267, %v2295
        %v2333 = vadd.f32 %v2268, %v2295
        %v2334 = vadd.f32 %v2269, %v2300
        %v2335 = vadd.f32 %v2270, %v2300
        %v2336 = vadd.f32 %v2271, %v2305
        %v2337 = vadd.f32 %v2272, %v2305
        %v2338 = vadd.f32 %v2273, %v2310
        %v2339 = vadd.f32 %v2274, %v2310
        %v2340 = vadd.f32 %v2275, %v2315
        %v2341 = vadd.f32 %v2276, %v2315
        %v2342 = vadd.f32 %v2277, %v2320
        %v2343 = vadd.f32 %v2278, %v2320
        %v2344 = vadd.f32 %v2279, %v2325
        %v2345 = vadd.f32 %v2280, %v2325
        %v2346 = vadd.f32 %v2281, %v2330
        %v2347 = vadd.f32 %v2282, %v2330
        %v2348 = vmax.f32 %v2332, 0.0
        %v2349 = vmax.f32 %v2333, 0.0
        %v2350 = vmax.f32 %v2334, 0.0
        %v2351 = vmax.f32 %v2335, 0.0
        %v2352 = vmax.f32 %v2336, 0.0
        %v2353 = vmax.f32 %v2337, 0.0
        %v2354 = vmax.f32 %v2338, 0.0
        %v2355 = vmax.f32 %v2339, 0.0
        %v2356 = vmax.f32 %v2340, 0.0
        %v2357 = vmax.f32 %v2341, 0.0
        %v2358 = vmax.f32 %v2342, 0.0
        %v2359 = vmax.f32 %v2343, 0.0
        %v2360 = vmax.f32 %v2344, 0.0
        %v2361 = vmax.f32 %v2345, 0.0
        %v2362 = vmax.f32 %v2346, 0.0
        %v2363 = vmax.f32 %v2347, 0.0
        %2364 = vrot.lane.b32.xlu0 %v2348, 1
        %v2365 = vpop.permute.xlu0 %2364
        %2366 = vrot.lane.b32.xlu0 %v2350, 1
        %v2367 = vpop.permute.xlu0 %2366
        %2368 = vrot.lane.b32.xlu0 %v2352, 1
        %v2369 = vpop.permute.xlu0 %2368
        %2370 = vrot.lane.b32.xlu0 %v2354, 1
        %v2371 = vpop.permute.xlu0 %2370
        %2372 = vrot.lane.b32.xlu0 %v2356, 1
        %v2373 = vpop.permute.xlu0 %2372
        %2374 = vrot.lane.b32.xlu0 %v2358, 1
        %v2375 = vpop.permute.xlu0 %2374
        %2376 = vrot.lane.b32.xlu0 %v2360, 1
        %v2377 = vpop.permute.xlu0 %2376
        %2378 = vrot.lane.b32.xlu0 %v2362, 1
        %v2379 = vpop.permute.xlu0 %2378
        %2380 = vrot.lane.b32.xlu0 %v2349, 1
        %v2381 = vpop.permute.xlu0 %2380
        %2382 = vrot.lane.b32.xlu0 %v2351, 1
        %v2383 = vpop.permute.xlu0 %2382
        %2384 = vrot.lane.b32.xlu0 %v2353, 1
        %v2385 = vpop.permute.xlu0 %2384
        %2386 = vrot.lane.b32.xlu0 %v2355, 1
        %v2387 = vpop.permute.xlu0 %2386
        %2388 = vrot.lane.b32.xlu0 %v2357, 1
        %v2389 = vpop.permute.xlu0 %2388
        %2390 = vrot.lane.b32.xlu0 %v2359, 1
        %v2391 = vpop.permute.xlu0 %2390
        %2392 = vrot.lane.b32.xlu0 %v2361, 1
        %v2393 = vpop.permute.xlu0 %2392
        %2394 = vrot.lane.b32.xlu0 %v2363, 1
        %v2395 = vpop.permute.xlu0 %2394
        %v2396 = vsel %vm352, %v2365, %v2381
        %v2397 = vsel %vm352, %v2367, %v2383
        %v2398 = vsel %vm352, %v2369, %v2385
        %v2399 = vsel %vm352, %v2371, %v2387
        %v2400 = vsel %vm352, %v2373, %v2389
        %v2401 = vsel %vm352, %v2375, %v2391
        %v2402 = vsel %vm352, %v2377, %v2393
        %v2403 = vsel %vm352, %v2379, %v2395
        %v2404 = vsel %vm352, %v2381, %v2365
        %v2405 = vsel %vm352, %v2383, %v2367
        %v2406 = vsel %vm352, %v2385, %v2369
        %v2407 = vsel %vm352, %v2387, %v2371
        %v2408 = vsel %vm352, %v2389, %v2373
        %v2409 = vsel %vm352, %v2391, %v2375
        %v2410 = vsel %vm352, %v2393, %v2377
        %v2411 = vsel %vm352, %v2395, %v2379
        %v2412 = vmul.f32 %v2404, %v356
        %v2413 = vmul.f32 %v2396, %v357
        %v2414 = vmul.f32 %v2405, %v356
        %v2415 = vmul.f32 %v2397, %v357
        %v2416 = vmul.f32 %v2406, %v356
        %v2417 = vmul.f32 %v2398, %v357
        %v2418 = vmul.f32 %v2407, %v356
        %v2419 = vmul.f32 %v2399, %v357
        %v2420 = vmul.f32 %v2408, %v356
        %v2421 = vmul.f32 %v2400, %v357
        %v2422 = vmul.f32 %v2409, %v356
        %v2423 = vmul.f32 %v2401, %v357
        %v2424 = vmul.f32 %v2410, %v356
        %v2425 = vmul.f32 %v2402, %v357
        %v2426 = vmul.f32 %v2411, %v356
        %v2427 = vmul.f32 %v2403, %v357
        %2428 = vrot.lane.b32.xlu0 %v2348, 127
        %v2429 = vpop.permute.xlu0 %2428
        %2430 = vrot.lane.b32.xlu0 %v2350, 127
        %v2431 = vpop.permute.xlu0 %2430
        %2432 = vrot.lane.b32.xlu0 %v2352, 127
        %v2433 = vpop.permute.xlu0 %2432
        %2434 = vrot.lane.b32.xlu0 %v2354, 127
        %v2435 = vpop.permute.xlu0 %2434
        %2436 = vrot.lane.b32.xlu0 %v2356, 127
        %v2437 = vpop.permute.xlu0 %2436
        %2438 = vrot.lane.b32.xlu0 %v2358, 127
        %v2439 = vpop.permute.xlu0 %2438
        %2440 = vrot.lane.b32.xlu0 %v2360, 127
        %v2441 = vpop.permute.xlu0 %2440
        %2442 = vrot.lane.b32.xlu0 %v2362, 127
        %v2443 = vpop.permute.xlu0 %2442
        %2444 = vrot.lane.b32.xlu0 %v2349, 127
        %v2445 = vpop.permute.xlu0 %2444
        %2446 = vrot.lane.b32.xlu0 %v2351, 127
        %v2447 = vpop.permute.xlu0 %2446
        %2448 = vrot.lane.b32.xlu0 %v2353, 127
        %v2449 = vpop.permute.xlu0 %2448
        %2450 = vrot.lane.b32.xlu0 %v2355, 127
        %v2451 = vpop.permute.xlu0 %2450
        %2452 = vrot.lane.b32.xlu0 %v2357, 127
        %v2453 = vpop.permute.xlu0 %2452
        %2454 = vrot.lane.b32.xlu0 %v2359, 127
        %v2455 = vpop.permute.xlu0 %2454
        %2456 = vrot.lane.b32.xlu0 %v2361, 127
        %v2457 = vpop.permute.xlu0 %2456
        %2458 = vrot.lane.b32.xlu0 %v2363, 127
        %v2459 = vpop.permute.xlu0 %2458
        %v2460 = vsel %vm366, %v2429, %v2445
        %v2461 = vsel %vm366, %v2431, %v2447
        %v2462 = vsel %vm366, %v2433, %v2449
        %v2463 = vsel %vm366, %v2435, %v2451
        %v2464 = vsel %vm366, %v2437, %v2453
        %v2465 = vsel %vm366, %v2439, %v2455
        %v2466 = vsel %vm366, %v2441, %v2457
        %v2467 = vsel %vm366, %v2443, %v2459
        %v2468 = vsel %vm366, %v2445, %v2429
        %v2469 = vsel %vm366, %v2447, %v2431
        %v2470 = vsel %vm366, %v2449, %v2433
        %v2471 = vsel %vm366, %v2451, %v2435
        %v2472 = vsel %vm366, %v2453, %v2437
        %v2473 = vsel %vm366, %v2455, %v2439
        %v2474 = vsel %vm366, %v2457, %v2441
        %v2475 = vsel %vm366, %v2459, %v2443
        %v2476 = vmul.f32 %v2460, %v370
        %v2477 = vmul.f32 %v2468, %v371
        %v2478 = vmul.f32 %v2461, %v370
        %v2479 = vmul.f32 %v2469, %v371
        %v2480 = vmul.f32 %v2462, %v370
        %v2481 = vmul.f32 %v2470, %v371
        %v2482 = vmul.f32 %v2463, %v370
        %v2483 = vmul.f32 %v2471, %v371
        %v2484 = vmul.f32 %v2464, %v370
        %v2485 = vmul.f32 %v2472, %v371
        %v2486 = vmul.f32 %v2465, %v370
        %v2487 = vmul.f32 %v2473, %v371
        %v2488 = vmul.f32 %v2466, %v370
        %v2489 = vmul.f32 %v2474, %v371
        %v2490 = vmul.f32 %v2467, %v370
        %v2491 = vmul.f32 %v2475, %v371
        %s2492 = scalar_lea.vmem %s2, 192
        %v2493 = vld [vmem:[%s2492] sm:$0xff]
        %v2494 = vld [vmem:[%s2492 + $0x8] sm:$0xff]
        %v2495 = vld [vmem:[%s2492 + $0x10] sm:$0xff]
        %v2496 = vld [vmem:[%s2492 + $0x18] sm:$0xff]
        %v2497 = vld [vmem:[%s2492 + $0x20] sm:$0xff]
        %v2498 = vld [vmem:[%s2492 + $0x28] sm:$0xff]
        %v2499 = vld [vmem:[%s2492 + $0x30] sm:$0xff]
        %v2500 = vld [vmem:[%s2492 + $0x38] sm:$0xff]
        %s2501 = scalar_lea.vmem [#allocation2], 192
        %v2502 = vld [vmem:[%s2501] sm:$0xff]
        %v2503 = vld [vmem:[%s2501 + $0x8] sm:$0xff]
        %v2504 = vld [vmem:[%s2501 + $0x10] sm:$0xff]
        %v2505 = vld [vmem:[%s2501 + $0x18] sm:$0xff]
        %v2506 = vld [vmem:[%s2501 + $0x20] sm:$0xff]
        %v2507 = vld [vmem:[%s2501 + $0x28] sm:$0xff]
        %v2508 = vld [vmem:[%s2501 + $0x30] sm:$0xff]
        %v2509 = vld [vmem:[%s2501 + $0x38] sm:$0xff]
        %v2511 = vsel %vm753, %v2502, 0
        %v2514 = vsel %vm753, %v2503, 0
        %v2517 = vsel %vm753, %v2504, 0
        %v2520 = vsel %vm753, %v2505, 0
        %v2523 = vsel %vm753, %v2506, 0
        %v2526 = vsel %vm753, %v2507, 0
        %v2529 = vsel %vm753, %v2508, 0
        %v2532 = vsel %vm753, %v2509, 0
        %2534 = vmatpush.msra.mxu0 0.0
        %2535 = vmatpush.msra.mxu0 0.0
        %2536 = vmatpush.msra.mxu0 0.0
        %2537 = vmatpush.msra.mxu0 0.0
        %2538 = vmatpush.msra.mxu0 0.0
        %2539 = vmatpush.msra.mxu0 0.0
        %2540 = vmatpush.msra.mxu0 0.0
        %2541 = vmatpush.msra.mxu0 0.0
        %2542 = vmatpush.msra.mxu0 %v2362
        %2543 = vmatpush.msra.mxu0 %v2360
        %2544 = vmatpush.msra.mxu0 %v2358
        %2545 = vmatpush.msra.mxu0 %v2356
        %2546 = vmatpush.msra.mxu0 %v2354
        %2547 = vmatpush.msra.mxu0 %v2352
        %2548 = vmatpush.msra.mxu0 %v2350
        %2549 = vmatpush.msra.mxu0 %v2348
        %2550 = vmatmul.f32.gmra.mxu0 %v2511
        %v2551 = vpop.f32.mrf.mxu0
        %v2552 = vadd.f32 0.0, %v2551
        %2553 = vmatmul.f32.gmra.mxu0 %v2514
        %v2554 = vpop.f32.mrf.mxu0
        %v2555 = vadd.f32 0.0, %v2554
        %2556 = vmatmul.f32.gmra.mxu0 %v2517
        %v2557 = vpop.f32.mrf.mxu0
        %v2558 = vadd.f32 0.0, %v2557
        %2559 = vmatmul.f32.gmra.mxu0 %v2520
        %v2560 = vpop.f32.mrf.mxu0
        %v2561 = vadd.f32 0.0, %v2560
        %2562 = vmatmul.f32.gmra.mxu0 %v2523
        %v2563 = vpop.f32.mrf.mxu0
        %v2564 = vadd.f32 0.0, %v2563
        %2565 = vmatmul.f32.gmra.mxu0 %v2526
        %v2566 = vpop.f32.mrf.mxu0
        %v2567 = vadd.f32 0.0, %v2566
        %2568 = vmatmul.f32.gmra.mxu0 %v2529
        %v2569 = vpop.f32.mrf.mxu0
        %v2570 = vadd.f32 0.0, %v2569
        %2571 = vmatmul.f32.gmra.mxu0 %v2532
        %v2572 = vpop.f32.mrf.mxu0
        %v2573 = vadd.f32 0.0, %v2572
        %2574 = vdwg.mxu0
        %2575 = vmatpush.msra.mxu0 0.0
        %2576 = vmatpush.msra.mxu0 0.0
        %2577 = vmatpush.msra.mxu0 0.0
        %2578 = vmatpush.msra.mxu0 0.0
        %2579 = vmatpush.msra.mxu0 0.0
        %2580 = vmatpush.msra.mxu0 0.0
        %2581 = vmatpush.msra.mxu0 0.0
        %2582 = vmatpush.msra.mxu0 0.0
        %2583 = vmatpush.msra.mxu0 %v2363
        %2584 = vmatpush.msra.mxu0 %v2361
        %2585 = vmatpush.msra.mxu0 %v2359
        %2586 = vmatpush.msra.mxu0 %v2357
        %2587 = vmatpush.msra.mxu0 %v2355
        %2588 = vmatpush.msra.mxu0 %v2353
        %2589 = vmatpush.msra.mxu0 %v2351
        %2590 = vmatpush.msra.mxu0 %v2349
        %2591 = vmatmul.f32.gmra.mxu0 %v2511
        %v2592 = vpop.f32.mrf.mxu0
        %v2593 = vadd.f32 0.0, %v2592
        %2594 = vmatmul.f32.gmra.mxu0 %v2514
        %v2595 = vpop.f32.mrf.mxu0
        %v2596 = vadd.f32 0.0, %v2595
        %2597 = vmatmul.f32.gmra.mxu0 %v2517
        %v2598 = vpop.f32.mrf.mxu0
        %v2599 = vadd.f32 0.0, %v2598
        %2600 = vmatmul.f32.gmra.mxu0 %v2520
        %v2601 = vpop.f32.mrf.mxu0
        %v2602 = vadd.f32 0.0, %v2601
        %2603 = vmatmul.f32.gmra.mxu0 %v2523
        %v2604 = vpop.f32.mrf.mxu0
        %v2605 = vadd.f32 0.0, %v2604
        %2606 = vmatmul.f32.gmra.mxu0 %v2526
        %v2607 = vpop.f32.mrf.mxu0
        %v2608 = vadd.f32 0.0, %v2607
        %2609 = vmatmul.f32.gmra.mxu0 %v2529
        %v2610 = vpop.f32.mrf.mxu0
        %v2611 = vadd.f32 0.0, %v2610
        %2612 = vmatmul.f32.gmra.mxu0 %v2532
        %v2613 = vpop.f32.mrf.mxu0
        %v2614 = vadd.f32 0.0, %v2613
        %2615 = vdwg.mxu0
        %v2617 = vsel %vm753, %v2493, 0
        %v2620 = vsel %vm753, %v2494, 0
        %v2623 = vsel %vm753, %v2495, 0
        %v2626 = vsel %vm753, %v2496, 0
        %v2629 = vsel %vm753, %v2497, 0
        %v2632 = vsel %vm753, %v2498, 0
        %v2635 = vsel %vm753, %v2499, 0
        %v2638 = vsel %vm753, %v2500, 0
        %2640 = vmatpush.msra.mxu0 0.0
        %2641 = vmatpush.msra.mxu0 0.0
        %2642 = vmatpush.msra.mxu0 0.0
        %2643 = vmatpush.msra.mxu0 0.0
        %2644 = vmatpush.msra.mxu0 0.0
        %2645 = vmatpush.msra.mxu0 0.0
        %2646 = vmatpush.msra.mxu0 0.0
        %2647 = vmatpush.msra.mxu0 0.0
        %2648 = vmatpush.msra.mxu0 %v2426
        %2649 = vmatpush.msra.mxu0 %v2424
        %2650 = vmatpush.msra.mxu0 %v2422
        %2651 = vmatpush.msra.mxu0 %v2420
        %2652 = vmatpush.msra.mxu0 %v2418
        %2653 = vmatpush.msra.mxu0 %v2416
        %2654 = vmatpush.msra.mxu0 %v2414
        %2655 = vmatpush.msra.mxu0 %v2412
        %2656 = vmatmul.f32.gmra.mxu0 %v2617
        %v2657 = vpop.f32.mrf.mxu0
        %v2658 = vadd.f32 %v2552, %v2657
        %2659 = vmatmul.f32.gmra.mxu0 %v2620
        %v2660 = vpop.f32.mrf.mxu0
        %v2661 = vadd.f32 %v2555, %v2660
        %2662 = vmatmul.f32.gmra.mxu0 %v2623
        %v2663 = vpop.f32.mrf.mxu0
        %v2664 = vadd.f32 %v2558, %v2663
        %2665 = vmatmul.f32.gmra.mxu0 %v2626
        %v2666 = vpop.f32.mrf.mxu0
        %v2667 = vadd.f32 %v2561, %v2666
        %2668 = vmatmul.f32.gmra.mxu0 %v2629
        %v2669 = vpop.f32.mrf.mxu0
        %v2670 = vadd.f32 %v2564, %v2669
        %2671 = vmatmul.f32.gmra.mxu0 %v2632
        %v2672 = vpop.f32.mrf.mxu0
        %v2673 = vadd.f32 %v2567, %v2672
        %2674 = vmatmul.f32.gmra.mxu0 %v2635
        %v2675 = vpop.f32.mrf.mxu0
        %v2676 = vadd.f32 %v2570, %v2675
        %2677 = vmatmul.f32.gmra.mxu0 %v2638
        %v2678 = vpop.f32.mrf.mxu0
        %v2679 = vadd.f32 %v2573, %v2678
        %2680 = vdwg.mxu0
        %2681 = vmatpush.msra.mxu0 0.0
        %2682 = vmatpush.msra.mxu0 0.0
        %2683 = vmatpush.msra.mxu0 0.0
        %2684 = vmatpush.msra.mxu0 0.0
        %2685 = vmatpush.msra.mxu0 0.0
        %2686 = vmatpush.msra.mxu0 0.0
        %2687 = vmatpush.msra.mxu0 0.0
        %2688 = vmatpush.msra.mxu0 0.0
        %2689 = vmatpush.msra.mxu0 %v2427
        %2690 = vmatpush.msra.mxu0 %v2425
        %2691 = vmatpush.msra.mxu0 %v2423
        %2692 = vmatpush.msra.mxu0 %v2421
        %2693 = vmatpush.msra.mxu0 %v2419
        %2694 = vmatpush.msra.mxu0 %v2417
        %2695 = vmatpush.msra.mxu0 %v2415
        %2696 = vmatpush.msra.mxu0 %v2413
        %2697 = vmatmul.f32.gmra.mxu0 %v2617
        %v2698 = vpop.f32.mrf.mxu0
        %v2699 = vadd.f32 %v2593, %v2698
        %2700 = vmatmul.f32.gmra.mxu0 %v2620
        %v2701 = vpop.f32.mrf.mxu0
        %v2702 = vadd.f32 %v2596, %v2701
        %2703 = vmatmul.f32.gmra.mxu0 %v2623
        %v2704 = vpop.f32.mrf.mxu0
        %v2705 = vadd.f32 %v2599, %v2704
        %2706 = vmatmul.f32.gmra.mxu0 %v2626
        %v2707 = vpop.f32.mrf.mxu0
        %v2708 = vadd.f32 %v2602, %v2707
        %2709 = vmatmul.f32.gmra.mxu0 %v2629
        %v2710 = vpop.f32.mrf.mxu0
        %v2711 = vadd.f32 %v2605, %v2710
        %2712 = vmatmul.f32.gmra.mxu0 %v2632
        %v2713 = vpop.f32.mrf.mxu0
        %v2714 = vadd.f32 %v2608, %v2713
        %2715 = vmatmul.f32.gmra.mxu0 %v2635
        %v2716 = vpop.f32.mrf.mxu0
        %v2717 = vadd.f32 %v2611, %v2716
        %2718 = vmatmul.f32.gmra.mxu0 %v2638
        %v2719 = vpop.f32.mrf.mxu0
        %v2720 = vadd.f32 %v2614, %v2719
        %2721 = vdwg.mxu0
        %s2722 = scalar_lea.vmem [#allocation5], 192
        %v2723 = vld [vmem:[%s2722] sm:$0xff]
        %v2724 = vld [vmem:[%s2722 + $0x8] sm:$0xff]
        %v2725 = vld [vmem:[%s2722 + $0x10] sm:$0xff]
        %v2726 = vld [vmem:[%s2722 + $0x18] sm:$0xff]
        %v2727 = vld [vmem:[%s2722 + $0x20] sm:$0xff]
        %v2728 = vld [vmem:[%s2722 + $0x28] sm:$0xff]
        %v2729 = vld [vmem:[%s2722 + $0x30] sm:$0xff]
        %v2730 = vld [vmem:[%s2722 + $0x38] sm:$0xff]
        %v2732 = vsel %vm753, %v2723, 0
        %v2735 = vsel %vm753, %v2724, 0
        %v2738 = vsel %vm753, %v2725, 0
        %v2741 = vsel %vm753, %v2726, 0
        %v2744 = vsel %vm753, %v2727, 0
        %v2747 = vsel %vm753, %v2728, 0
        %v2750 = vsel %vm753, %v2729, 0
        %v2753 = vsel %vm753, %v2730, 0
        %2755 = vmatpush.msra.mxu0 0.0
        %2756 = vmatpush.msra.mxu0 0.0
        %2757 = vmatpush.msra.mxu0 0.0
        %2758 = vmatpush.msra.mxu0 0.0
        %2759 = vmatpush.msra.mxu0 0.0
        %2760 = vmatpush.msra.mxu0 0.0
        %2761 = vmatpush.msra.mxu0 0.0
        %2762 = vmatpush.msra.mxu0 0.0
        %2763 = vmatpush.msra.mxu0 %v2490
        %2764 = vmatpush.msra.mxu0 %v2488
        %2765 = vmatpush.msra.mxu0 %v2486
        %2766 = vmatpush.msra.mxu0 %v2484
        %2767 = vmatpush.msra.mxu0 %v2482
        %2768 = vmatpush.msra.mxu0 %v2480
        %2769 = vmatpush.msra.mxu0 %v2478
        %2770 = vmatpush.msra.mxu0 %v2476
        %2771 = vmatmul.f32.gmra.mxu0 %v2732
        %v2772 = vpop.f32.mrf.mxu0
        %v2773 = vadd.f32 0.0, %v2772
        %2774 = vmatmul.f32.gmra.mxu0 %v2735
        %v2775 = vpop.f32.mrf.mxu0
        %v2776 = vadd.f32 0.0, %v2775
        %2777 = vmatmul.f32.gmra.mxu0 %v2738
        %v2778 = vpop.f32.mrf.mxu0
        %v2779 = vadd.f32 0.0, %v2778
        %2780 = vmatmul.f32.gmra.mxu0 %v2741
        %v2781 = vpop.f32.mrf.mxu0
        %v2782 = vadd.f32 0.0, %v2781
        %2783 = vmatmul.f32.gmra.mxu0 %v2744
        %v2784 = vpop.f32.mrf.mxu0
        %v2785 = vadd.f32 0.0, %v2784
        %2786 = vmatmul.f32.gmra.mxu0 %v2747
        %v2787 = vpop.f32.mrf.mxu0
        %v2788 = vadd.f32 0.0, %v2787
        %2789 = vmatmul.f32.gmra.mxu0 %v2750
        %v2790 = vpop.f32.mrf.mxu0
        %v2791 = vadd.f32 0.0, %v2790
        %2792 = vmatmul.f32.gmra.mxu0 %v2753
        %v2793 = vpop.f32.mrf.mxu0
        %v2794 = vadd.f32 0.0, %v2793
        %2795 = vdwg.mxu0
        %2796 = vmatpush.msra.mxu0 0.0
        %2797 = vmatpush.msra.mxu0 0.0
        %2798 = vmatpush.msra.mxu0 0.0
        %2799 = vmatpush.msra.mxu0 0.0
        %2800 = vmatpush.msra.mxu0 0.0
        %2801 = vmatpush.msra.mxu0 0.0
        %2802 = vmatpush.msra.mxu0 0.0
        %2803 = vmatpush.msra.mxu0 0.0
        %2804 = vmatpush.msra.mxu0 %v2491
        %2805 = vmatpush.msra.mxu0 %v2489
        %2806 = vmatpush.msra.mxu0 %v2487
        %2807 = vmatpush.msra.mxu0 %v2485
        %2808 = vmatpush.msra.mxu0 %v2483
        %2809 = vmatpush.msra.mxu0 %v2481
        %2810 = vmatpush.msra.mxu0 %v2479
        %2811 = vmatpush.msra.mxu0 %v2477
        %2812 = vmatmul.f32.gmra.mxu0 %v2732
        %v2813 = vpop.f32.mrf.mxu0
        %v2814 = vadd.f32 0.0, %v2813
        %2815 = vmatmul.f32.gmra.mxu0 %v2735
        %v2816 = vpop.f32.mrf.mxu0
        %v2817 = vadd.f32 0.0, %v2816
        %2818 = vmatmul.f32.gmra.mxu0 %v2738
        %v2819 = vpop.f32.mrf.mxu0
        %v2820 = vadd.f32 0.0, %v2819
        %2821 = vmatmul.f32.gmra.mxu0 %v2741
        %v2822 = vpop.f32.mrf.mxu0
        %v2823 = vadd.f32 0.0, %v2822
        %2824 = vmatmul.f32.gmra.mxu0 %v2744
        %v2825 = vpop.f32.mrf.mxu0
        %v2826 = vadd.f32 0.0, %v2825
        %2827 = vmatmul.f32.gmra.mxu0 %v2747
        %v2828 = vpop.f32.mrf.mxu0
        %v2829 = vadd.f32 0.0, %v2828
        %2830 = vmatmul.f32.gmra.mxu0 %v2750
        %v2831 = vpop.f32.mrf.mxu0
        %v2832 = vadd.f32 0.0, %v2831
        %2833 = vmatmul.f32.gmra.mxu0 %v2753
        %v2834 = vpop.f32.mrf.mxu0
        %v2835 = vadd.f32 0.0, %v2834
        %2836 = vdwg.mxu0
        %v2837 = vadd.f32 %v2658, %v2773
        %v2838 = vadd.f32 %v2699, %v2814
        %v2839 = vadd.f32 %v2661, %v2776
        %v2840 = vadd.f32 %v2702, %v2817
        %v2841 = vadd.f32 %v2664, %v2779
        %v2842 = vadd.f32 %v2705, %v2820
        %v2843 = vadd.f32 %v2667, %v2782
        %v2844 = vadd.f32 %v2708, %v2823
        %v2845 = vadd.f32 %v2670, %v2785
        %v2846 = vadd.f32 %v2711, %v2826
        %v2847 = vadd.f32 %v2673, %v2788
        %v2848 = vadd.f32 %v2714, %v2829
        %v2849 = vadd.f32 %v2676, %v2791
        %v2850 = vadd.f32 %v2717, %v2832
        %v2851 = vadd.f32 %v2679, %v2794
        %v2852 = vadd.f32 %v2720, %v2835
        %v2853 = vmul.f32 %v2837, %v573
        %v2854 = vmul.f32 %v2838, %v574
        %v2855 = vmul.f32 %v2839, %v573
        %v2856 = vmul.f32 %v2840, %v574
        %v2857 = vmul.f32 %v2841, %v573
        %v2858 = vmul.f32 %v2842, %v574
        %v2859 = vmul.f32 %v2843, %v573
        %v2860 = vmul.f32 %v2844, %v574
        %v2861 = vmul.f32 %v2845, %v573
        %v2862 = vmul.f32 %v2846, %v574
        %v2863 = vmul.f32 %v2847, %v573
        %v2864 = vmul.f32 %v2848, %v574
        %v2865 = vmul.f32 %v2849, %v573
        %v2866 = vmul.f32 %v2850, %v574
        %v2867 = vmul.f32 %v2851, %v573
        %v2868 = vmul.f32 %v2852, %v574
        %s2869 = scalar_lea.vmem %s5, 192
        %v2870 = vld [vmem:[%s2869] sm:$0xff]
        %v2871 = vld [vmem:[%s2869 + $0x8] sm:$0xff]
        %v2872 = vld [vmem:[%s2869 + $0x10] sm:$0xff]
        %v2873 = vld [vmem:[%s2869 + $0x18] sm:$0xff]
        %v2874 = vld [vmem:[%s2869 + $0x20] sm:$0xff]
        %v2875 = vld [vmem:[%s2869 + $0x28] sm:$0xff]
        %v2876 = vld [vmem:[%s2869 + $0x30] sm:$0xff]
        %v2877 = vld [vmem:[%s2869 + $0x38] sm:$0xff]
        %2879 = vset.pattern.permute.xlu0 0
        %2880 = vperm.xlu0 %2879, %v2870
        %v2881 = vpop.permute.xlu0 %2880
        %2884 = vset.pattern.permute.xlu0 0
        %2885 = vperm.xlu0 %2884, %v2871
        %v2886 = vpop.permute.xlu0 %2885
        %2889 = vset.pattern.permute.xlu0 0
        %2890 = vperm.xlu0 %2889, %v2872
        %v2891 = vpop.permute.xlu0 %2890
        %2894 = vset.pattern.permute.xlu0 0
        %2895 = vperm.xlu0 %2894, %v2873
        %v2896 = vpop.permute.xlu0 %2895
        %2899 = vset.pattern.permute.xlu0 0
        %2900 = vperm.xlu0 %2899, %v2874
        %v2901 = vpop.permute.xlu0 %2900
        %2904 = vset.pattern.permute.xlu0 0
        %2905 = vperm.xlu0 %2904, %v2875
        %v2906 = vpop.permute.xlu0 %2905
        %2909 = vset.pattern.permute.xlu0 0
        %2910 = vperm.xlu0 %2909, %v2876
        %v2911 = vpop.permute.xlu0 %2910
        %2914 = vset.pattern.permute.xlu0 0
        %2915 = vperm.xlu0 %2914, %v2877
        %v2916 = vpop.permute.xlu0 %2915
        %v2918 = vadd.f32 %v2853, %v2881
        %v2919 = vadd.f32 %v2854, %v2881
        %v2920 = vadd.f32 %v2855, %v2886
        %v2921 = vadd.f32 %v2856, %v2886
        %v2922 = vadd.f32 %v2857, %v2891
        %v2923 = vadd.f32 %v2858, %v2891
        %v2924 = vadd.f32 %v2859, %v2896
        %v2925 = vadd.f32 %v2860, %v2896
        %v2926 = vadd.f32 %v2861, %v2901
        %v2927 = vadd.f32 %v2862, %v2901
        %v2928 = vadd.f32 %v2863, %v2906
        %v2929 = vadd.f32 %v2864, %v2906
        %v2930 = vadd.f32 %v2865, %v2911
        %v2931 = vadd.f32 %v2866, %v2911
        %v2932 = vadd.f32 %v2867, %v2916
        %v2933 = vadd.f32 %v2868, %v2916
        %v2934 = vmax.f32 %v2918, 0.0
        %v2935 = vmax.f32 %v2919, 0.0
        %v2936 = vmax.f32 %v2920, 0.0
        %v2937 = vmax.f32 %v2921, 0.0
        %v2938 = vmax.f32 %v2922, 0.0
        %v2939 = vmax.f32 %v2923, 0.0
        %v2940 = vmax.f32 %v2924, 0.0
        %v2941 = vmax.f32 %v2925, 0.0
        %v2942 = vmax.f32 %v2926, 0.0
        %v2943 = vmax.f32 %v2927, 0.0
        %v2944 = vmax.f32 %v2928, 0.0
        %v2945 = vmax.f32 %v2929, 0.0
        %v2946 = vmax.f32 %v2930, 0.0
        %v2947 = vmax.f32 %v2931, 0.0
        %v2948 = vmax.f32 %v2932, 0.0
        %v2949 = vmax.f32 %v2933, 0.0
        %2950 = vrot.lane.b32.xlu0 %v2934, 1
        %v2951 = vpop.permute.xlu0 %2950
        %2952 = vrot.lane.b32.xlu0 %v2936, 1
        %v2953 = vpop.permute.xlu0 %2952
        %2954 = vrot.lane.b32.xlu0 %v2938, 1
        %v2955 = vpop.permute.xlu0 %2954
        %2956 = vrot.lane.b32.xlu0 %v2940, 1
        %v2957 = vpop.permute.xlu0 %2956
        %2958 = vrot.lane.b32.xlu0 %v2942, 1
        %v2959 = vpop.permute.xlu0 %2958
        %2960 = vrot.lane.b32.xlu0 %v2944, 1
        %v2961 = vpop.permute.xlu0 %2960
        %2962 = vrot.lane.b32.xlu0 %v2946, 1
        %v2963 = vpop.permute.xlu0 %2962
        %2964 = vrot.lane.b32.xlu0 %v2948, 1
        %v2965 = vpop.permute.xlu0 %2964
        %2966 = vrot.lane.b32.xlu0 %v2935, 1
        %v2967 = vpop.permute.xlu0 %2966
        %2968 = vrot.lane.b32.xlu0 %v2937, 1
        %v2969 = vpop.permute.xlu0 %2968
        %2970 = vrot.lane.b32.xlu0 %v2939, 1
        %v2971 = vpop.permute.xlu0 %2970
        %2972 = vrot.lane.b32.xlu0 %v2941, 1
        %v2973 = vpop.permute.xlu0 %2972
        %2974 = vrot.lane.b32.xlu0 %v2943, 1
        %v2975 = vpop.permute.xlu0 %2974
        %2976 = vrot.lane.b32.xlu0 %v2945, 1
        %v2977 = vpop.permute.xlu0 %2976
        %2978 = vrot.lane.b32.xlu0 %v2947, 1
        %v2979 = vpop.permute.xlu0 %2978
        %2980 = vrot.lane.b32.xlu0 %v2949, 1
        %v2981 = vpop.permute.xlu0 %2980
        %v2982 = vsel %vm352, %v2951, %v2967
        %v2983 = vsel %vm352, %v2953, %v2969
        %v2984 = vsel %vm352, %v2955, %v2971
        %v2985 = vsel %vm352, %v2957, %v2973
        %v2986 = vsel %vm352, %v2959, %v2975
        %v2987 = vsel %vm352, %v2961, %v2977
        %v2988 = vsel %vm352, %v2963, %v2979
        %v2989 = vsel %vm352, %v2965, %v2981
        %v2990 = vsel %vm352, %v2967, %v2951
        %v2991 = vsel %vm352, %v2969, %v2953
        %v2992 = vsel %vm352, %v2971, %v2955
        %v2993 = vsel %vm352, %v2973, %v2957
        %v2994 = vsel %vm352, %v2975, %v2959
        %v2995 = vsel %vm352, %v2977, %v2961
        %v2996 = vsel %vm352, %v2979, %v2963
        %v2997 = vsel %vm352, %v2981, %v2965
        %v2998 = vmul.f32 %v2990, %v356
        %v2999 = vmul.f32 %v2982, %v357
        %v3000 = vmul.f32 %v2991, %v356
        %v3001 = vmul.f32 %v2983, %v357
        %v3002 = vmul.f32 %v2992, %v356
        %v3003 = vmul.f32 %v2984, %v357
        %v3004 = vmul.f32 %v2993, %v356
        %v3005 = vmul.f32 %v2985, %v357
        %v3006 = vmul.f32 %v2994, %v356
        %v3007 = vmul.f32 %v2986, %v357
        %v3008 = vmul.f32 %v2995, %v356
        %v3009 = vmul.f32 %v2987, %v357
        %v3010 = vmul.f32 %v2996, %v356
        %v3011 = vmul.f32 %v2988, %v357
        %v3012 = vmul.f32 %v2997, %v356
        %v3013 = vmul.f32 %v2989, %v357
        %3014 = vrot.lane.b32.xlu0 %v2934, 127
        %v3015 = vpop.permute.xlu0 %3014
        %3016 = vrot.lane.b32.xlu0 %v2936, 127
        %v3017 = vpop.permute.xlu0 %3016
        %3018 = vrot.lane.b32.xlu0 %v2938, 127
        %v3019 = vpop.permute.xlu0 %3018
        %3020 = vrot.lane.b32.xlu0 %v2940, 127
        %v3021 = vpop.permute.xlu0 %3020
        %3022 = vrot.lane.b32.xlu0 %v2942, 127
        %v3023 = vpop.permute.xlu0 %3022
        %3024 = vrot.lane.b32.xlu0 %v2944, 127
        %v3025 = vpop.permute.xlu0 %3024
        %3026 = vrot.lane.b32.xlu0 %v2946, 127
        %v3027 = vpop.permute.xlu0 %3026
        %3028 = vrot.lane.b32.xlu0 %v2948, 127
        %v3029 = vpop.permute.xlu0 %3028
        %3030 = vrot.lane.b32.xlu0 %v2935, 127
        %v3031 = vpop.permute.xlu0 %3030
        %3032 = vrot.lane.b32.xlu0 %v2937, 127
        %v3033 = vpop.permute.xlu0 %3032
        %3034 = vrot.lane.b32.xlu0 %v2939, 127
        %v3035 = vpop.permute.xlu0 %3034
        %3036 = vrot.lane.b32.xlu0 %v2941, 127
        %v3037 = vpop.permute.xlu0 %3036
        %3038 = vrot.lane.b32.xlu0 %v2943, 127
        %v3039 = vpop.permute.xlu0 %3038
        %3040 = vrot.lane.b32.xlu0 %v2945, 127
        %v3041 = vpop.permute.xlu0 %3040
        %3042 = vrot.lane.b32.xlu0 %v2947, 127
        %v3043 = vpop.permute.xlu0 %3042
        %3044 = vrot.lane.b32.xlu0 %v2949, 127
        %v3045 = vpop.permute.xlu0 %3044
        %v3046 = vsel %vm366, %v3015, %v3031
        %v3047 = vsel %vm366, %v3017, %v3033
        %v3048 = vsel %vm366, %v3019, %v3035
        %v3049 = vsel %vm366, %v3021, %v3037
        %v3050 = vsel %vm366, %v3023, %v3039
        %v3051 = vsel %vm366, %v3025, %v3041
        %v3052 = vsel %vm366, %v3027, %v3043
        %v3053 = vsel %vm366, %v3029, %v3045
        %v3054 = vsel %vm366, %v3031, %v3015
        %v3055 = vsel %vm366, %v3033, %v3017
        %v3056 = vsel %vm366, %v3035, %v3019
        %v3057 = vsel %vm366, %v3037, %v3021
        %v3058 = vsel %vm366, %v3039, %v3023
        %v3059 = vsel %vm366, %v3041, %v3025
        %v3060 = vsel %vm366, %v3043, %v3027
        %v3061 = vsel %vm366, %v3045, %v3029
        %v3062 = vmul.f32 %v3046, %v370
        %v3063 = vmul.f32 %v3054, %v371
        %v3064 = vmul.f32 %v3047, %v370
        %v3065 = vmul.f32 %v3055, %v371
        %v3066 = vmul.f32 %v3048, %v370
        %v3067 = vmul.f32 %v3056, %v371
        %v3068 = vmul.f32 %v3049, %v370
        %v3069 = vmul.f32 %v3057, %v371
        %v3070 = vmul.f32 %v3050, %v370
        %v3071 = vmul.f32 %v3058, %v371
        %v3072 = vmul.f32 %v3051, %v370
        %v3073 = vmul.f32 %v3059, %v371
        %v3074 = vmul.f32 %v3052, %v370
        %v3075 = vmul.f32 %v3060, %v371
        %v3076 = vmul.f32 %v3053, %v370
        %v3077 = vmul.f32 %v3061, %v371
        %v3078 = vld [vmem:[%s6] sm:$0xff]
        %v3079 = vld [vmem:[%s6 + $0x8] sm:$0xff]
        %v3080 = vld [vmem:[%s6 + $0x10] sm:$0xff]
        %v3081 = vld [vmem:[%s6 + $0x18] sm:$0xff]
        %v3082 = vld [vmem:[%s6 + $0x20] sm:$0xff]
        %v3083 = vld [vmem:[%s6 + $0x28] sm:$0xff]
        %v3084 = vld [vmem:[%s6 + $0x30] sm:$0xff]
        %v3085 = vld [vmem:[%s6 + $0x38] sm:$0xff]
        %3087 = vset.pattern.permute.xlu0 0
        %3088 = vperm.xlu0 %3087, %v3078
        %v3089 = vpop.permute.xlu0 %3088
        %3092 = vset.pattern.permute.xlu0 0
        %3093 = vperm.xlu0 %3092, %v3079
        %v3094 = vpop.permute.xlu0 %3093
        %3097 = vset.pattern.permute.xlu0 0
        %3098 = vperm.xlu0 %3097, %v3080
        %v3099 = vpop.permute.xlu0 %3098
        %3102 = vset.pattern.permute.xlu0 0
        %3103 = vperm.xlu0 %3102, %v3081
        %v3104 = vpop.permute.xlu0 %3103
        %3107 = vset.pattern.permute.xlu0 0
        %3108 = vperm.xlu0 %3107, %v3082
        %v3109 = vpop.permute.xlu0 %3108
        %3112 = vset.pattern.permute.xlu0 0
        %3113 = vperm.xlu0 %3112, %v3083
        %v3114 = vpop.permute.xlu0 %3113
        %3117 = vset.pattern.permute.xlu0 0
        %3118 = vperm.xlu0 %3117, %v3084
        %v3119 = vpop.permute.xlu0 %3118
        %3122 = vset.pattern.permute.xlu0 0
        %3123 = vperm.xlu0 %3122, %v3085
        %v3124 = vpop.permute.xlu0 %3123
        %v3126 = vmul.f32 %v3089, %v2998
        %v3127 = vmul.f32 %v3089, %v2999
        %v3128 = vmul.f32 %v3094, %v3000
        %v3129 = vmul.f32 %v3094, %v3001
        %v3130 = vmul.f32 %v3099, %v3002
        %v3131 = vmul.f32 %v3099, %v3003
        %v3132 = vmul.f32 %v3104, %v3004
        %v3133 = vmul.f32 %v3104, %v3005
        %v3134 = vmul.f32 %v3109, %v3006
        %v3135 = vmul.f32 %v3109, %v3007
        %v3136 = vmul.f32 %v3114, %v3008
        %v3137 = vmul.f32 %v3114, %v3009
        %v3138 = vmul.f32 %v3119, %v3010
        %v3139 = vmul.f32 %v3119, %v3011
        %v3140 = vmul.f32 %v3124, %v3012
        %v3141 = vmul.f32 %v3124, %v3013
        %3142 = vset.pattern.permute.xlu0 1
        %3143 = vperm.xlu0 %3142, %v3078
        %v3144 = vpop.permute.xlu0 %3143
        %3146 = vset.pattern.permute.xlu0 1
        %3147 = vperm.xlu0 %3146, %v3079
        %v3148 = vpop.permute.xlu0 %3147
        %3150 = vset.pattern.permute.xlu0 1
        %3151 = vperm.xlu0 %3150, %v3080
        %v3152 = vpop.permute.xlu0 %3151
        %3154 = vset.pattern.permute.xlu0 1
        %3155 = vperm.xlu0 %3154, %v3081
        %v3156 = vpop.permute.xlu0 %3155
        %3158 = vset.pattern.permute.xlu0 1
        %3159 = vperm.xlu0 %3158, %v3082
        %v3160 = vpop.permute.xlu0 %3159
        %3162 = vset.pattern.permute.xlu0 1
        %3163 = vperm.xlu0 %3162, %v3083
        %v3164 = vpop.permute.xlu0 %3163
        %3166 = vset.pattern.permute.xlu0 1
        %3167 = vperm.xlu0 %3166, %v3084
        %v3168 = vpop.permute.xlu0 %3167
        %3170 = vset.pattern.permute.xlu0 1
        %3171 = vperm.xlu0 %3170, %v3085
        %v3172 = vpop.permute.xlu0 %3171
        %v3174 = vmul.f32 %v3144, %v2934
        %v3175 = vmul.f32 %v3144, %v2935
        %v3176 = vmul.f32 %v3148, %v2936
        %v3177 = vmul.f32 %v3148, %v2937
        %v3178 = vmul.f32 %v3152, %v2938
        %v3179 = vmul.f32 %v3152, %v2939
        %v3180 = vmul.f32 %v3156, %v2940
        %v3181 = vmul.f32 %v3156, %v2941
        %v3182 = vmul.f32 %v3160, %v2942
        %v3183 = vmul.f32 %v3160, %v2943
        %v3184 = vmul.f32 %v3164, %v2944
        %v3185 = vmul.f32 %v3164, %v2945
        %v3186 = vmul.f32 %v3168, %v2946
        %v3187 = vmul.f32 %v3168, %v2947
        %v3188 = vmul.f32 %v3172, %v2948
        %v3189 = vmul.f32 %v3172, %v2949
        %v3190 = vadd.f32 %v3126, %v3174
        %v3191 = vadd.f32 %v3127, %v3175
        %v3192 = vadd.f32 %v3128, %v3176
        %v3193 = vadd.f32 %v3129, %v3177
        %v3194 = vadd.f32 %v3130, %v3178
        %v3195 = vadd.f32 %v3131, %v3179
        %v3196 = vadd.f32 %v3132, %v3180
        %v3197 = vadd.f32 %v3133, %v3181
        %v3198 = vadd.f32 %v3134, %v3182
        %v3199 = vadd.f32 %v3135, %v3183
        %v3200 = vadd.f32 %v3136, %v3184
        %v3201 = vadd.f32 %v3137, %v3185
        %v3202 = vadd.f32 %v3138, %v3186
        %v3203 = vadd.f32 %v3139, %v3187
        %v3204 = vadd.f32 %v3140, %v3188
        %v3205 = vadd.f32 %v3141, %v3189
        %3206 = vset.pattern.permute.xlu0 2
        %3207 = vperm.xlu0 %3206, %v3078
        %v3208 = vpop.permute.xlu0 %3207
        %3210 = vset.pattern.permute.xlu0 2
        %3211 = vperm.xlu0 %3210, %v3079
        %v3212 = vpop.permute.xlu0 %3211
        %3214 = vset.pattern.permute.xlu0 2
        %3215 = vperm.xlu0 %3214, %v3080
        %v3216 = vpop.permute.xlu0 %3215
        %3218 = vset.pattern.permute.xlu0 2
        %3219 = vperm.xlu0 %3218, %v3081
        %v3220 = vpop.permute.xlu0 %3219
        %3222 = vset.pattern.permute.xlu0 2
        %3223 = vperm.xlu0 %3222, %v3082
        %v3224 = vpop.permute.xlu0 %3223
        %3226 = vset.pattern.permute.xlu0 2
        %3227 = vperm.xlu0 %3226, %v3083
        %v3228 = vpop.permute.xlu0 %3227
        %3230 = vset.pattern.permute.xlu0 2
        %3231 = vperm.xlu0 %3230, %v3084
        %v3232 = vpop.permute.xlu0 %3231
        %3234 = vset.pattern.permute.xlu0 2
        %3235 = vperm.xlu0 %3234, %v3085
        %v3236 = vpop.permute.xlu0 %3235
        %v3238 = vmul.f32 %v3208, %v3062
        %v3239 = vmul.f32 %v3208, %v3063
        %v3240 = vmul.f32 %v3212, %v3064
        %v3241 = vmul.f32 %v3212, %v3065
        %v3242 = vmul.f32 %v3216, %v3066
        %v3243 = vmul.f32 %v3216, %v3067
        %v3244 = vmul.f32 %v3220, %v3068
        %v3245 = vmul.f32 %v3220, %v3069
        %v3246 = vmul.f32 %v3224, %v3070
        %v3247 = vmul.f32 %v3224, %v3071
        %v3248 = vmul.f32 %v3228, %v3072
        %v3249 = vmul.f32 %v3228, %v3073
        %v3250 = vmul.f32 %v3232, %v3074
        %v3251 = vmul.f32 %v3232, %v3075
        %v3252 = vmul.f32 %v3236, %v3076
        %v3253 = vmul.f32 %v3236, %v3077
        %v3254 = vadd.f32 %v3190, %v3238
        %v3255 = vadd.f32 %v3191, %v3239
        %v3256 = vadd.f32 %v3192, %v3240
        %v3257 = vadd.f32 %v3193, %v3241
        %v3258 = vadd.f32 %v3194, %v3242
        %v3259 = vadd.f32 %v3195, %v3243
        %v3260 = vadd.f32 %v3196, %v3244
        %v3261 = vadd.f32 %v3197, %v3245
        %v3262 = vadd.f32 %v3198, %v3246
        %v3263 = vadd.f32 %v3199, %v3247
        %v3264 = vadd.f32 %v3200, %v3248
        %v3265 = vadd.f32 %v3201, %v3249
        %v3266 = vadd.f32 %v3202, %v3250
        %v3267 = vadd.f32 %v3203, %v3251
        %v3268 = vadd.f32 %v3204, %v3252
        %v3269 = vadd.f32 %v3205, %v3253
        %v3270 = vadd.f32 %v3254, %v3256
        %v3271 = vadd.f32 %v3270, %v3258
        %v3272 = vadd.f32 %v3271, %v3260
        %v3273 = vadd.f32 %v3272, %v3262
        %v3274 = vadd.f32 %v3273, %v3264
        %v3275 = vadd.f32 %v3274, %v3266
        %v3276 = vadd.f32 %v3275, %v3268
        %v3277 = vrot.slane %v3276, 4
        %v3278 = vadd.f32 %v3276, %v3277
        %v3279 = vrot.slane %v3278, 2
        %v3280 = vadd.f32 %v3278, %v3279
        %v3281 = vrot.slane %v3280, 1
        %v3282 = vadd.f32 %v3280, %v3281
        %v3283 = vadd.f32 %v3255, %v3257
        %v3284 = vadd.f32 %v3283, %v3259
        %v3285 = vadd.f32 %v3284, %v3261
        %v3286 = vadd.f32 %v3285, %v3263
        %v3287 = vadd.f32 %v3286, %v3265
        %v3288 = vadd.f32 %v3287, %v3267
        %v3289 = vadd.f32 %v3288, %v3269
        %v3290 = vrot.slane %v3289, 4
        %v3291 = vadd.f32 %v3289, %v3290
        %v3292 = vrot.slane %v3291, 2
        %v3293 = vadd.f32 %v3291, %v3292
        %v3294 = vrot.slane %v3293, 1
        %v3295 = vadd.f32 %v3293, %v3294
        %v3296 = vmul.f32 %v3282, %v573
        %v3297 = vmul.f32 %v3295, %v574
        %v3300 = vrot.slane %v3297, 7
        %vm3301 = vcmask 1040384
        %v3302 = vsel %vm3301, %v3296, %v3300
        %v3304 = vlaneseq
        %vm3305 = vcmp.ge.s32.totalorder %v3304, 0
        %vm3306 = vcmp.lt.s32.totalorder %v3304, 256
        %vm3307 = vmand %vm3305, %vm3306
        %3308 = vst.msk [vmem:[%s330] sm:$0x3] %vm3307, %v3302
        %s3309 = sand.u32 %s205, 1
        %s3310 = scalar_lea.sflag [#allocation4], %s3309
        %s3311 = sand.u32 %s205, 1
        %s3312 = smul.addr %s3311, 2
        %s3313 = scalar_lea.vmem [#allocation7], %s3312
        // Predicated region
        $region61: #{tpu_custom_call.1} parent=51 // pred_check
          %p3314 = pneg %p215
        $region62: #{tpu_custom_call.1} parent=51 // pred_check_branch
          %3316 = sbr.rel (%p3314) target = $region64
        $region63: #{tpu_custom_call.1} parent=51 // pred_region
          %3318 = vsyncadd %s3310, 0
          %s3319 = smul.addr %s24, 2
          %s3320 = scalar_lea.hbm %s8, %s3319
          %s3322 = sshll.u32 %s3313, 4
          %s3323 = int_to_ptr.vmem [resolvable:$true] %s3322
          %s3324 = sshll.u32 %s3320, 4
          %s3325 = int_to_ptr.hbm [resolvable:$true] %s3324
          %3327 = dma.vmem_to_hbm [thread:$0]  %s3323, 32, %s3325, %s3310
        $region64: #{tpu_custom_call.1} parent=51 // pred_fallthru
          _
      $region52: #{tpu_custom_call.1} parent=5 // pred_fallthru
        _
      %p3328 = scmp.le.s32.totalorder 2, %s19
      // Predicated region
      $region65: #{tpu_custom_call.1} parent=5 // pred_check
        %p3329 = pneg %p3328
      $region66: #{tpu_custom_call.1} parent=5 // pred_check_branch
        %3331 = sbr.rel (%p3329) target = $region68
      $region67: #{tpu_custom_call.1} parent=5 // pred_region
        %s3332 = ssub.s32 %s19, 2
        // Predicated region
        $region69: #{tpu_custom_call.1} parent=67 // pred_check
          %p3333 = pneg %p221
        $region70: #{tpu_custom_call.1} parent=67 // pred_check_branch
          %3335 = sbr.rel (%p3333) target = $region72
        $region71: #{tpu_custom_call.1} parent=67 // pred_region
          %s3336 = sand.u32 %s206, 1
          %s3337 = scalar_lea.sflag [#allocation4], %s3336
          %s3338 = sand.u32 %s206, 1
          %s3339 = smul.addr %s3338, 2
          %s3340 = scalar_lea.vmem [#allocation7], %s3339
          %3342 = dma.done %s3337, 32
        $region72: #{tpu_custom_call.1} parent=67 // pred_fallthru
          _
      $region68: #{tpu_custom_call.1} parent=5 // pred_fallthru
        _
    $region6: #{tpu_custom_call.1} parent=1 // loop_footer
      %s23 = sadd.s32 1, %s19
    $region7: #{tpu_custom_call.1} parent=1 // loop_footer_branch
      %18 = sbr.rel target = $region3
    $region8: #{tpu_custom_call.1} parent=1 // loop_exit
      _
    %3343 = vsyncpa [#allocation3], 1
    %s3344 = scalar_lea.sflag [#allocation3], 1
    %3345 = vsyncpa %s3344, 1
    %3346 = vsyncpa [#allocation6], 1
    %3347 = vsyncpa [#allocation4], 1
    %s3348 = scalar_lea.sflag [#allocation4], 1
    %3349 = vsyncpa %s3348, 1

</llo_original>
